<compile_context>
chip_gen: v7x
topology: tpu7x:2x2x1
jax: 0.10.0
libtpu: 0.0.40
codegen_flags: <defaults>
</compile_context>

<pallas_src>
import functools

import jax
import jax.numpy as jnp
from jax import lax
from jax.experimental import pallas as pl
from jax.experimental.pallas import tpu as pltpu


# --------------------------------------------------------------------------
# Kernel 1: fused conv1 + ReLU + conv2 + ReLU + 2x2 max-pool
# --------------------------------------------------------------------------
# Per-image layouts (all rows = h*16 + j, j is the pooled-w / window index):
#   a1  : (416, 36)   a1[h*16+j, u*9+k] = x[h+ky, 2j+u+kx]         (k = ky*3+kx, u in [0,4))
#   y1  : (416, 128)  y1[h*16+j, u*32+ci] = relu(conv1)[h, 2j+u, ci]   (VMEM scratch only)
#   acc : (384, 128)  acc[h2*16+j, dx*64+c] = relu(conv2)[h2, 2j+dx, c]
#   out : (12,12,64)  out[i, j, c] = max_{dy,dx} relu(conv2)[2i+dy, 2j+dx, c]

def _conv_pool_kernel(a1_ref, w1_ref, b1_ref, w2_ref, b2_ref, o_ref, y1_ref, *, bt):
    for bi in range(bt):
        # ---- conv1 + ReLU into VMEM scratch (two row-halves to keep vreg pressure low) ----
        for half in range(2):
            a = a1_ref[bi, 208 * half:208 * (half + 1), :]                 # (208, 36)
            y = jnp.dot(a, w1_ref[...], preferred_element_type=jnp.float32)
            y1_ref[208 * half:208 * (half + 1), :] = jnp.maximum(y + b1_ref[...], 0.0)

        # ---- conv2: K-decomposed over the 3 row (ky) shifts, accumulate in f32 ----
        acc = jnp.zeros((384, 128), jnp.float32)
        for ky in range(3):
            ak = y1_ref[16 * ky:16 * ky + 384, :]                          # (384, 128)
            acc = acc + jnp.dot(ak, w2_ref[ky], preferred_element_type=jnp.float32)
        acc = jnp.maximum(acc + b2_ref[...], 0.0)                          # ReLU(conv2)

        # ---- fused 2x2 max-pool (pure elementwise maxima, no HBM round trip) ----
        for i in range(12):                                                # pooled h index
            blk = jnp.maximum(acc[32 * i:32 * i + 16, :],                  # h2 = 2i
                              acc[32 * i + 16:32 * i + 32, :])             # h2 = 2i + 1
            row = jnp.maximum(blk[:, 0:64], blk[:, 64:128])                # w parity max
            o_ref[bi, i] = row[0:12, :].astype(o_ref.dtype)                # drop padded j


def _pick_bt(n):
    if n % 4 == 0 and n >= 8:
        return 4
    if n % 2 == 0 and n >= 4:
        return 2
    return 1


def conv_pool_fused(a1, params):
    n = a1.shape[0]
    bt = _pick_bt(n)
    return pl.pallas_call(
        functools.partial(_conv_pool_kernel, bt=bt),
        out_shape=jax.ShapeDtypeStruct((n, 12, 12, 64), jnp.bfloat16),
        grid=(n // bt,),
        in_specs=[
            pl.BlockSpec((bt, 416, 36), lambda i: (i, 0, 0)),     # conv1 patches
            pl.BlockSpec((36, 128), lambda i: (0, 0)),            # kron(I4, w1)
            pl.BlockSpec((1, 128), lambda i: (0, 0)),             # b1 tiled x4
            pl.BlockSpec((3, 128, 128), lambda i: (0, 0, 0)),     # conv2 shifted weights
            pl.BlockSpec((1, 128), lambda i: (0, 0)),             # b2 tiled x2
        ],
        out_specs=pl.BlockSpec((bt, 12, 12, 64), lambda i: (i, 0, 0, 0)),
        scratch_shapes=[pltpu.VMEM((416, 128), jnp.float32)],     # conv1 activation
        compiler_params=pltpu.CompilerParams(dimension_semantics=("parallel",)),
    )(a1, params["cw1"], params["cb1"], params["cw2"], params["cb2"])


# --------------------------------------------------------------------------
# Kernel 2: fc1 (K-tiled, bf16, f32 accum) + ReLU + fc2 + log_softmax fused
# --------------------------------------------------------------------------
def _fc_kernel(a_ref, w1_ref, b1_ref, w2_ref, b2_ref, o_ref, acc_ref):
    k = pl.program_id(1)

    @pl.when(k == 0)
    def _init():
        acc_ref[...] = jnp.zeros_like(acc_ref)

    acc_ref[...] += jnp.dot(a_ref[...], w1_ref[...], preferred_element_type=jnp.float32)

    @pl.when(k == pl.num_programs(1) - 1)
    def _finalize():
        h = jnp.maximum(acc_ref[...] + b1_ref[...], 0.0)                     # fc1 + ReLU
        logits = jnp.dot(h, w2_ref[...], preferred_element_type=jnp.float32) + b2_ref[...]
        m = jnp.max(logits, axis=-1, keepdims=True)
        lse = jnp.log(jnp.sum(jnp.exp(logits - m), axis=-1, keepdims=True)) + m
        o_ref[...] = (logits - lse).astype(o_ref.dtype)                      # log_softmax


def fc_fused(act, params):
    n = act.shape[0]
    mp = ((n + 7) // 8) * 8
    tm = mp if mp <= 256 else 256
    if mp % tm != 0:
        mp = ((mp + tm - 1) // tm) * tm
    if mp != n:
        act = jnp.pad(act, ((0, mp - n), (0, 0)))
    tk = 2304                                    # 9216 / 4, multiple of 128
    kt = 9216 // tk
    out = pl.pallas_call(
        _fc_kernel,
        out_shape=jax.ShapeDtypeStruct((mp, 10), jnp.float32),
        grid=(mp // tm, kt),                     # reduction axis last
        in_specs=[
            pl.BlockSpec((tm, tk), lambda m, k: (m, k)),      # activations (bf16)
            pl.BlockSpec((tk, 128), lambda m, k: (k, 0)),     # fc1 weight (bf16)
            pl.BlockSpec((1, 128), lambda m, k: (0, 0)),      # fc1 bias
            pl.BlockSpec((128, 10), lambda m, k: (0, 0)),     # fc2 weight (resident)
            pl.BlockSpec((1, 10), lambda m, k: (0, 0)),       # fc2 bias
        ],
        out_specs=pl.BlockSpec((tm, 10), lambda m, k: (m, 0)),
        scratch_shapes=[pltpu.VMEM((tm, 128), jnp.float32)],
        compiler_params=pltpu.CompilerParams(
            dimension_semantics=("parallel", "arbitrary")),
    )(act, params["fw1"], params["fb1"], params["fw2"], params["fb2"])
    return out[:n]


# --------------------------------------------------------------------------
# Parameter preparation (PyTorch layout -> kernel layout; done once)
# --------------------------------------------------------------------------
def init_torch_params(key):
    """PyTorch-default-style U(-1/sqrt(fan_in), 1/sqrt(fan_in)) init, PyTorch layouts."""
    ks = jax.random.split(key, 8)

    def u(k, shape, fan_in):
        b = 1.0 / (fan_in ** 0.5)
        return jax.random.uniform(k, shape, jnp.float32, -b, b)

    return {
        "conv1_w": u(ks[0], (32, 1, 3, 3), 9),     "conv1_b": u(ks[1], (32,), 9),
        "conv2_w": u(ks[2], (64, 32, 3, 3), 288),  "conv2_b": u(ks[3], (64,), 288),
        "fc1_w": u(ks[4], (128, 9216), 9216),      "fc1_b": u(ks[5], (128,), 9216),
        "fc2_w": u(ks[6], (10, 128), 128),         "fc2_b": u(ks[7], (10,), 128),
    }


def prepare_params(tp):
    # conv1: (9,32) [k=(ky,kx), ci]; block-diagonal over the 4 packed w-offsets u.
    w1 = tp["conv1_w"].reshape(32, 9).T.astype(jnp.float32)              # (9, 32)
    cw1 = jnp.kron(jnp.eye(4, dtype=jnp.float32), w1)                    # (36, 128)
    cb1 = jnp.tile(tp["conv1_b"], 4).reshape(1, 128)

    # conv2: per-ky weights mapping (u, ci) -> (dx, c), dx = output-w parity.
    w2t = tp["conv2_w"]                                                  # (64, 32, 3, 3)
    cw2 = jnp.zeros((3, 128, 128), jnp.float32)
    for ky in range(3):
        for u in range(4):
            for dx in range(2):
                kx = u - dx
                if 0 <= kx <= 2:
                    blk = jnp.transpose(w2t[:, :, ky, kx])               # (32, 64) [ci, c]
                    cw2 = cw2.at[ky, u * 32:(u + 1) * 32, dx * 64:(dx + 1) * 64].set(blk)
    cb2 = jnp.concatenate([tp["conv2_b"], tp["conv2_b"]]).reshape(1, 128)

    # fc1: permute torch's (c,h,w) flatten order to our (h,w,c) order; bf16 for the MXU.
    fw1 = (tp["fc1_w"].T.reshape(64, 12, 12, 128)
           .transpose(1, 2, 0, 3).reshape(9216, 128)).astype(jnp.bfloat16)
    fb1 = tp["fc1_b"].reshape(1, 128)
    fw2 = tp["fc2_w"].T.astype(jnp.float32)                              # (128, 10)
    fb2 = tp["fc2_b"].reshape(1, 10)

    return {"cw1": cw1, "cb1": cb1, "cw2": cw2, "cb2": cb2,
            "fw1": fw1, "fb1": fb1, "fw2": fw2, "fb2": fb2}


# --------------------------------------------------------------------------
# Forward pass
# --------------------------------------------------------------------------
def net_forward(x_nchw, params):
    n = x_nchw.shape[0]
    xs = x_nchw.reshape(n, 28, 28).astype(jnp.float32)          # C_in = 1
    xp = jnp.pad(xs, ((0, 0), (0, 0), (0, 8)))                  # (N, 28, 36), w zero-padded

    # conv1 patches in the packed layout: a1[n, h*16+j, u*9 + ky*3+kx] = x[n, h+ky, 2j+u+kx]
    cols = []
    for u in range(4):
        for ky in range(3):
            for kx in range(3):
                s = u + kx
                cols.append(xp[:, ky:ky + 26, s:s + 31:2])       # (N, 26, 16)
    a1 = jnp.stack(cols, axis=-1).reshape(n, 416, 36)            # (N, 416, 36)

    pooled = conv_pool_fused(a1, params)                         # (N, 12, 12, 64) bf16
    act = pooled.reshape(n, 9216)                                # (h, w, c) feature order

    # dropout1 / dropout2: identity at inference time.
    return fc_fused(act, params)                                 # (N, 10) log-probs


# --------------------------------------------------------------------------
# Pure-JAX reference (for a numerical sanity check)
# --------------------------------------------------------------------------
def reference_forward(x, tp):
    dn = ("NCHW", "OIHW", "NCHW")
    hi = lax.Precision.HIGHEST
    y = lax.conv_general_dilated(x, tp["conv1_w"], (1, 1), "VALID",
                                 dimension_numbers=dn, precision=hi)
    y = jnp.maximum(y + tp["conv1_b"][None, :, None, None], 0.0)
    y = lax.conv_general_dilated(y, tp["conv2_w"], (1, 1), "VALID",
                                 dimension_numbers=dn, precision=hi)
    y = jnp.maximum(y + tp["conv2_b"][None, :, None, None], 0.0)
    n = y.shape[0]
    y = y.reshape(n, 64, 12, 2, 12, 2).max(axis=(3, 5))
    y = y.reshape(n, 9216)
    y = jnp.maximum(jnp.dot(y, tp["fc1_w"].T, precision=hi) + tp["fc1_b"], 0.0)
    y = jnp.dot(y, tp["fc2_w"].T, precision=hi) + tp["fc2_b"]
    return jax.nn.log_softmax(y, axis=1)


if __name__ == "__main__":
    key = jax.random.PRNGKey(0)
    k_params, k_x = jax.random.split(key)
    torch_params = init_torch_params(k_params)
    params = prepare_params(torch_params)

    # Input must be (N, 1, 28, 28) because fc1 expects 9216 = 64 * 12 * 12 features.
    x = jax.random.normal(k_x, (2, 1, 28, 28), dtype=jnp.float32)

    fwd = jax.jit(net_forward)
    out = jax.block_until_ready(fwd(x, params))

    assert out.shape == (2, 10)
    # log_softmax rows should sum to ~1 in probability space
    assert bool(jnp.allclose(jnp.sum(jnp.exp(out), axis=1), 1.0, atol=1e-3))

    # check against a pure-JAX f32 reference (fc1 runs in bf16 on the MXU -> small tolerance)
    ref = reference_forward(x, torch_params)
    max_err = float(jnp.max(jnp.abs(out - ref)))
    assert max_err < 3e-2, f"mismatch vs reference: max abs err {max_err}"

    print("KERNEL_OK")
</pallas_src>

<mosaic_0001>
module attributes {stable_mosaic.version = 11 : i64} {
  func.func @_conv_pool_kernel(%arg0: i32, %arg1: memref<1x416x36xf32, #tpu.memory_space<vmem>>, %arg2: memref<36x128xf32, #tpu.memory_space<vmem>>, %arg3: memref<1x128xf32, #tpu.memory_space<vmem>>, %arg4: memref<3x128x128xf32, #tpu.memory_space<vmem>>, %arg5: memref<1x128xf32, #tpu.memory_space<vmem>>, %arg6: memref<1x12x12x64xbf16, #tpu.memory_space<vmem>>, %arg7: memref<416x128xf32, #tpu.memory_space<vmem>>) attributes {dimension_semantics = [#tpu.dimension_semantics<parallel>], iteration_bounds = array<i64: 2>, scalar_prefetch = 0 : i64, scratch_operands = 1 : i64, tpu.core_type = #tpu.core_type<tc>, window_params = [{transform_indices = @transform_0, window_bounds = array<i64: 1, 416, 36>}, {pipeline_mode = #tpu.pipeline_mode<synchronous>, transform_indices = @transform_1, window_bounds = array<i64: 36, 128>}, {pipeline_mode = #tpu.pipeline_mode<synchronous>, transform_indices = @transform_2, window_bounds = array<i64: 1, 128>}, {pipeline_mode = #tpu.pipeline_mode<synchronous>, transform_indices = @transform_3, window_bounds = array<i64: 3, 128, 128>}, {pipeline_mode = #tpu.pipeline_mode<synchronous>, transform_indices = @transform_4, window_bounds = array<i64: 1, 128>}, {transform_indices = @transform_5, window_bounds = array<i64: 1, 12, 12, 64>}]} {
    %c0 = arith.constant 0 : index
    %c0_0 = arith.constant 0 : index
    %c0_1 = arith.constant 0 : index
    %0 = vector.load %arg1[%c0, %c0_0, %c0_1] : memref<1x416x36xf32, #tpu.memory_space<vmem>>, vector<1x208x36xf32>
    %1 = vector.shape_cast %0 : vector<1x208x36xf32> to vector<208x36xf32>
    %c0_2 = arith.constant 0 : index
    %c0_3 = arith.constant 0 : index
    %2 = vector.load %arg2[%c0_2, %c0_3] : memref<36x128xf32, #tpu.memory_space<vmem>>, vector<36x128xf32>
    %cst = arith.constant dense<0.000000e+00> : vector<208x128xf32>
    %3 = tpu.matmul %1, %2, %cst {dimension_numbers = #tpu.dot_dimension_numbers<[1], [0], [0], [1], [0, 0, 1, 1], [], []>} : vector<208x36xf32>, vector<36x128xf32>, vector<208x128xf32> -> vector<208x128xf32>
    %c0_4 = arith.constant 0 : index
    %c0_5 = arith.constant 0 : index
    %4 = vector.load %arg3[%c0_4, %c0_5] : memref<1x128xf32, #tpu.memory_space<vmem>>, vector<1x128xf32>
    %5 = vector.broadcast %4 : vector<1x128xf32> to vector<208x128xf32>
    %6 = arith.addf %3, %5 : vector<208x128xf32>
    %cst_6 = arith.constant 0.000000e+00 : f32
    %7 = vector.broadcast %cst_6 : f32 to vector<208x128xf32>
    %8 = arith.maximumf %6, %7 : vector<208x128xf32>
    %c0_7 = arith.constant 0 : index
    %c0_8 = arith.constant 0 : index
    %9 = vector.load %arg7[%c0_7, %c0_8] : memref<416x128xf32, #tpu.memory_space<vmem>>, vector<208x128xf32>
    tpu.vector_store %arg7[%c0_7, %c0_8], %8 {strides = array<i32>} : memref<416x128xf32, #tpu.memory_space<vmem>>, vector<208x128xf32>,
    %c0_9 = arith.constant 0 : index
    %c208 = arith.constant 208 : index
    %c0_10 = arith.constant 0 : index
    %10 = vector.load %arg1[%c0_9, %c208, %c0_10] : memref<1x416x36xf32, #tpu.memory_space<vmem>>, vector<1x208x36xf32>
    %11 = vector.shape_cast %10 : vector<1x208x36xf32> to vector<208x36xf32>
    %c0_11 = arith.constant 0 : index
    %c0_12 = arith.constant 0 : index
    %12 = vector.load %arg2[%c0_11, %c0_12] : memref<36x128xf32, #tpu.memory_space<vmem>>, vector<36x128xf32>
    %cst_13 = arith.constant dense<0.000000e+00> : vector<208x128xf32>
    %13 = tpu.matmul %11, %12, %cst_13 {dimension_numbers = #tpu.dot_dimension_numbers<[1], [0], [0], [1], [0, 0, 1, 1], [], []>} : vector<208x36xf32>, vector<36x128xf32>, vector<208x128xf32> -> vector<208x128xf32>
    %c0_14 = arith.constant 0 : index
    %c0_15 = arith.constant 0 : index
    %14 = vector.load %arg3[%c0_14, %c0_15] : memref<1x128xf32, #tpu.memory_space<vmem>>, vector<1x128xf32>
    %15 = vector.broadcast %14 : vector<1x128xf32> to vector<208x128xf32>
    %16 = arith.addf %13, %15 : vector<208x128xf32>
    %cst_16 = arith.constant 0.000000e+00 : f32
    %17 = vector.broadcast %cst_16 : f32 to vector<208x128xf32>
    %18 = arith.maximumf %16, %17 : vector<208x128xf32>
    %c208_17 = arith.constant 208 : index
    %c0_18 = arith.constant 0 : index
    %19 = vector.load %arg7[%c208_17, %c0_18] : memref<416x128xf32, #tpu.memory_space<vmem>>, vector<208x128xf32>
    tpu.vector_store %arg7[%c208_17, %c0_18], %18 {strides = array<i32>} : memref<416x128xf32, #tpu.memory_space<vmem>>, vector<208x128xf32>,
    %cst_19 = arith.constant 0.000000e+00 : f32
    %20 = vector.broadcast %cst_19 : f32 to vector<384x128xf32>
    %c0_20 = arith.constant 0 : index
    %c0_21 = arith.constant 0 : index
    %21 = vector.load %arg7[%c0_20, %c0_21] : memref<416x128xf32, #tpu.memory_space<vmem>>, vector<384x128xf32>
    %c0_22 = arith.constant 0 : index
    %c0_23 = arith.constant 0 : index
    %c0_24 = arith.constant 0 : index
    %22 = vector.load %arg4[%c0_22, %c0_23, %c0_24] : memref<3x128x128xf32, #tpu.memory_space<vmem>>, vector<1x128x128xf32>
    %23 = vector.shape_cast %22 : vector<1x128x128xf32> to vector<128x128xf32>
    %cst_25 = arith.constant dense<0.000000e+00> : vector<384x128xf32>
    %24 = tpu.matmul %21, %23, %cst_25 {dimension_numbers = #tpu.dot_dimension_numbers<[1], [0], [0], [1], [0, 0, 1, 1], [], []>} : vector<384x128xf32>, vector<128x128xf32>, vector<384x128xf32> -> vector<384x128xf32>
    %25 = arith.addf %20, %24 : vector<384x128xf32>
    %c16 = arith.constant 16 : index
    %c0_26 = arith.constant 0 : index
    %26 = vector.load %arg7[%c16, %c0_26] : memref<416x128xf32, #tpu.memory_space<vmem>>, vector<384x128xf32>
    %c1 = arith.constant 1 : index
    %c0_27 = arith.constant 0 : index
    %c0_28 = arith.constant 0 : index
    %27 = vector.load %arg4[%c1, %c0_27, %c0_28] : memref<3x128x128xf32, #tpu.memory_space<vmem>>, vector<1x128x128xf32>
    %28 = vector.shape_cast %27 : vector<1x128x128xf32> to vector<128x128xf32>
    %cst_29 = arith.constant dense<0.000000e+00> : vector<384x128xf32>
    %29 = tpu.matmul %26, %28, %cst_29 {dimension_numbers = #tpu.dot_dimension_numbers<[1], [0], [0], [1], [0, 0, 1, 1], [], []>} : vector<384x128xf32>, vector<128x128xf32>, vector<384x128xf32> -> vector<384x128xf32>
    %30 = arith.addf %25, %29 : vector<384x128xf32>
    %c32 = arith.constant 32 : index
    %c0_30 = arith.constant 0 : index
    %31 = vector.load %arg7[%c32, %c0_30] : memref<416x128xf32, #tpu.memory_space<vmem>>, vector<384x128xf32>
    %c2 = arith.constant 2 : index
    %c0_31 = arith.constant 0 : index
    %c0_32 = arith.constant 0 : index
    %32 = vector.load %arg4[%c2, %c0_31, %c0_32] : memref<3x128x128xf32, #tpu.memory_space<vmem>>, vector<1x128x128xf32>
    %33 = vector.shape_cast %32 : vector<1x128x128xf32> to vector<128x128xf32>
    %cst_33 = arith.constant dense<0.000000e+00> : vector<384x128xf32>
    %34 = tpu.matmul %31, %33, %cst_33 {dimension_numbers = #tpu.dot_dimension_numbers<[1], [0], [0], [1], [0, 0, 1, 1], [], []>} : vector<384x128xf32>, vector<128x128xf32>, vector<384x128xf32> -> vector<384x128xf32>
    %35 = arith.addf %30, %34 : vector<384x128xf32>
    %c0_34 = arith.constant 0 : index
    %c0_35 = arith.constant 0 : index
    %36 = vector.load %arg5[%c0_34, %c0_35] : memref<1x128xf32, #tpu.memory_space<vmem>>, vector<1x128xf32>
    %37 = vector.broadcast %36 : vector<1x128xf32> to vector<384x128xf32>
    %38 = arith.addf %35, %37 : vector<384x128xf32>
    %cst_36 = arith.constant 0.000000e+00 : f32
    %39 = vector.broadcast %cst_36 : f32 to vector<384x128xf32>
    %40 = arith.maximumf %38, %39 : vector<384x128xf32>
    %41 = vector.extract_strided_slice %40 {offsets = [0, 0], sizes = [16, 128], strides = [1, 1]} : vector<384x128xf32> to vector<16x128xf32>
    %42 = vector.extract_strided_slice %40 {offsets = [16, 0], sizes = [16, 128], strides = [1, 1]} : vector<384x128xf32> to vector<16x128xf32>
    %43 = arith.maximumf %41, %42 : vector<16x128xf32>
    %44 = vector.extract_strided_slice %43 {offsets = [0, 0], sizes = [16, 64], strides = [1, 1]} : vector<16x128xf32> to vector<16x64xf32>
    %45 = vector.extract_strided_slice %43 {offsets = [0, 64], sizes = [16, 64], strides = [1, 1]} : vector<16x128xf32> to vector<16x64xf32>
    %46 = arith.maximumf %44, %45 : vector<16x64xf32>
    %47 = vector.extract_strided_slice %46 {offsets = [0, 0], sizes = [12, 64], strides = [1, 1]} : vector<16x64xf32> to vector<12x64xf32>
    %48 = arith.truncf %47 : vector<12x64xf32> to vector<12x64xbf16>
    %c0_37 = arith.constant 0 : index
    %c0_38 = arith.constant 0 : index
    %c0_39 = arith.constant 0 : index
    %c0_40 = arith.constant 0 : index
    %49 = vector.load %arg6[%c0_37, %c0_38, %c0_39, %c0_40] : memref<1x12x12x64xbf16, #tpu.memory_space<vmem>>, vector<1x1x12x64xbf16>
    %50 = vector.shape_cast %49 : vector<1x1x12x64xbf16> to vector<12x64xbf16>
    %51 = vector.shape_cast %48 : vector<12x64xbf16> to vector<1x1x12x64xbf16>
    tpu.vector_store %arg6[%c0_37, %c0_38, %c0_39, %c0_40], %51 {strides = array<i32>} : memref<1x12x12x64xbf16, #tpu.memory_space<vmem>>, vector<1x1x12x64xbf16>,
    %52 = vector.extract_strided_slice %40 {offsets = [32, 0], sizes = [16, 128], strides = [1, 1]} : vector<384x128xf32> to vector<16x128xf32>
    %53 = vector.extract_strided_slice %40 {offsets = [48, 0], sizes = [16, 128], strides = [1, 1]} : vector<384x128xf32> to vector<16x128xf32>
    %54 = arith.maximumf %52, %53 : vector<16x128xf32>
    %55 = vector.extract_strided_slice %54 {offsets = [0, 0], sizes = [16, 64], strides = [1, 1]} : vector<16x128xf32> to vector<16x64xf32>
    %56 = vector.extract_strided_slice %54 {offsets = [0, 64], sizes = [16, 64], strides = [1, 1]} : vector<16x128xf32> to vector<16x64xf32>
    %57 = arith.maximumf %55, %56 : vector<16x64xf32>
    %58 = vector.extract_strided_slice %57 {offsets = [0, 0], sizes = [12, 64], strides = [1, 1]} : vector<16x64xf32> to vector<12x64xf32>
    %59 = arith.truncf %58 : vector<12x64xf32> to vector<12x64xbf16>
    %c0_41 = arith.constant 0 : index
    %c1_42 = arith.constant 1 : index
    %c0_43 = arith.constant 0 : index
    %c0_44 = arith.constant 0 : index
    %60 = vector.load %arg6[%c0_41, %c1_42, %c0_43, %c0_44] : memref<1x12x12x64xbf16, #tpu.memory_space<vmem>>, vector<1x1x12x64xbf16>
    %61 = vector.shape_cast %60 : vector<1x1x12x64xbf16> to vector<12x64xbf16>
    %62 = vector.shape_cast %59 : vector<12x64xbf16> to vector<1x1x12x64xbf16>
    tpu.vector_store %arg6[%c0_41, %c1_42, %c0_43, %c0_44], %62 {strides = array<i32>} : memref<1x12x12x64xbf16, #tpu.memory_space<vmem>>, vector<1x1x12x64xbf16>,
    %63 = vector.extract_strided_slice %40 {offsets = [64, 0], sizes = [16, 128], strides = [1, 1]} : vector<384x128xf32> to vector<16x128xf32>
    %64 = vector.extract_strided_slice %40 {offsets = [80, 0], sizes = [16, 128], strides = [1, 1]} : vector<384x128xf32> to vector<16x128xf32>
    %65 = arith.maximumf %63, %64 : vector<16x128xf32>
    %66 = vector.extract_strided_slice %65 {offsets = [0, 0], sizes = [16, 64], strides = [1, 1]} : vector<16x128xf32> to vector<16x64xf32>
    %67 = vector.extract_strided_slice %65 {offsets = [0, 64], sizes = [16, 64], strides = [1, 1]} : vector<16x128xf32> to vector<16x64xf32>
    %68 = arith.maximumf %66, %67 : vector<16x64xf32>
    %69 = vector.extract_strided_slice %68 {offsets = [0, 0], sizes = [12, 64], strides = [1, 1]} : vector<16x64xf32> to vector<12x64xf32>
    %70 = arith.truncf %69 : vector<12x64xf32> to vector<12x64xbf16>
    %c0_45 = arith.constant 0 : index
    %c2_46 = arith.constant 2 : index
    %c0_47 = arith.constant 0 : index
    %c0_48 = arith.constant 0 : index
    %71 = vector.load %arg6[%c0_45, %c2_46, %c0_47, %c0_48] : memref<1x12x12x64xbf16, #tpu.memory_space<vmem>>, vector<1x1x12x64xbf16>
    %72 = vector.shape_cast %71 : vector<1x1x12x64xbf16> to vector<12x64xbf16>
    %73 = vector.shape_cast %70 : vector<12x64xbf16> to vector<1x1x12x64xbf16>
    tpu.vector_store %arg6[%c0_45, %c2_46, %c0_47, %c0_48], %73 {strides = array<i32>} : memref<1x12x12x64xbf16, #tpu.memory_space<vmem>>, vector<1x1x12x64xbf16>,
    %74 = vector.extract_strided_slice %40 {offsets = [96, 0], sizes = [16, 128], strides = [1, 1]} : vector<384x128xf32> to vector<16x128xf32>
    %75 = vector.extract_strided_slice %40 {offsets = [112, 0], sizes = [16, 128], strides = [1, 1]} : vector<384x128xf32> to vector<16x128xf32>
    %76 = arith.maximumf %74, %75 : vector<16x128xf32>
    %77 = vector.extract_strided_slice %76 {offsets = [0, 0], sizes = [16, 64], strides = [1, 1]} : vector<16x128xf32> to vector<16x64xf32>
    %78 = vector.extract_strided_slice %76 {offsets = [0, 64], sizes = [16, 64], strides = [1, 1]} : vector<16x128xf32> to vector<16x64xf32>
    %79 = arith.maximumf %77, %78 : vector<16x64xf32>
    %80 = vector.extract_strided_slice %79 {offsets = [0, 0], sizes = [12, 64], strides = [1, 1]} : vector<16x64xf32> to vector<12x64xf32>
    %81 = arith.truncf %80 : vector<12x64xf32> to vector<12x64xbf16>
    %c0_49 = arith.constant 0 : index
    %c3 = arith.constant 3 : index
    %c0_50 = arith.constant 0 : index
    %c0_51 = arith.constant 0 : index
    %82 = vector.load %arg6[%c0_49, %c3, %c0_50, %c0_51] : memref<1x12x12x64xbf16, #tpu.memory_space<vmem>>, vector<1x1x12x64xbf16>
    %83 = vector.shape_cast %82 : vector<1x1x12x64xbf16> to vector<12x64xbf16>
    %84 = vector.shape_cast %81 : vector<12x64xbf16> to vector<1x1x12x64xbf16>
    tpu.vector_store %arg6[%c0_49, %c3, %c0_50, %c0_51], %84 {strides = array<i32>} : memref<1x12x12x64xbf16, #tpu.memory_space<vmem>>, vector<1x1x12x64xbf16>,
    %85 = vector.extract_strided_slice %40 {offsets = [128, 0], sizes = [16, 128], strides = [1, 1]} : vector<384x128xf32> to vector<16x128xf32>
    %86 = vector.extract_strided_slice %40 {offsets = [144, 0], sizes = [16, 128], strides = [1, 1]} : vector<384x128xf32> to vector<16x128xf32>
    %87 = arith.maximumf %85, %86 : vector<16x128xf32>
    %88 = vector.extract_strided_slice %87 {offsets = [0, 0], sizes = [16, 64], strides = [1, 1]} : vector<16x128xf32> to vector<16x64xf32>
    %89 = vector.extract_strided_slice %87 {offsets = [0, 64], sizes = [16, 64], strides = [1, 1]} : vector<16x128xf32> to vector<16x64xf32>
    %90 = arith.maximumf %88, %89 : vector<16x64xf32>
    %91 = vector.extract_strided_slice %90 {offsets = [0, 0], sizes = [12, 64], strides = [1, 1]} : vector<16x64xf32> to vector<12x64xf32>
    %92 = arith.truncf %91 : vector<12x64xf32> to vector<12x64xbf16>
    %c0_52 = arith.constant 0 : index
    %c4 = arith.constant 4 : index
    %c0_53 = arith.constant 0 : index
    %c0_54 = arith.constant 0 : index
    %93 = vector.load %arg6[%c0_52, %c4, %c0_53, %c0_54] : memref<1x12x12x64xbf16, #tpu.memory_space<vmem>>, vector<1x1x12x64xbf16>
    %94 = vector.shape_cast %93 : vector<1x1x12x64xbf16> to vector<12x64xbf16>
    %95 = vector.shape_cast %92 : vector<12x64xbf16> to vector<1x1x12x64xbf16>
    tpu.vector_store %arg6[%c0_52, %c4, %c0_53, %c0_54], %95 {strides = array<i32>} : memref<1x12x12x64xbf16, #tpu.memory_space<vmem>>, vector<1x1x12x64xbf16>,
    %96 = vector.extract_strided_slice %40 {offsets = [160, 0], sizes = [16, 128], strides = [1, 1]} : vector<384x128xf32> to vector<16x128xf32>
    %97 = vector.extract_strided_slice %40 {offsets = [176, 0], sizes = [16, 128], strides = [1, 1]} : vector<384x128xf32> to vector<16x128xf32>
    %98 = arith.maximumf %96, %97 : vector<16x128xf32>
    %99 = vector.extract_strided_slice %98 {offsets = [0, 0], sizes = [16, 64], strides = [1, 1]} : vector<16x128xf32> to vector<16x64xf32>
    %100 = vector.extract_strided_slice %98 {offsets = [0, 64], sizes = [16, 64], strides = [1, 1]} : vector<16x128xf32> to vector<16x64xf32>
    %101 = arith.maximumf %99, %100 : vector<16x64xf32>
    %102 = vector.extract_strided_slice %101 {offsets = [0, 0], sizes = [12, 64], strides = [1, 1]} : vector<16x64xf32> to vector<12x64xf32>
    %103 = arith.truncf %102 : vector<12x64xf32> to vector<12x64xbf16>
    %c0_55 = arith.constant 0 : index
    %c5 = arith.constant 5 : index
    %c0_56 = arith.constant 0 : index
    %c0_57 = arith.constant 0 : index
    %104 = vector.load %arg6[%c0_55, %c5, %c0_56, %c0_57] : memref<1x12x12x64xbf16, #tpu.memory_space<vmem>>, vector<1x1x12x64xbf16>
    %105 = vector.shape_cast %104 : vector<1x1x12x64xbf16> to vector<12x64xbf16>
    %106 = vector.shape_cast %103 : vector<12x64xbf16> to vector<1x1x12x64xbf16>
    tpu.vector_store %arg6[%c0_55, %c5, %c0_56, %c0_57], %106 {strides = array<i32>} : memref<1x12x12x64xbf16, #tpu.memory_space<vmem>>, vector<1x1x12x64xbf16>,
    %107 = vector.extract_strided_slice %40 {offsets = [192, 0], sizes = [16, 128], strides = [1, 1]} : vector<384x128xf32> to vector<16x128xf32>
    %108 = vector.extract_strided_slice %40 {offsets = [208, 0], sizes = [16, 128], strides = [1, 1]} : vector<384x128xf32> to vector<16x128xf32>
    %109 = arith.maximumf %107, %108 : vector<16x128xf32>
    %110 = vector.extract_strided_slice %109 {offsets = [0, 0], sizes = [16, 64], strides = [1, 1]} : vector<16x128xf32> to vector<16x64xf32>
    %111 = vector.extract_strided_slice %109 {offsets = [0, 64], sizes = [16, 64], strides = [1, 1]} : vector<16x128xf32> to vector<16x64xf32>
    %112 = arith.maximumf %110, %111 : vector<16x64xf32>
    %113 = vector.extract_strided_slice %112 {offsets = [0, 0], sizes = [12, 64], strides = [1, 1]} : vector<16x64xf32> to vector<12x64xf32>
    %114 = arith.truncf %113 : vector<12x64xf32> to vector<12x64xbf16>
    %c0_58 = arith.constant 0 : index
    %c6 = arith.constant 6 : index
    %c0_59 = arith.constant 0 : index
    %c0_60 = arith.constant 0 : index
    %115 = vector.load %arg6[%c0_58, %c6, %c0_59, %c0_60] : memref<1x12x12x64xbf16, #tpu.memory_space<vmem>>, vector<1x1x12x64xbf16>
    %116 = vector.shape_cast %115 : vector<1x1x12x64xbf16> to vector<12x64xbf16>
    %117 = vector.shape_cast %114 : vector<12x64xbf16> to vector<1x1x12x64xbf16>
    tpu.vector_store %arg6[%c0_58, %c6, %c0_59, %c0_60], %117 {strides = array<i32>} : memref<1x12x12x64xbf16, #tpu.memory_space<vmem>>, vector<1x1x12x64xbf16>,
    %118 = vector.extract_strided_slice %40 {offsets = [224, 0], sizes = [16, 128], strides = [1, 1]} : vector<384x128xf32> to vector<16x128xf32>
    %119 = vector.extract_strided_slice %40 {offsets = [240, 0], sizes = [16, 128], strides = [1, 1]} : vector<384x128xf32> to vector<16x128xf32>
    %120 = arith.maximumf %118, %119 : vector<16x128xf32>
    %121 = vector.extract_strided_slice %120 {offsets = [0, 0], sizes = [16, 64], strides = [1, 1]} : vector<16x128xf32> to vector<16x64xf32>
    %122 = vector.extract_strided_slice %120 {offsets = [0, 64], sizes = [16, 64], strides = [1, 1]} : vector<16x128xf32> to vector<16x64xf32>
    %123 = arith.maximumf %121, %122 : vector<16x64xf32>
    %124 = vector.extract_strided_slice %123 {offsets = [0, 0], sizes = [12, 64], strides = [1, 1]} : vector<16x64xf32> to vector<12x64xf32>
    %125 = arith.truncf %124 : vector<12x64xf32> to vector<12x64xbf16>
    %c0_61 = arith.constant 0 : index
    %c7 = arith.constant 7 : index
    %c0_62 = arith.constant 0 : index
    %c0_63 = arith.constant 0 : index
    %126 = vector.load %arg6[%c0_61, %c7, %c0_62, %c0_63] : memref<1x12x12x64xbf16, #tpu.memory_space<vmem>>, vector<1x1x12x64xbf16>
    %127 = vector.shape_cast %126 : vector<1x1x12x64xbf16> to vector<12x64xbf16>
    %128 = vector.shape_cast %125 : vector<12x64xbf16> to vector<1x1x12x64xbf16>
    tpu.vector_store %arg6[%c0_61, %c7, %c0_62, %c0_63], %128 {strides = array<i32>} : memref<1x12x12x64xbf16, #tpu.memory_space<vmem>>, vector<1x1x12x64xbf16>,
    %129 = vector.extract_strided_slice %40 {offsets = [256, 0], sizes = [16, 128], strides = [1, 1]} : vector<384x128xf32> to vector<16x128xf32>
    %130 = vector.extract_strided_slice %40 {offsets = [272, 0], sizes = [16, 128], strides = [1, 1]} : vector<384x128xf32> to vector<16x128xf32>
    %131 = arith.maximumf %129, %130 : vector<16x128xf32>
    %132 = vector.extract_strided_slice %131 {offsets = [0, 0], sizes = [16, 64], strides = [1, 1]} : vector<16x128xf32> to vector<16x64xf32>
    %133 = vector.extract_strided_slice %131 {offsets = [0, 64], sizes = [16, 64], strides = [1, 1]} : vector<16x128xf32> to vector<16x64xf32>
    %134 = arith.maximumf %132, %133 : vector<16x64xf32>
    %135 = vector.extract_strided_slice %134 {offsets = [0, 0], sizes = [12, 64], strides = [1, 1]} : vector<16x64xf32> to vector<12x64xf32>
    %136 = arith.truncf %135 : vector<12x64xf32> to vector<12x64xbf16>
    %c0_64 = arith.constant 0 : index
    %c8 = arith.constant 8 : index
    %c0_65 = arith.constant 0 : index
    %c0_66 = arith.constant 0 : index
    %137 = vector.load %arg6[%c0_64, %c8, %c0_65, %c0_66] : memref<1x12x12x64xbf16, #tpu.memory_space<vmem>>, vector<1x1x12x64xbf16>
    %138 = vector.shape_cast %137 : vector<1x1x12x64xbf16> to vector<12x64xbf16>
    %139 = vector.shape_cast %136 : vector<12x64xbf16> to vector<1x1x12x64xbf16>
    tpu.vector_store %arg6[%c0_64, %c8, %c0_65, %c0_66], %139 {strides = array<i32>} : memref<1x12x12x64xbf16, #tpu.memory_space<vmem>>, vector<1x1x12x64xbf16>,
    %140 = vector.extract_strided_slice %40 {offsets = [288, 0], sizes = [16, 128], strides = [1, 1]} : vector<384x128xf32> to vector<16x128xf32>
    %141 = vector.extract_strided_slice %40 {offsets = [304, 0], sizes = [16, 128], strides = [1, 1]} : vector<384x128xf32> to vector<16x128xf32>
    %142 = arith.maximumf %140, %141 : vector<16x128xf32>
    %143 = vector.extract_strided_slice %142 {offsets = [0, 0], sizes = [16, 64], strides = [1, 1]} : vector<16x128xf32> to vector<16x64xf32>
    %144 = vector.extract_strided_slice %142 {offsets = [0, 64], sizes = [16, 64], strides = [1, 1]} : vector<16x128xf32> to vector<16x64xf32>
    %145 = arith.maximumf %143, %144 : vector<16x64xf32>
    %146 = vector.extract_strided_slice %145 {offsets = [0, 0], sizes = [12, 64], strides = [1, 1]} : vector<16x64xf32> to vector<12x64xf32>
    %147 = arith.truncf %146 : vector<12x64xf32> to vector<12x64xbf16>
    %c0_67 = arith.constant 0 : index
    %c9 = arith.constant 9 : index
    %c0_68 = arith.constant 0 : index
    %c0_69 = arith.constant 0 : index
    %148 = vector.load %arg6[%c0_67, %c9, %c0_68, %c0_69] : memref<1x12x12x64xbf16, #tpu.memory_space<vmem>>, vector<1x1x12x64xbf16>
    %149 = vector.shape_cast %148 : vector<1x1x12x64xbf16> to vector<12x64xbf16>
    %150 = vector.shape_cast %147 : vector<12x64xbf16> to vector<1x1x12x64xbf16>
    tpu.vector_store %arg6[%c0_67, %c9, %c0_68, %c0_69], %150 {strides = array<i32>} : memref<1x12x12x64xbf16, #tpu.memory_space<vmem>>, vector<1x1x12x64xbf16>,
    %151 = vector.extract_strided_slice %40 {offsets = [320, 0], sizes = [16, 128], strides = [1, 1]} : vector<384x128xf32> to vector<16x128xf32>
    %152 = vector.extract_strided_slice %40 {offsets = [336, 0], sizes = [16, 128], strides = [1, 1]} : vector<384x128xf32> to vector<16x128xf32>
    %153 = arith.maximumf %151, %152 : vector<16x128xf32>
    %154 = vector.extract_strided_slice %153 {offsets = [0, 0], sizes = [16, 64], strides = [1, 1]} : vector<16x128xf32> to vector<16x64xf32>
    %155 = vector.extract_strided_slice %153 {offsets = [0, 64], sizes = [16, 64], strides = [1, 1]} : vector<16x128xf32> to vector<16x64xf32>
    %156 = arith.maximumf %154, %155 : vector<16x64xf32>
    %157 = vector.extract_strided_slice %156 {offsets = [0, 0], sizes = [12, 64], strides = [1, 1]} : vector<16x64xf32> to vector<12x64xf32>
    %158 = arith.truncf %157 : vector<12x64xf32> to vector<12x64xbf16>
    %c0_70 = arith.constant 0 : index
    %c10 = arith.constant 10 : index
    %c0_71 = arith.constant 0 : index
    %c0_72 = arith.constant 0 : index
    %159 = vector.load %arg6[%c0_70, %c10, %c0_71, %c0_72] : memref<1x12x12x64xbf16, #tpu.memory_space<vmem>>, vector<1x1x12x64xbf16>
    %160 = vector.shape_cast %159 : vector<1x1x12x64xbf16> to vector<12x64xbf16>
    %161 = vector.shape_cast %158 : vector<12x64xbf16> to vector<1x1x12x64xbf16>
    tpu.vector_store %arg6[%c0_70, %c10, %c0_71, %c0_72], %161 {strides = array<i32>} : memref<1x12x12x64xbf16, #tpu.memory_space<vmem>>, vector<1x1x12x64xbf16>,
    %162 = vector.extract_strided_slice %40 {offsets = [352, 0], sizes = [16, 128], strides = [1, 1]} : vector<384x128xf32> to vector<16x128xf32>
    %163 = vector.extract_strided_slice %40 {offsets = [368, 0], sizes = [16, 128], strides = [1, 1]} : vector<384x128xf32> to vector<16x128xf32>
    %164 = arith.maximumf %162, %163 : vector<16x128xf32>
    %165 = vector.extract_strided_slice %164 {offsets = [0, 0], sizes = [16, 64], strides = [1, 1]} : vector<16x128xf32> to vector<16x64xf32>
    %166 = vector.extract_strided_slice %164 {offsets = [0, 64], sizes = [16, 64], strides = [1, 1]} : vector<16x128xf32> to vector<16x64xf32>
    %167 = arith.maximumf %165, %166 : vector<16x64xf32>
    %168 = vector.extract_strided_slice %167 {offsets = [0, 0], sizes = [12, 64], strides = [1, 1]} : vector<16x64xf32> to vector<12x64xf32>
    %169 = arith.truncf %168 : vector<12x64xf32> to vector<12x64xbf16>
    %c0_73 = arith.constant 0 : index
    %c11 = arith.constant 11 : index
    %c0_74 = arith.constant 0 : index
    %c0_75 = arith.constant 0 : index
    %170 = vector.load %arg6[%c0_73, %c11, %c0_74, %c0_75] : memref<1x12x12x64xbf16, #tpu.memory_space<vmem>>, vector<1x1x12x64xbf16>
    %171 = vector.shape_cast %170 : vector<1x1x12x64xbf16> to vector<12x64xbf16>
    %172 = vector.shape_cast %169 : vector<12x64xbf16> to vector<1x1x12x64xbf16>
    tpu.vector_store %arg6[%c0_73, %c11, %c0_74, %c0_75], %172 {strides = array<i32>} : memref<1x12x12x64xbf16, #tpu.memory_space<vmem>>, vector<1x1x12x64xbf16>,
    return
  }
  func.func @transform_0(%arg0: i32) -> (i32, i32, i32) {
    %c0_i32 = arith.constant 0 : i32
    %c0_i32_0 = arith.constant 0 : i32
    %c0_i32_1 = arith.constant 0 : i32
    return %arg0, %c0_i32, %c0_i32_0 : i32, i32, i32
  }
  func.func @transform_1(%arg0: i32) -> (i32, i32) {
    %c0_i32 = arith.constant 0 : i32
    %c0_i32_0 = arith.constant 0 : i32
    %c0_i32_1 = arith.constant 0 : i32
    return %c0_i32, %c0_i32_0 : i32, i32
  }
  func.func @transform_2(%arg0: i32) -> (i32, i32) {
    %c0_i32 = arith.constant 0 : i32
    %c0_i32_0 = arith.constant 0 : i32
    %c0_i32_1 = arith.constant 0 : i32
    return %c0_i32, %c0_i32_0 : i32, i32
  }
  func.func @transform_3(%arg0: i32) -> (i32, i32, i32) {
    %c0_i32 = arith.constant 0 : i32
    %c0_i32_0 = arith.constant 0 : i32
    %c0_i32_1 = arith.constant 0 : i32
    %c0_i32_2 = arith.constant 0 : i32
    return %c0_i32, %c0_i32_0, %c0_i32_1 : i32, i32, i32
  }
  func.func @transform_4(%arg0: i32) -> (i32, i32) {
    %c0_i32 = arith.constant 0 : i32
    %c0_i32_0 = arith.constant 0 : i32
    %c0_i32_1 = arith.constant 0 : i32
    return %c0_i32, %c0_i32_0 : i32, i32
  }
  func.func @transform_5(%arg0: i32) -> (i32, i32, i32, i32) {
    %c0_i32 = arith.constant 0 : i32
    %c0_i32_0 = arith.constant 0 : i32
    %c0_i32_1 = arith.constant 0 : i32
    %c0_i32_2 = arith.constant 0 : i32
    return %arg0, %c0_i32, %c0_i32_0, %c0_i32_1 : i32, i32, i32, i32
  }
}

module attributes {stable_mosaic.version = 11 : i64} {
  func.func @_fc_kernel(%arg0: i32, %arg1: i32, %arg2: memref<8x2304xbf16, #tpu.memory_space<vmem>>, %arg3: memref<2304x128xbf16, #tpu.memory_space<vmem>>, %arg4: memref<1x128xf32, #tpu.memory_space<vmem>>, %arg5: memref<128x10xf32, #tpu.memory_space<vmem>>, %arg6: memref<1x10xf32, #tpu.memory_space<vmem>>, %arg7: memref<8x10xf32, #tpu.memory_space<vmem>>, %arg8: memref<8x128xf32, #tpu.memory_space<vmem>>) attributes {dimension_semantics = [#tpu.dimension_semantics<parallel>, #tpu.dimension_semantics<arbitrary>], iteration_bounds = array<i64: 1, 4>, scalar_prefetch = 0 : i64, scratch_operands = 1 : i64, tpu.core_type = #tpu.core_type<tc>, window_params = [{transform_indices = @transform_0, window_bounds = array<i64: 8, 2304>}, {transform_indices = @transform_1, window_bounds = array<i64: 2304, 128>}, {pipeline_mode = #tpu.pipeline_mode<synchronous>, transform_indices = @transform_2, window_bounds = array<i64: 1, 128>}, {pipeline_mode = #tpu.pipeline_mode<synchronous>, transform_indices = @transform_3, window_bounds = array<i64: 128, 10>}, {pipeline_mode = #tpu.pipeline_mode<synchronous>, transform_indices = @transform_4, window_bounds = array<i64: 1, 10>}, {transform_indices = @transform_5, window_bounds = array<i64: 8, 10>}]} {
    %c0_i32 = arith.constant 0 : i32
    %0 = arith.cmpi eq, %arg1, %c0_i32 : i32
    %1 = arith.extui %0 : i1 to i32
    %c0_i32_0 = arith.constant 0 : i32
    %2 = arith.cmpi ne, %1, %c0_i32_0 : i32
    scf.if %2 {
      %cst_9 = arith.constant 0.000000e+00 : f32
      %12 = vector.broadcast %cst_9 : f32 to vector<8x128xf32>
      %c0_10 = arith.constant 0 : index
      %c0_11 = arith.constant 0 : index
      %13 = vector.load %arg8[%c0_10, %c0_11] : memref<8x128xf32, #tpu.memory_space<vmem>>, vector<8x128xf32>
      tpu.vector_store %arg8[%c0_10, %c0_11], %12 {strides = array<i32>} : memref<8x128xf32, #tpu.memory_space<vmem>>, vector<8x128xf32>,
    } else {
    }
    %c0 = arith.constant 0 : index
    %c0_1 = arith.constant 0 : index
    %3 = vector.load %arg8[%c0, %c0_1] : memref<8x128xf32, #tpu.memory_space<vmem>>, vector<8x128xf32>
    %c0_2 = arith.constant 0 : index
    %c0_3 = arith.constant 0 : index
    %4 = vector.load %arg2[%c0_2, %c0_3] : memref<8x2304xbf16, #tpu.memory_space<vmem>>, vector<8x2304xbf16>
    %c0_4 = arith.constant 0 : index
    %c0_5 = arith.constant 0 : index
    %5 = vector.load %arg3[%c0_4, %c0_5] : memref<2304x128xbf16, #tpu.memory_space<vmem>>, vector<2304x128xbf16>
    %cst = arith.constant dense<0.000000e+00> : vector<8x128xf32>
    %6 = tpu.matmul %4, %5, %cst {dimension_numbers = #tpu.dot_dimension_numbers<[1], [0], [0], [1], [0, 0, 1, 1], [], []>} : vector<8x2304xbf16>, vector<2304x128xbf16>, vector<8x128xf32> -> vector<8x128xf32>
    %7 = arith.addf %3, %6 : vector<8x128xf32>
    %c0_6 = arith.constant 0 : index
    %c0_7 = arith.constant 0 : index
    %8 = vector.load %arg8[%c0_6, %c0_7] : memref<8x128xf32, #tpu.memory_space<vmem>>, vector<8x128xf32>
    tpu.vector_store %arg8[%c0_6, %c0_7], %7 {strides = array<i32>} : memref<8x128xf32, #tpu.memory_space<vmem>>, vector<8x128xf32>,
    %c3_i32 = arith.constant 3 : i32
    %9 = arith.cmpi eq, %arg1, %c3_i32 : i32
    %10 = arith.extui %9 : i1 to i32
    %c0_i32_8 = arith.constant 0 : i32
    %11 = arith.cmpi ne, %10, %c0_i32_8 : i32
    scf.if %11 {
      %c0_9 = arith.constant 0 : index
      %c0_10 = arith.constant 0 : index
      %12 = vector.load %arg8[%c0_9, %c0_10] : memref<8x128xf32, #tpu.memory_space<vmem>>, vector<8x128xf32>
      %c0_11 = arith.constant 0 : index
      %c0_12 = arith.constant 0 : index
      %13 = vector.load %arg4[%c0_11, %c0_12] : memref<1x128xf32, #tpu.memory_space<vmem>>, vector<1x128xf32>
      %14 = vector.broadcast %13 : vector<1x128xf32> to vector<8x128xf32>
      %15 = arith.addf %12, %14 : vector<8x128xf32>
      %cst_13 = arith.constant 0.000000e+00 : f32
      %16 = vector.broadcast %cst_13 : f32 to vector<8x128xf32>
      %17 = arith.maximumf %15, %16 : vector<8x128xf32>
      %c0_14 = arith.constant 0 : index
      %c0_15 = arith.constant 0 : index
      %18 = vector.load %arg5[%c0_14, %c0_15] : memref<128x10xf32, #tpu.memory_space<vmem>>, vector<128x10xf32>
      %cst_16 = arith.constant dense<0.000000e+00> : vector<8x10xf32>
      %19 = tpu.matmul %17, %18, %cst_16 {dimension_numbers = #tpu.dot_dimension_numbers<[1], [0], [0], [1], [0, 0, 1, 1], [], []>} : vector<8x128xf32>, vector<128x10xf32>, vector<8x10xf32> -> vector<8x10xf32>
      %c0_17 = arith.constant 0 : index
      %c0_18 = arith.constant 0 : index
      %20 = vector.load %arg6[%c0_17, %c0_18] : memref<1x10xf32, #tpu.memory_space<vmem>>, vector<1x10xf32>
      %21 = vector.broadcast %20 : vector<1x10xf32> to vector<8x10xf32>
      %22 = arith.addf %19, %21 : vector<8x10xf32>
      %cst_19 = arith.constant dense<0xFF800000> : vector<8xf32>
      %23 = vector.multi_reduction <maximumf>, %22, %cst_19 [1] : vector<8x10xf32> to vector<8xf32>
      %24 = vector.shape_cast %23 : vector<8xf32> to vector<8x1xf32>
      %25 = vector.broadcast %24 : vector<8x1xf32> to vector<8x10xf32>
      %26 = arith.subf %22, %25 : vector<8x10xf32>
      %27 = math.exp %26 : vector<8x10xf32>
      %cst_20 = arith.constant dense<0.000000e+00> : vector<8xf32>
      %28 = vector.multi_reduction <add>, %27, %cst_20 [1] : vector<8x10xf32> to vector<8xf32>
      %29 = vector.shape_cast %28 : vector<8xf32> to vector<8x1xf32>
      %30 = math.log %29 : vector<8x1xf32>
      %31 = arith.addf %30, %24 : vector<8x1xf32>
      %32 = vector.broadcast %31 : vector<8x1xf32> to vector<8x10xf32>
      %33 = arith.subf %22, %32 : vector<8x10xf32>
      %c0_21 = arith.constant 0 : index
      %c0_22 = arith.constant 0 : index
      %34 = vector.load %arg7[%c0_21, %c0_22] : memref<8x10xf32, #tpu.memory_space<vmem>>, vector<8x10xf32>
      tpu.vector_store %arg7[%c0_21, %c0_22], %33 {strides = array<i32>} : memref<8x10xf32, #tpu.memory_space<vmem>>, vector<8x10xf32>,
    } else {
    }
    return
  }
  func.func @transform_0(%arg0: i32, %arg1: i32) -> (i32, i32) {
    %c0_i32 = arith.constant 0 : i32
    return %arg0, %arg1 : i32, i32
  }
  func.func @transform_1(%arg0: i32, %arg1: i32) -> (i32, i32) {
    %c0_i32 = arith.constant 0 : i32
    %c0_i32_0 = arith.constant 0 : i32
    return %arg1, %c0_i32 : i32, i32
  }
  func.func @transform_2(%arg0: i32, %arg1: i32) -> (i32, i32) {
    %c0_i32 = arith.constant 0 : i32
    %c0_i32_0 = arith.constant 0 : i32
    %c0_i32_1 = arith.constant 0 : i32
    return %c0_i32, %c0_i32_0 : i32, i32
  }
  func.func @transform_3(%arg0: i32, %arg1: i32) -> (i32, i32) {
    %c0_i32 = arith.constant 0 : i32
    %c0_i32_0 = arith.constant 0 : i32
    %c0_i32_1 = arith.constant 0 : i32
    return %c0_i32, %c0_i32_0 : i32, i32
  }
  func.func @transform_4(%arg0: i32, %arg1: i32) -> (i32, i32) {
    %c0_i32 = arith.constant 0 : i32
    %c0_i32_0 = arith.constant 0 : i32
    %c0_i32_1 = arith.constant 0 : i32
    return %c0_i32, %c0_i32_0 : i32, i32
  }
  func.func @transform_5(%arg0: i32, %arg1: i32) -> (i32, i32) {
    %c0_i32 = arith.constant 0 : i32
    %c0_i32_0 = arith.constant 0 : i32
    return %arg0, %c0_i32 : i32, i32
  }
}

</mosaic_0001>

<llo_original>
// kernel: net_forward.3
$region0: #{net_forward.3}
  #allocation0 [shape = 'u32[]', space=smem, size = 0x4, offset = 0x4, fixed_abs, tag = 'smem constant byte address 0x4 - core index']
  #allocation1 [shape = 'u32[144,128]{1,0:T(1,128)}', space=vmem, size = 0x12000, scoped, tag = 'internal scratch']
  #allocation2 [shape = 'f32[8,128]{1,0:T(8,128)}', space=vmem, size = 0x1000, scoped, tag = 'scratch operand']
  %s0 = inlined_call_operand.vmem [shape: bf16[8,9216], index: 0, kind: input, shape index: {}]
  %s1 = inlined_call_operand.vmem [shape: bf16[9216,128], index: 1, kind: input, shape index: {}]
  %s2 = inlined_call_operand.vmem [shape: f32[1,128], index: 2, kind: input, shape index: {}]
  %s3 = inlined_call_operand.vmem [shape: f32[128,10], index: 3, kind: input, shape index: {}]
  %s4 = inlined_call_operand.vmem [shape: f32[1,10], index: 4, kind: input, shape index: {}]
  %s5 = inlined_call_operand.vmem [shape: f32[8,10], index: 5, kind: output, shape index: {}]
  %s6 = sld [smem:[#allocation0]]
  $region61: #{net_forward.3} parent=0
    _
  %s8 = ssub.s32 1, %s6
  %s9 = scalar_select 0, %s8, %s6
  loop: start=0, step=1, limit=6
  $region2: #{net_forward.3} parent=0 // loop_pre_header
    _
  $region3: #{net_forward.3} parent=0 // loop_header
    %s11 = sphi 0, %s15
    %p12 = scmp.ge.s32.totalorder %s11, 6
    %s18 = sphi 0, %s30
    %s19 = sphi 0, %s26
    %s20 = sphi 0, %s18
    %s21 = sphi 0, %s19
    %s22 = sphi 0, %s20
    %s23 = sphi 0, %s21
    %s35 = sphi 0, %s37
    %s38 = sphi 0, %s35
    %s39 = sphi 0, %s38
    %s55 = sphi 0, %s39
    %s61 = sphi 0, %s63
    %s64 = sphi 0, %s61
    %s65 = sphi 0, %s64
    %s81 = sphi 0, %s65
    %s85 = sphi 0, %s85
    %s87 = sphi 0, %s85
    %s88 = sphi 0, %s87
    %s102 = sphi 0, %s88
    %s106 = sphi 0, %s106
    %s108 = sphi 0, %s106
    %s109 = sphi 0, %s108
    %s123 = sphi 0, %s109
    %s127 = sphi 0, %s127
    %s129 = sphi 0, %s127
    %s130 = sphi 0, %s129
    %s144 = sphi 0, %s130
    %s150 = sphi 0, %s152
    %s153 = sphi 0, %s150
    %s154 = sphi 0, %s153
    %s170 = sphi 0, %s154
  $region4: #{net_forward.3} parent=0 // loop_header_branch
    %14 = sbr.rel (%p12) target = $region8
  $region5: #{net_forward.3} parent=0 // loop_body
    %s16 = ssub.s32 %s11, 1
    %s17 = ssub.s32 %s11, 2
    %s24 = sadd.s32 1, %s19
    %p25 = scmp.ge.s32.totalorder %s24, 4
    %s26 = scalar_select %p25, 0, %s24
    %s27 = sadd.s32 1, %s18
    %s28 = scalar_select %p25, %s27, %s18
    %p29 = scmp.ge.s32.totalorder %s28, 1
    %s30 = scalar_select %p29, 0, %s28
    %s31 = ssub.s32 %s18, %s30
    %s32 = ssub.s32 %s19, %s26
    %s33 = sor.u32 %s31, %s32
    %p34 = scmp.eq.s32.totalorder %s33, 0
    %s36 = sadd.s32 %s35, 1
    %s37 = scalar_select %p34, %s35, %s36
    %p40 = pneg %p34
    %p41 = scmp.eq.s32.totalorder %s11, 3
    %p42 = por %p40, %p41
    %p43 = scmp.ne.s32.totalorder %s35, %s38
    %p44 = scmp.eq.s32.totalorder %s11, 0
    %p45 = por %p43, %p44
    %p46 = scmp.ne.s32.totalorder %s35, %s38
    %p47 = scmp.eq.s32.totalorder %s16, 3
    %p48 = por %p46, %p47
    %p49 = scmp.ne.s32.totalorder %s38, %s39
    %p50 = scmp.eq.s32.totalorder %s16, 0
    %p51 = por %p49, %p50
    %p52 = scmp.ne.s32.totalorder %s38, %s39
    %p53 = scmp.eq.s32.totalorder %s17, 3
    %p54 = por %p52, %p53
    %p56 = scmp.ne.s32.totalorder %s39, %s55
    %p57 = scmp.eq.s32.totalorder %s17, 0
    %p58 = por %p56, %p57
    %s59 = ssub.s32 %s19, %s26
    %p60 = scmp.eq.s32.totalorder %s59, 0
    %s62 = sadd.s32 %s61, 1
    %s63 = scalar_select %p60, %s61, %s62
    %p66 = pneg %p60
    %p67 = scmp.eq.s32.totalorder %s11, 3
    %p68 = por %p66, %p67
    %p69 = scmp.ne.s32.totalorder %s61, %s64
    %p70 = scmp.eq.s32.totalorder %s11, 0
    %p71 = por %p69, %p70
    %p72 = scmp.ne.s32.totalorder %s61, %s64
    %p73 = scmp.eq.s32.totalorder %s16, 3
    %p74 = por %p72, %p73
    %p75 = scmp.ne.s32.totalorder %s64, %s65
    %p76 = scmp.eq.s32.totalorder %s16, 0
    %p77 = por %p75, %p76
    %p78 = scmp.ne.s32.totalorder %s64, %s65
    %p79 = scmp.eq.s32.totalorder %s17, 3
    %p80 = por %p78, %p79
    %p82 = scmp.ne.s32.totalorder %s65, %s81
    %p83 = scmp.eq.s32.totalorder %s17, 0
    %p84 = por %p82, %p83
    %s86 = sadd.s32 %s85, 1
    %p89 = scmp.eq.s32.totalorder %s11, 3
    %p90 = scmp.ne.s32.totalorder %s85, %s87
    %p91 = scmp.eq.s32.totalorder %s11, 0
    %p92 = por %p90, %p91
    %p93 = scmp.ne.s32.totalorder %s85, %s87
    %p94 = scmp.eq.s32.totalorder %s16, 3
    %p95 = por %p93, %p94
    %p96 = scmp.ne.s32.totalorder %s87, %s88
    %p97 = scmp.eq.s32.totalorder %s16, 0
    %p98 = por %p96, %p97
    %p99 = scmp.ne.s32.totalorder %s87, %s88
    %p100 = scmp.eq.s32.totalorder %s17, 3
    %p101 = por %p99, %p100
    %p103 = scmp.ne.s32.totalorder %s88, %s102
    %p104 = scmp.eq.s32.totalorder %s17, 0
    %p105 = por %p103, %p104
    %s107 = sadd.s32 %s106, 1
    %p110 = scmp.eq.s32.totalorder %s11, 3
    %p111 = scmp.ne.s32.totalorder %s106, %s108
    %p112 = scmp.eq.s32.totalorder %s11, 0
    %p113 = por %p111, %p112
    %p114 = scmp.ne.s32.totalorder %s106, %s108
    %p115 = scmp.eq.s32.totalorder %s16, 3
    %p116 = por %p114, %p115
    %p117 = scmp.ne.s32.totalorder %s108, %s109
    %p118 = scmp.eq.s32.totalorder %s16, 0
    %p119 = por %p117, %p118
    %p120 = scmp.ne.s32.totalorder %s108, %s109
    %p121 = scmp.eq.s32.totalorder %s17, 3
    %p122 = por %p120, %p121
    %p124 = scmp.ne.s32.totalorder %s109, %s123
    %p125 = scmp.eq.s32.totalorder %s17, 0
    %p126 = por %p124, %p125
    %s128 = sadd.s32 %s127, 1
    %p131 = scmp.eq.s32.totalorder %s11, 3
    %p132 = scmp.ne.s32.totalorder %s127, %s129
    %p133 = scmp.eq.s32.totalorder %s11, 0
    %p134 = por %p132, %p133
    %p135 = scmp.ne.s32.totalorder %s127, %s129
    %p136 = scmp.eq.s32.totalorder %s16, 3
    %p137 = por %p135, %p136
    %p138 = scmp.ne.s32.totalorder %s129, %s130
    %p139 = scmp.eq.s32.totalorder %s16, 0
    %p140 = por %p138, %p139
    %p141 = scmp.ne.s32.totalorder %s129, %s130
    %p142 = scmp.eq.s32.totalorder %s17, 3
    %p143 = por %p141, %p142
    %p145 = scmp.ne.s32.totalorder %s130, %s144
    %p146 = scmp.eq.s32.totalorder %s17, 0
    %p147 = por %p145, %p146
    %s148 = ssub.s32 %s18, %s30
    %p149 = scmp.eq.s32.totalorder %s148, 0
    %s151 = sadd.s32 %s150, 1
    %s152 = scalar_select %p149, %s150, %s151
    %p155 = pneg %p149
    %p156 = scmp.eq.s32.totalorder %s11, 3
    %p157 = por %p155, %p156
    %p158 = scmp.ne.s32.totalorder %s150, %s153
    %p159 = scmp.eq.s32.totalorder %s11, 0
    %p160 = por %p158, %p159
    %p161 = scmp.ne.s32.totalorder %s150, %s153
    %p162 = scmp.eq.s32.totalorder %s16, 3
    %p163 = por %p161, %p162
    %p164 = scmp.ne.s32.totalorder %s153, %s154
    %p165 = scmp.eq.s32.totalorder %s16, 0
    %p166 = por %p164, %p165
    %p167 = scmp.ne.s32.totalorder %s153, %s154
    %p168 = scmp.eq.s32.totalorder %s17, 3
    %p169 = por %p167, %p168
    %p171 = scmp.ne.s32.totalorder %s154, %s170
    %p172 = scmp.eq.s32.totalorder %s17, 0
    %p173 = por %p171, %p172
    %p174 = scmp.le.s32.totalorder 1, %s11
    %p175 = scmp.lt.s32.totalorder %s11, 5
    %p176 = pnand %p174, %p175
    %p177 = pneg %p176
    // Predicated region
    $region9: #{net_forward.3} parent=5 // pred_check
      _
    $region10: #{net_forward.3} parent=5 // pred_check_branch
      %179 = sbr.rel (%p176) target = $region12
    $region11: #{net_forward.3} parent=5 // pred_region
      %s180 = ssub.s32 %s11, 1
      // Predicated region
      $region13: #{net_forward.3} parent=11 // pred_check
        %p181 = pneg %p98
      $region14: #{net_forward.3} parent=11 // pred_check_branch
        %183 = sbr.rel (%p181) target = $region16
      $region15: #{net_forward.3} parent=11 // pred_region
        _
      $region16: #{net_forward.3} parent=11 // pred_fallthru
        _
      // Predicated region
      $region17: #{net_forward.3} parent=11 // pred_check
        %p184 = pneg %p119
      $region18: #{net_forward.3} parent=11 // pred_check_branch
        %186 = sbr.rel (%p184) target = $region20
      $region19: #{net_forward.3} parent=11 // pred_region
        _
      $region20: #{net_forward.3} parent=11 // pred_fallthru
        _
      // Predicated region
      $region21: #{net_forward.3} parent=11 // pred_check
        %p187 = pneg %p140
      $region22: #{net_forward.3} parent=11 // pred_check_branch
        %189 = sbr.rel (%p187) target = $region24
      $region23: #{net_forward.3} parent=11 // pred_region
        _
      $region24: #{net_forward.3} parent=11 // pred_fallthru
        _
    $region12: #{net_forward.3} parent=5 // pred_fallthru
      _
    %p190 = scmp.lt.s32.totalorder %s11, 4
    // Predicated region
    $region25: #{net_forward.3} parent=5 // pred_check
      %p191 = pneg %p190
    $region26: #{net_forward.3} parent=5 // pred_check_branch
      %193 = sbr.rel (%p191) target = $region28
    $region27: #{net_forward.3} parent=5 // pred_region
      // Predicated region
      $region29: #{net_forward.3} parent=27 // pred_check
        %p194 = pneg %p45
      $region30: #{net_forward.3} parent=27 // pred_check_branch
        %196 = sbr.rel (%p194) target = $region32
      $region31: #{net_forward.3} parent=27 // pred_region
        %s197 = smul.u32 18, %s19
        %p198 = scmp.lt.s32.totalorder %s18, 0
        %s199 = scalar_select %p198, %s18, 0
        %p200 = scmp.lt.s32.totalorder %s197, 71
        %s201 = scalar_select %p200, %s197, 71
        %s202 = smul.addr %s199, 72
        %s203 = sadd.s32 %s201, %s202
        %s204 = smul.addr %s203, 4
        %s205 = scalar_lea.vmem %s0, %s204
        %s206 = smul.u32 18, %s19
      $region32: #{net_forward.3} parent=27 // pred_fallthru
        _
      // Predicated region
      $region33: #{net_forward.3} parent=27 // pred_check
        %p207 = pneg %p71
      $region34: #{net_forward.3} parent=27 // pred_check_branch
        %209 = sbr.rel (%p207) target = $region36
      $region35: #{net_forward.3} parent=27 // pred_region
        %s210 = smul.u32 288, %s19
        %p211 = scmp.lt.s32.totalorder %s210, 1151
        %s212 = scalar_select %p211, %s210, 1151
        %s213 = smul.addr %s212, 4
        %s214 = scalar_lea.vmem %s1, %s213
        %s215 = smul.u32 288, %s19
      $region36: #{net_forward.3} parent=27 // pred_fallthru
        _
    $region28: #{net_forward.3} parent=5 // pred_fallthru
      _
    %p216 = scmp.le.s32.totalorder 1, %s11
    %p217 = scmp.lt.s32.totalorder %s11, 5
    %p218 = pnand %p216, %p217
    %p219 = pneg %p218
    // Predicated region
    $region37: #{net_forward.3} parent=5 // pred_check
      _
    $region38: #{net_forward.3} parent=5 // pred_check_branch
      %221 = sbr.rel (%p218) target = $region40
    $region39: #{net_forward.3} parent=5 // pred_region
      %s222 = ssub.s32 %s11, 1
      %s223 = smul.u32 18, %s21
      %p224 = scmp.lt.s32.totalorder %s20, 0
      %s225 = scalar_select %p224, %s20, 0
      %p226 = scmp.lt.s32.totalorder %s223, 71
      %s227 = scalar_select %p226, %s223, 71
      %s228 = smul.addr %s225, 72
      %s229 = sadd.s32 %s227, %s228
      %s230 = smul.addr %s229, 4
      %s231 = scalar_lea.vmem %s0, %s230
      %p232 = pneg %p51
      %p233 = pneg %p48
      %s234 = smul.u32 288, %s21
      %p235 = scmp.lt.s32.totalorder %s234, 1151
      %s236 = scalar_select %p235, %s234, 1151
      %s237 = smul.addr %s236, 4
      %s238 = scalar_lea.vmem %s1, %s237
      %p239 = pneg %p77
      %p240 = pneg %p74
      %p241 = pneg %p98
      %p242 = pneg %p95
      %p243 = pneg %p119
      %p244 = pneg %p116
      %p245 = pneg %p140
      %p246 = pneg %p137
      %p247 = pneg %p166
      %p248 = pneg %p163
      %p249 = scmp.lt.s32.totalorder %s20, 0
      %s250 = scalar_select %p249, %s20, 0
      %s251 = smul.addr %s250, 8
      %s252 = scalar_lea.vmem %s5, %s251
      %s253 = smul.u32 18, %s21
      %p254 = scmp.lt.s32.totalorder %s20, 0
      %s255 = scalar_select %p254, %s20, 0
      %p256 = scmp.lt.s32.totalorder %s253, 71
      %s257 = scalar_select %p256, %s253, 71
      %s258 = smul.addr %s255, 72
      %s259 = sadd.s32 %s257, %s258
      %s260 = smul.addr %s259, 4
      %s261 = scalar_lea.vmem %s0, %s260
      %s262 = smul.u32 18, %s21
      %s263 = smul.u32 288, %s21
      %p264 = scmp.lt.s32.totalorder %s263, 1151
      %s265 = scalar_select %p264, %s263, 1151
      %s266 = smul.addr %s265, 4
      %s267 = scalar_lea.vmem %s1, %s266
      %s268 = smul.u32 288, %s21
      %p269 = scmp.lt.s32.totalorder %s20, 0
      %s270 = scalar_select %p269, %s20, 0
      %s271 = smul.addr %s270, 8
      %s272 = scalar_lea.vmem %s5, %s271
      %p274 = scmp.eq.s32.totalorder %s21, 0
      // Predicated region
      $region41: #{net_forward.3} parent=39 // pred_check
        %p275 = pneg %p274
      $region42: #{net_forward.3} parent=39 // pred_check_branch
        %277 = sbr.rel (%p275) target = $region44
      $region43: #{net_forward.3} parent=39 // pred_region
        %278 = vst [vmem:[#allocation2] sm:$0xff] 0.0
      $region44: #{net_forward.3} parent=39 // pred_fallthru
        _
      %v279 = vld [vmem:[#allocation2] sm:$0xff]
      %v280 = vld [vmem:[%s261] sm:$0xff]
      %v281 = vld [vmem:[%s261 + $0x8] sm:$0xff]
      %v282 = vld [vmem:[%s261 + $0x10] sm:$0xff]
      %v283 = vld [vmem:[%s261 + $0x18] sm:$0xff]
      %v284 = vld [vmem:[%s261 + $0x20] sm:$0xff]
      %v285 = vld [vmem:[%s261 + $0x28] sm:$0xff]
      %v286 = vld [vmem:[%s261 + $0x30] sm:$0xff]
      %v287 = vld [vmem:[%s261 + $0x38] sm:$0xff]
      %v288 = vld [vmem:[%s261 + $0x40] sm:$0xff]
      %v289 = vld [vmem:[%s267] sm:$0xf]
      %v290 = vld [vmem:[%s267 + $0x4] sm:$0xf]
      %v291 = vld [vmem:[%s267 + $0x8] sm:$0xf]
      %v292 = vld [vmem:[%s267 + $0xc] sm:$0xf]
      %v293 = vld [vmem:[%s267 + $0x10] sm:$0xf]
      %v294 = vld [vmem:[%s267 + $0x14] sm:$0xf]
      %v295 = vld [vmem:[%s267 + $0x18] sm:$0xf]
      %v296 = vld [vmem:[%s267 + $0x1c] sm:$0xf]
      %v297 = vld [vmem:[%s267 + $0x20] sm:$0xf]
      %v298 = vld [vmem:[%s267 + $0x24] sm:$0xf]
      %v299 = vld [vmem:[%s267 + $0x28] sm:$0xf]
      %v300 = vld [vmem:[%s267 + $0x2c] sm:$0xf]
      %v301 = vld [vmem:[%s267 + $0x30] sm:$0xf]
      %v302 = vld [vmem:[%s267 + $0x34] sm:$0xf]
      %v303 = vld [vmem:[%s267 + $0x38] sm:$0xf]
      %v304 = vld [vmem:[%s267 + $0x3c] sm:$0xf]
      %v305 = vld [vmem:[%s267 + $0x40] sm:$0xf]
      %v306 = vld [vmem:[%s267 + $0x44] sm:$0xf]
      %v307 = vld [vmem:[%s267 + $0x48] sm:$0xf]
      %v308 = vld [vmem:[%s267 + $0x4c] sm:$0xf]
      %v309 = vld [vmem:[%s267 + $0x50] sm:$0xf]
      %v310 = vld [vmem:[%s267 + $0x54] sm:$0xf]
      %v311 = vld [vmem:[%s267 + $0x58] sm:$0xf]
      %v312 = vld [vmem:[%s267 + $0x5c] sm:$0xf]
      %v313 = vld [vmem:[%s267 + $0x60] sm:$0xf]
      %v314 = vld [vmem:[%s267 + $0x64] sm:$0xf]
      %v315 = vld [vmem:[%s267 + $0x68] sm:$0xf]
      %v316 = vld [vmem:[%s267 + $0x6c] sm:$0xf]
      %v317 = vld [vmem:[%s267 + $0x70] sm:$0xf]
      %v318 = vld [vmem:[%s267 + $0x74] sm:$0xf]
      %v319 = vld [vmem:[%s267 + $0x78] sm:$0xf]
      %v320 = vld [vmem:[%s267 + $0x7c] sm:$0xf]
      %v321 = vld [vmem:[%s267 + $0x80] sm:$0xf]
      %v322 = vld [vmem:[%s267 + $0x84] sm:$0xf]
      %v323 = vld [vmem:[%s267 + $0x88] sm:$0xf]
      %v324 = vld [vmem:[%s267 + $0x8c] sm:$0xf]
      %v325 = vld [vmem:[%s267 + $0x90] sm:$0xf]
      %v326 = vld [vmem:[%s267 + $0x94] sm:$0xf]
      %v327 = vld [vmem:[%s267 + $0x98] sm:$0xf]
      %v328 = vld [vmem:[%s267 + $0x9c] sm:$0xf]
      %v329 = vld [vmem:[%s267 + $0xa0] sm:$0xf]
      %v330 = vld [vmem:[%s267 + $0xa4] sm:$0xf]
      %v331 = vld [vmem:[%s267 + $0xa8] sm:$0xf]
      %v332 = vld [vmem:[%s267 + $0xac] sm:$0xf]
      %v333 = vld [vmem:[%s267 + $0xb0] sm:$0xf]
      %v334 = vld [vmem:[%s267 + $0xb4] sm:$0xf]
      %v335 = vld [vmem:[%s267 + $0xb8] sm:$0xf]
      %v336 = vld [vmem:[%s267 + $0xbc] sm:$0xf]
      %v337 = vld [vmem:[%s267 + $0xc0] sm:$0xf]
      %v338 = vld [vmem:[%s267 + $0xc4] sm:$0xf]
      %v339 = vld [vmem:[%s267 + $0xc8] sm:$0xf]
      %v340 = vld [vmem:[%s267 + $0xcc] sm:$0xf]
      %v341 = vld [vmem:[%s267 + $0xd0] sm:$0xf]
      %v342 = vld [vmem:[%s267 + $0xd4] sm:$0xf]
      %v343 = vld [vmem:[%s267 + $0xd8] sm:$0xf]
      %v344 = vld [vmem:[%s267 + $0xdc] sm:$0xf]
      %v345 = vld [vmem:[%s267 + $0xe0] sm:$0xf]
      %v346 = vld [vmem:[%s267 + $0xe4] sm:$0xf]
      %v347 = vld [vmem:[%s267 + $0xe8] sm:$0xf]
      %v348 = vld [vmem:[%s267 + $0xec] sm:$0xf]
      %v349 = vld [vmem:[%s267 + $0xf0] sm:$0xf]
      %v350 = vld [vmem:[%s267 + $0xf4] sm:$0xf]
      %v351 = vld [vmem:[%s267 + $0xf8] sm:$0xf]
      %v352 = vld [vmem:[%s267 + $0xfc] sm:$0xf]
      %v353 = vld [vmem:[%s267 + $0x100] sm:$0xf]
      %v354 = vld [vmem:[%s267 + $0x104] sm:$0xf]
      %v355 = vld [vmem:[%s267 + $0x108] sm:$0xf]
      %v356 = vld [vmem:[%s267 + $0x10c] sm:$0xf]
      %v357 = vld [vmem:[%s267 + $0x110] sm:$0xf]
      %v358 = vld [vmem:[%s267 + $0x114] sm:$0xf]
      %v359 = vld [vmem:[%s267 + $0x118] sm:$0xf]
      %v360 = vld [vmem:[%s267 + $0x11c] sm:$0xf]
      %v361 = vld [vmem:[%s267 + $0x120] sm:$0xf]
      %v362 = vld [vmem:[%s267 + $0x124] sm:$0xf]
      %v363 = vld [vmem:[%s267 + $0x128] sm:$0xf]
      %v364 = vld [vmem:[%s267 + $0x12c] sm:$0xf]
      %v365 = vld [vmem:[%s267 + $0x130] sm:$0xf]
      %v366 = vld [vmem:[%s267 + $0x134] sm:$0xf]
      %v367 = vld [vmem:[%s267 + $0x138] sm:$0xf]
      %v368 = vld [vmem:[%s267 + $0x13c] sm:$0xf]
      %v369 = vld [vmem:[%s267 + $0x140] sm:$0xf]
      %v370 = vld [vmem:[%s267 + $0x144] sm:$0xf]
      %v371 = vld [vmem:[%s267 + $0x148] sm:$0xf]
      %v372 = vld [vmem:[%s267 + $0x14c] sm:$0xf]
      %v373 = vld [vmem:[%s267 + $0x150] sm:$0xf]
      %v374 = vld [vmem:[%s267 + $0x154] sm:$0xf]
      %v375 = vld [vmem:[%s267 + $0x158] sm:$0xf]
      %v376 = vld [vmem:[%s267 + $0x15c] sm:$0xf]
      %v377 = vld [vmem:[%s267 + $0x160] sm:$0xf]
      %v378 = vld [vmem:[%s267 + $0x164] sm:$0xf]
      %v379 = vld [vmem:[%s267 + $0x168] sm:$0xf]
      %v380 = vld [vmem:[%s267 + $0x16c] sm:$0xf]
      %v381 = vld [vmem:[%s267 + $0x170] sm:$0xf]
      %v382 = vld [vmem:[%s267 + $0x174] sm:$0xf]
      %v383 = vld [vmem:[%s267 + $0x178] sm:$0xf]
      %v384 = vld [vmem:[%s267 + $0x17c] sm:$0xf]
      %v385 = vld [vmem:[%s267 + $0x180] sm:$0xf]
      %v386 = vld [vmem:[%s267 + $0x184] sm:$0xf]
      %v387 = vld [vmem:[%s267 + $0x188] sm:$0xf]
      %v388 = vld [vmem:[%s267 + $0x18c] sm:$0xf]
      %v389 = vld [vmem:[%s267 + $0x190] sm:$0xf]
      %v390 = vld [vmem:[%s267 + $0x194] sm:$0xf]
      %v391 = vld [vmem:[%s267 + $0x198] sm:$0xf]
      %v392 = vld [vmem:[%s267 + $0x19c] sm:$0xf]
      %v393 = vld [vmem:[%s267 + $0x1a0] sm:$0xf]
      %v394 = vld [vmem:[%s267 + $0x1a4] sm:$0xf]
      %v395 = vld [vmem:[%s267 + $0x1a8] sm:$0xf]
      %v396 = vld [vmem:[%s267 + $0x1ac] sm:$0xf]
      %v397 = vld [vmem:[%s267 + $0x1b0] sm:$0xf]
      %v398 = vld [vmem:[%s267 + $0x1b4] sm:$0xf]
      %v399 = vld [vmem:[%s267 + $0x1b8] sm:$0xf]
      %v400 = vld [vmem:[%s267 + $0x1bc] sm:$0xf]
      %v401 = vld [vmem:[%s267 + $0x1c0] sm:$0xf]
      %v402 = vld [vmem:[%s267 + $0x1c4] sm:$0xf]
      %v403 = vld [vmem:[%s267 + $0x1c8] sm:$0xf]
      %v404 = vld [vmem:[%s267 + $0x1cc] sm:$0xf]
      %v405 = vld [vmem:[%s267 + $0x1d0] sm:$0xf]
      %v406 = vld [vmem:[%s267 + $0x1d4] sm:$0xf]
      %v407 = vld [vmem:[%s267 + $0x1d8] sm:$0xf]
      %v408 = vld [vmem:[%s267 + $0x1dc] sm:$0xf]
      %v409 = vld [vmem:[%s267 + $0x1e0] sm:$0xf]
      %v410 = vld [vmem:[%s267 + $0x1e4] sm:$0xf]
      %v411 = vld [vmem:[%s267 + $0x1e8] sm:$0xf]
      %v412 = vld [vmem:[%s267 + $0x1ec] sm:$0xf]
      %v413 = vld [vmem:[%s267 + $0x1f0] sm:$0xf]
      %v414 = vld [vmem:[%s267 + $0x1f4] sm:$0xf]
      %v415 = vld [vmem:[%s267 + $0x1f8] sm:$0xf]
      %v416 = vld [vmem:[%s267 + $0x1fc] sm:$0xf]
      %v417 = vld [vmem:[%s267 + $0x200] sm:$0xf]
      %v418 = vld [vmem:[%s267 + $0x204] sm:$0xf]
      %v419 = vld [vmem:[%s267 + $0x208] sm:$0xf]
      %v420 = vld [vmem:[%s267 + $0x20c] sm:$0xf]
      %v421 = vld [vmem:[%s267 + $0x210] sm:$0xf]
      %v422 = vld [vmem:[%s267 + $0x214] sm:$0xf]
      %v423 = vld [vmem:[%s267 + $0x218] sm:$0xf]
      %v424 = vld [vmem:[%s267 + $0x21c] sm:$0xf]
      %v425 = vld [vmem:[%s267 + $0x220] sm:$0xf]
      %v426 = vld [vmem:[%s267 + $0x224] sm:$0xf]
      %v427 = vld [vmem:[%s267 + $0x228] sm:$0xf]
      %v428 = vld [vmem:[%s267 + $0x22c] sm:$0xf]
      %v429 = vld [vmem:[%s267 + $0x230] sm:$0xf]
      %v430 = vld [vmem:[%s267 + $0x234] sm:$0xf]
      %v431 = vld [vmem:[%s267 + $0x238] sm:$0xf]
      %v432 = vld [vmem:[%s267 + $0x23c] sm:$0xf]
      %v433 = vld [vmem:[%s267 + $0x240] sm:$0xf]
      %v434 = vld [vmem:[%s267 + $0x244] sm:$0xf]
      %v435 = vld [vmem:[%s267 + $0x248] sm:$0xf]
      %v436 = vld [vmem:[%s267 + $0x24c] sm:$0xf]
      %v437 = vld [vmem:[%s267 + $0x250] sm:$0xf]
      %v438 = vld [vmem:[%s267 + $0x254] sm:$0xf]
      %v439 = vld [vmem:[%s267 + $0x258] sm:$0xf]
      %v440 = vld [vmem:[%s267 + $0x25c] sm:$0xf]
      %v441 = vld [vmem:[%s267 + $0x260] sm:$0xf]
      %v442 = vld [vmem:[%s267 + $0x264] sm:$0xf]
      %v443 = vld [vmem:[%s267 + $0x268] sm:$0xf]
      %v444 = vld [vmem:[%s267 + $0x26c] sm:$0xf]
      %v445 = vld [vmem:[%s267 + $0x270] sm:$0xf]
      %v446 = vld [vmem:[%s267 + $0x274] sm:$0xf]
      %v447 = vld [vmem:[%s267 + $0x278] sm:$0xf]
      %v448 = vld [vmem:[%s267 + $0x27c] sm:$0xf]
      %v449 = vld [vmem:[%s267 + $0x280] sm:$0xf]
      %v450 = vld [vmem:[%s267 + $0x284] sm:$0xf]
      %v451 = vld [vmem:[%s267 + $0x288] sm:$0xf]
      %v452 = vld [vmem:[%s267 + $0x28c] sm:$0xf]
      %v453 = vld [vmem:[%s267 + $0x290] sm:$0xf]
      %v454 = vld [vmem:[%s267 + $0x294] sm:$0xf]
      %v455 = vld [vmem:[%s267 + $0x298] sm:$0xf]
      %v456 = vld [vmem:[%s267 + $0x29c] sm:$0xf]
      %v457 = vld [vmem:[%s267 + $0x2a0] sm:$0xf]
      %v458 = vld [vmem:[%s267 + $0x2a4] sm:$0xf]
      %v459 = vld [vmem:[%s267 + $0x2a8] sm:$0xf]
      %v460 = vld [vmem:[%s267 + $0x2ac] sm:$0xf]
      %v461 = vld [vmem:[%s267 + $0x2b0] sm:$0xf]
      %v462 = vld [vmem:[%s267 + $0x2b4] sm:$0xf]
      %v463 = vld [vmem:[%s267 + $0x2b8] sm:$0xf]
      %v464 = vld [vmem:[%s267 + $0x2bc] sm:$0xf]
      %v465 = vld [vmem:[%s267 + $0x2c0] sm:$0xf]
      %v466 = vld [vmem:[%s267 + $0x2c4] sm:$0xf]
      %v467 = vld [vmem:[%s267 + $0x2c8] sm:$0xf]
      %v468 = vld [vmem:[%s267 + $0x2cc] sm:$0xf]
      %v469 = vld [vmem:[%s267 + $0x2d0] sm:$0xf]
      %v470 = vld [vmem:[%s267 + $0x2d4] sm:$0xf]
      %v471 = vld [vmem:[%s267 + $0x2d8] sm:$0xf]
      %v472 = vld [vmem:[%s267 + $0x2dc] sm:$0xf]
      %v473 = vld [vmem:[%s267 + $0x2e0] sm:$0xf]
      %v474 = vld [vmem:[%s267 + $0x2e4] sm:$0xf]
      %v475 = vld [vmem:[%s267 + $0x2e8] sm:$0xf]
      %v476 = vld [vmem:[%s267 + $0x2ec] sm:$0xf]
      %v477 = vld [vmem:[%s267 + $0x2f0] sm:$0xf]
      %v478 = vld [vmem:[%s267 + $0x2f4] sm:$0xf]
      %v479 = vld [vmem:[%s267 + $0x2f8] sm:$0xf]
      %v480 = vld [vmem:[%s267 + $0x2fc] sm:$0xf]
      %v481 = vld [vmem:[%s267 + $0x300] sm:$0xf]
      %v482 = vld [vmem:[%s267 + $0x304] sm:$0xf]
      %v483 = vld [vmem:[%s267 + $0x308] sm:$0xf]
      %v484 = vld [vmem:[%s267 + $0x30c] sm:$0xf]
      %v485 = vld [vmem:[%s267 + $0x310] sm:$0xf]
      %v486 = vld [vmem:[%s267 + $0x314] sm:$0xf]
      %v487 = vld [vmem:[%s267 + $0x318] sm:$0xf]
      %v488 = vld [vmem:[%s267 + $0x31c] sm:$0xf]
      %v489 = vld [vmem:[%s267 + $0x320] sm:$0xf]
      %v490 = vld [vmem:[%s267 + $0x324] sm:$0xf]
      %v491 = vld [vmem:[%s267 + $0x328] sm:$0xf]
      %v492 = vld [vmem:[%s267 + $0x32c] sm:$0xf]
      %v493 = vld [vmem:[%s267 + $0x330] sm:$0xf]
      %v494 = vld [vmem:[%s267 + $0x334] sm:$0xf]
      %v495 = vld [vmem:[%s267 + $0x338] sm:$0xf]
      %v496 = vld [vmem:[%s267 + $0x33c] sm:$0xf]
      %v497 = vld [vmem:[%s267 + $0x340] sm:$0xf]
      %v498 = vld [vmem:[%s267 + $0x344] sm:$0xf]
      %v499 = vld [vmem:[%s267 + $0x348] sm:$0xf]
      %v500 = vld [vmem:[%s267 + $0x34c] sm:$0xf]
      %v501 = vld [vmem:[%s267 + $0x350] sm:$0xf]
      %v502 = vld [vmem:[%s267 + $0x354] sm:$0xf]
      %v503 = vld [vmem:[%s267 + $0x358] sm:$0xf]
      %v504 = vld [vmem:[%s267 + $0x35c] sm:$0xf]
      %v505 = vld [vmem:[%s267 + $0x360] sm:$0xf]
      %v506 = vld [vmem:[%s267 + $0x364] sm:$0xf]
      %v507 = vld [vmem:[%s267 + $0x368] sm:$0xf]
      %v508 = vld [vmem:[%s267 + $0x36c] sm:$0xf]
      %v509 = vld [vmem:[%s267 + $0x370] sm:$0xf]
      %v510 = vld [vmem:[%s267 + $0x374] sm:$0xf]
      %v511 = vld [vmem:[%s267 + $0x378] sm:$0xf]
      %v512 = vld [vmem:[%s267 + $0x37c] sm:$0xf]
      %v513 = vld [vmem:[%s267 + $0x380] sm:$0xf]
      %v514 = vld [vmem:[%s267 + $0x384] sm:$0xf]
      %v515 = vld [vmem:[%s267 + $0x388] sm:$0xf]
      %v516 = vld [vmem:[%s267 + $0x38c] sm:$0xf]
      %v517 = vld [vmem:[%s267 + $0x390] sm:$0xf]
      %v518 = vld [vmem:[%s267 + $0x394] sm:$0xf]
      %v519 = vld [vmem:[%s267 + $0x398] sm:$0xf]
      %v520 = vld [vmem:[%s267 + $0x39c] sm:$0xf]
      %v521 = vld [vmem:[%s267 + $0x3a0] sm:$0xf]
      %v522 = vld [vmem:[%s267 + $0x3a4] sm:$0xf]
      %v523 = vld [vmem:[%s267 + $0x3a8] sm:$0xf]
      %v524 = vld [vmem:[%s267 + $0x3ac] sm:$0xf]
      %v525 = vld [vmem:[%s267 + $0x3b0] sm:$0xf]
      %v526 = vld [vmem:[%s267 + $0x3b4] sm:$0xf]
      %v527 = vld [vmem:[%s267 + $0x3b8] sm:$0xf]
      %v528 = vld [vmem:[%s267 + $0x3bc] sm:$0xf]
      %v529 = vld [vmem:[%s267 + $0x3c0] sm:$0xf]
      %v530 = vld [vmem:[%s267 + $0x3c4] sm:$0xf]
      %v531 = vld [vmem:[%s267 + $0x3c8] sm:$0xf]
      %v532 = vld [vmem:[%s267 + $0x3cc] sm:$0xf]
      %v533 = vld [vmem:[%s267 + $0x3d0] sm:$0xf]
      %v534 = vld [vmem:[%s267 + $0x3d4] sm:$0xf]
      %v535 = vld [vmem:[%s267 + $0x3d8] sm:$0xf]
      %v536 = vld [vmem:[%s267 + $0x3dc] sm:$0xf]
      %v537 = vld [vmem:[%s267 + $0x3e0] sm:$0xf]
      %v538 = vld [vmem:[%s267 + $0x3e4] sm:$0xf]
      %v539 = vld [vmem:[%s267 + $0x3e8] sm:$0xf]
      %v540 = vld [vmem:[%s267 + $0x3ec] sm:$0xf]
      %v541 = vld [vmem:[%s267 + $0x3f0] sm:$0xf]
      %v542 = vld [vmem:[%s267 + $0x3f4] sm:$0xf]
      %v543 = vld [vmem:[%s267 + $0x3f8] sm:$0xf]
      %v544 = vld [vmem:[%s267 + $0x3fc] sm:$0xf]
      %v545 = vld [vmem:[%s267 + $0x400] sm:$0xf]
      %v546 = vld [vmem:[%s267 + $0x404] sm:$0xf]
      %v547 = vld [vmem:[%s267 + $0x408] sm:$0xf]
      %v548 = vld [vmem:[%s267 + $0x40c] sm:$0xf]
      %v549 = vld [vmem:[%s267 + $0x410] sm:$0xf]
      %v550 = vld [vmem:[%s267 + $0x414] sm:$0xf]
      %v551 = vld [vmem:[%s267 + $0x418] sm:$0xf]
      %v552 = vld [vmem:[%s267 + $0x41c] sm:$0xf]
      %v553 = vld [vmem:[%s267 + $0x420] sm:$0xf]
      %v554 = vld [vmem:[%s267 + $0x424] sm:$0xf]
      %v555 = vld [vmem:[%s267 + $0x428] sm:$0xf]
      %v556 = vld [vmem:[%s267 + $0x42c] sm:$0xf]
      %v557 = vld [vmem:[%s267 + $0x430] sm:$0xf]
      %v558 = vld [vmem:[%s267 + $0x434] sm:$0xf]
      %v559 = vld [vmem:[%s267 + $0x438] sm:$0xf]
      %v560 = vld [vmem:[%s267 + $0x43c] sm:$0xf]
      %v561 = vld [vmem:[%s267 + $0x440] sm:$0xf]
      %v562 = vld [vmem:[%s267 + $0x444] sm:$0xf]
      %v563 = vld [vmem:[%s267 + $0x448] sm:$0xf]
      %v564 = vld [vmem:[%s267 + $0x44c] sm:$0xf]
      %v565 = vld [vmem:[%s267 + $0x450] sm:$0xf]
      %v566 = vld [vmem:[%s267 + $0x454] sm:$0xf]
      %v567 = vld [vmem:[%s267 + $0x458] sm:$0xf]
      %v568 = vld [vmem:[%s267 + $0x45c] sm:$0xf]
      %v569 = vld [vmem:[%s267 + $0x460] sm:$0xf]
      %v570 = vld [vmem:[%s267 + $0x464] sm:$0xf]
      %v571 = vld [vmem:[%s267 + $0x468] sm:$0xf]
      %v572 = vld [vmem:[%s267 + $0x46c] sm:$0xf]
      %v573 = vld [vmem:[%s267 + $0x470] sm:$0xf]
      %v574 = vld [vmem:[%s267 + $0x474] sm:$0xf]
      %v575 = vld [vmem:[%s267 + $0x478] sm:$0xf]
      %v576 = vld [vmem:[%s267 + $0x47c] sm:$0xf]
      %v586 = vunpack.c.l.b16 %v280
      %v587 = vunpack.c.h.b16 %v280
      %v588 = vunpack.c.l.b16 %v281
      %v589 = vunpack.c.h.b16 %v281
      %v590 = vunpack.c.l.b16 %v282
      %v591 = vunpack.c.h.b16 %v282
      %v592 = vunpack.c.l.b16 %v283
      %v593 = vunpack.c.h.b16 %v283
      %v594 = vunpack.c.l.b16 %v284
      %v595 = vunpack.c.h.b16 %v284
      %v596 = vunpack.c.l.b16 %v285
      %v597 = vunpack.c.h.b16 %v285
      %v598 = vunpack.c.l.b16 %v286
      %v599 = vunpack.c.h.b16 %v286
      %v600 = vunpack.c.l.b16 %v287
      %v601 = vunpack.c.h.b16 %v287
      %v602 = vunpack.c.l.b16 %v288
      %v603 = vunpack.c.h.b16 %v288
      %v604 = vpack.c.b16 %v586, %v586
      %v605 = vpack.c.b16 %v587, %v587
      %v606 = vpack.c.b16 %v588, %v588
      %v607 = vpack.c.b16 %v589, %v589
      %v608 = vpack.c.b16 %v590, %v590
      %v609 = vpack.c.b16 %v591, %v591
      %v610 = vpack.c.b16 %v592, %v592
      %v611 = vpack.c.b16 %v593, %v593
      %v612 = vpack.c.b16 %v594, %v594
      %v613 = vpack.c.b16 %v595, %v595
      %v614 = vpack.c.b16 %v596, %v596
      %v615 = vpack.c.b16 %v597, %v597
      %v616 = vpack.c.b16 %v598, %v598
      %v617 = vpack.c.b16 %v599, %v599
      %v618 = vpack.c.b16 %v600, %v600
      %v619 = vpack.c.b16 %v601, %v601
      %v620 = vpack.c.b16 %v602, %v602
      %v621 = vpack.c.b16 %v603, %v603
      %v928 = vunpack.c.l.b16 %v289
      %v929 = vunpack.c.l.b16 %v290
      %v930 = vunpack.c.l.b16 %v291
      %v931 = vunpack.c.l.b16 %v292
      %v932 = vunpack.c.l.b16 %v293
      %v933 = vunpack.c.l.b16 %v294
      %v934 = vunpack.c.l.b16 %v295
      %v935 = vunpack.c.l.b16 %v296
      %v936 = vunpack.c.l.b16 %v297
      %v937 = vunpack.c.l.b16 %v298
      %v938 = vunpack.c.l.b16 %v299
      %v939 = vunpack.c.l.b16 %v300
      %v940 = vunpack.c.l.b16 %v301
      %v941 = vunpack.c.l.b16 %v302
      %v942 = vunpack.c.l.b16 %v303
      %v943 = vunpack.c.l.b16 %v304
      %v944 = vunpack.c.l.b16 %v305
      %v945 = vunpack.c.l.b16 %v306
      %v946 = vunpack.c.l.b16 %v307
      %v947 = vunpack.c.l.b16 %v308
      %v948 = vunpack.c.l.b16 %v309
      %v949 = vunpack.c.l.b16 %v310
      %v950 = vunpack.c.l.b16 %v311
      %v951 = vunpack.c.l.b16 %v312
      %v952 = vunpack.c.l.b16 %v313
      %v953 = vunpack.c.l.b16 %v314
      %v954 = vunpack.c.l.b16 %v315
      %v955 = vunpack.c.l.b16 %v316
      %v956 = vunpack.c.l.b16 %v317
      %v957 = vunpack.c.l.b16 %v318
      %v958 = vunpack.c.l.b16 %v319
      %v959 = vunpack.c.l.b16 %v320
      %v960 = vunpack.c.l.b16 %v321
      %v961 = vunpack.c.l.b16 %v322
      %v962 = vunpack.c.l.b16 %v323
      %v963 = vunpack.c.l.b16 %v324
      %v964 = vunpack.c.l.b16 %v325
      %v965 = vunpack.c.l.b16 %v326
      %v966 = vunpack.c.l.b16 %v327
      %v967 = vunpack.c.l.b16 %v328
      %v968 = vunpack.c.l.b16 %v329
      %v969 = vunpack.c.l.b16 %v330
      %v970 = vunpack.c.l.b16 %v331
      %v971 = vunpack.c.l.b16 %v332
      %v972 = vunpack.c.l.b16 %v333
      %v973 = vunpack.c.l.b16 %v334
      %v974 = vunpack.c.l.b16 %v335
      %v975 = vunpack.c.l.b16 %v336
      %v976 = vunpack.c.l.b16 %v337
      %v977 = vunpack.c.l.b16 %v338
      %v978 = vunpack.c.l.b16 %v339
      %v979 = vunpack.c.l.b16 %v340
      %v980 = vunpack.c.l.b16 %v341
      %v981 = vunpack.c.l.b16 %v342
      %v982 = vunpack.c.l.b16 %v343
      %v983 = vunpack.c.l.b16 %v344
      %v984 = vunpack.c.l.b16 %v345
      %v985 = vunpack.c.l.b16 %v346
      %v986 = vunpack.c.l.b16 %v347
      %v987 = vunpack.c.l.b16 %v348
      %v988 = vunpack.c.l.b16 %v349
      %v989 = vunpack.c.l.b16 %v350
      %v990 = vunpack.c.l.b16 %v351
      %v991 = vunpack.c.l.b16 %v352
      %v992 = vunpack.c.l.b16 %v353
      %v993 = vunpack.c.l.b16 %v354
      %v994 = vunpack.c.l.b16 %v355
      %v995 = vunpack.c.l.b16 %v356
      %v996 = vunpack.c.l.b16 %v357
      %v997 = vunpack.c.l.b16 %v358
      %v998 = vunpack.c.l.b16 %v359
      %v999 = vunpack.c.l.b16 %v360
      %v1000 = vunpack.c.l.b16 %v361
      %v1001 = vunpack.c.l.b16 %v362
      %v1002 = vunpack.c.l.b16 %v363
      %v1003 = vunpack.c.l.b16 %v364
      %v1004 = vunpack.c.l.b16 %v365
      %v1005 = vunpack.c.l.b16 %v366
      %v1006 = vunpack.c.l.b16 %v367
      %v1007 = vunpack.c.l.b16 %v368
      %v1008 = vunpack.c.l.b16 %v369
      %v1009 = vunpack.c.l.b16 %v370
      %v1010 = vunpack.c.l.b16 %v371
      %v1011 = vunpack.c.l.b16 %v372
      %v1012 = vunpack.c.l.b16 %v373
      %v1013 = vunpack.c.l.b16 %v374
      %v1014 = vunpack.c.l.b16 %v375
      %v1015 = vunpack.c.l.b16 %v376
      %v1016 = vunpack.c.l.b16 %v377
      %v1017 = vunpack.c.l.b16 %v378
      %v1018 = vunpack.c.l.b16 %v379
      %v1019 = vunpack.c.l.b16 %v380
      %v1020 = vunpack.c.l.b16 %v381
      %v1021 = vunpack.c.l.b16 %v382
      %v1022 = vunpack.c.l.b16 %v383
      %v1023 = vunpack.c.l.b16 %v384
      %v1024 = vunpack.c.l.b16 %v385
      %v1025 = vunpack.c.l.b16 %v386
      %v1026 = vunpack.c.l.b16 %v387
      %v1027 = vunpack.c.l.b16 %v388
      %v1028 = vunpack.c.l.b16 %v389
      %v1029 = vunpack.c.l.b16 %v390
      %v1030 = vunpack.c.l.b16 %v391
      %v1031 = vunpack.c.l.b16 %v392
      %v1032 = vunpack.c.l.b16 %v393
      %v1033 = vunpack.c.l.b16 %v394
      %v1034 = vunpack.c.l.b16 %v395
      %v1035 = vunpack.c.l.b16 %v396
      %v1036 = vunpack.c.l.b16 %v397
      %v1037 = vunpack.c.l.b16 %v398
      %v1038 = vunpack.c.l.b16 %v399
      %v1039 = vunpack.c.l.b16 %v400
      %v1040 = vunpack.c.l.b16 %v401
      %v1041 = vunpack.c.l.b16 %v402
      %v1042 = vunpack.c.l.b16 %v403
      %v1043 = vunpack.c.l.b16 %v404
      %v1044 = vunpack.c.l.b16 %v405
      %v1045 = vunpack.c.l.b16 %v406
      %v1046 = vunpack.c.l.b16 %v407
      %v1047 = vunpack.c.l.b16 %v408
      %v1048 = vunpack.c.l.b16 %v409
      %v1049 = vunpack.c.l.b16 %v410
      %v1050 = vunpack.c.l.b16 %v411
      %v1051 = vunpack.c.l.b16 %v412
      %v1052 = vunpack.c.l.b16 %v413
      %v1053 = vunpack.c.l.b16 %v414
      %v1054 = vunpack.c.l.b16 %v415
      %v1055 = vunpack.c.l.b16 %v416
      %v1056 = vunpack.c.l.b16 %v417
      %v1057 = vunpack.c.l.b16 %v418
      %v1058 = vunpack.c.l.b16 %v419
      %v1059 = vunpack.c.l.b16 %v420
      %v1060 = vunpack.c.l.b16 %v421
      %v1061 = vunpack.c.l.b16 %v422
      %v1062 = vunpack.c.l.b16 %v423
      %v1063 = vunpack.c.l.b16 %v424
      %v1064 = vunpack.c.l.b16 %v425
      %v1065 = vunpack.c.l.b16 %v426
      %v1066 = vunpack.c.l.b16 %v427
      %v1067 = vunpack.c.l.b16 %v428
      %v1068 = vunpack.c.l.b16 %v429
      %v1069 = vunpack.c.l.b16 %v430
      %v1070 = vunpack.c.l.b16 %v431
      %v1071 = vunpack.c.l.b16 %v432
      %v1072 = vunpack.c.l.b16 %v433
      %v1073 = vunpack.c.l.b16 %v434
      %v1074 = vunpack.c.l.b16 %v435
      %v1075 = vunpack.c.l.b16 %v436
      %v1076 = vunpack.c.l.b16 %v437
      %v1077 = vunpack.c.l.b16 %v438
      %v1078 = vunpack.c.l.b16 %v439
      %v1079 = vunpack.c.l.b16 %v440
      %v1080 = vunpack.c.l.b16 %v441
      %v1081 = vunpack.c.l.b16 %v442
      %v1082 = vunpack.c.l.b16 %v443
      %v1083 = vunpack.c.l.b16 %v444
      %v1084 = vunpack.c.l.b16 %v445
      %v1085 = vunpack.c.l.b16 %v446
      %v1086 = vunpack.c.l.b16 %v447
      %v1087 = vunpack.c.l.b16 %v448
      %v1088 = vunpack.c.l.b16 %v449
      %v1089 = vunpack.c.l.b16 %v450
      %v1090 = vunpack.c.l.b16 %v451
      %v1091 = vunpack.c.l.b16 %v452
      %v1092 = vunpack.c.l.b16 %v453
      %v1093 = vunpack.c.l.b16 %v454
      %v1094 = vunpack.c.l.b16 %v455
      %v1095 = vunpack.c.l.b16 %v456
      %v1096 = vunpack.c.l.b16 %v457
      %v1097 = vunpack.c.l.b16 %v458
      %v1098 = vunpack.c.l.b16 %v459
      %v1099 = vunpack.c.l.b16 %v460
      %v1100 = vunpack.c.l.b16 %v461
      %v1101 = vunpack.c.l.b16 %v462
      %v1102 = vunpack.c.l.b16 %v463
      %v1103 = vunpack.c.l.b16 %v464
      %v1104 = vunpack.c.l.b16 %v465
      %v1105 = vunpack.c.l.b16 %v466
      %v1106 = vunpack.c.l.b16 %v467
      %v1107 = vunpack.c.l.b16 %v468
      %v1108 = vunpack.c.l.b16 %v469
      %v1109 = vunpack.c.l.b16 %v470
      %v1110 = vunpack.c.l.b16 %v471
      %v1111 = vunpack.c.l.b16 %v472
      %v1112 = vunpack.c.l.b16 %v473
      %v1113 = vunpack.c.l.b16 %v474
      %v1114 = vunpack.c.l.b16 %v475
      %v1115 = vunpack.c.l.b16 %v476
      %v1116 = vunpack.c.l.b16 %v477
      %v1117 = vunpack.c.l.b16 %v478
      %v1118 = vunpack.c.l.b16 %v479
      %v1119 = vunpack.c.l.b16 %v480
      %v1120 = vunpack.c.l.b16 %v481
      %v1121 = vunpack.c.l.b16 %v482
      %v1122 = vunpack.c.l.b16 %v483
      %v1123 = vunpack.c.l.b16 %v484
      %v1124 = vunpack.c.l.b16 %v485
      %v1125 = vunpack.c.l.b16 %v486
      %v1126 = vunpack.c.l.b16 %v487
      %v1127 = vunpack.c.l.b16 %v488
      %v1128 = vunpack.c.l.b16 %v489
      %v1129 = vunpack.c.l.b16 %v490
      %v1130 = vunpack.c.l.b16 %v491
      %v1131 = vunpack.c.l.b16 %v492
      %v1132 = vunpack.c.l.b16 %v493
      %v1133 = vunpack.c.l.b16 %v494
      %v1134 = vunpack.c.l.b16 %v495
      %v1135 = vunpack.c.l.b16 %v496
      %v1136 = vunpack.c.l.b16 %v497
      %v1137 = vunpack.c.l.b16 %v498
      %v1138 = vunpack.c.l.b16 %v499
      %v1139 = vunpack.c.l.b16 %v500
      %v1140 = vunpack.c.l.b16 %v501
      %v1141 = vunpack.c.l.b16 %v502
      %v1142 = vunpack.c.l.b16 %v503
      %v1143 = vunpack.c.l.b16 %v504
      %v1144 = vunpack.c.l.b16 %v505
      %v1145 = vunpack.c.l.b16 %v506
      %v1146 = vunpack.c.l.b16 %v507
      %v1147 = vunpack.c.l.b16 %v508
      %v1148 = vunpack.c.l.b16 %v509
      %v1149 = vunpack.c.l.b16 %v510
      %v1150 = vunpack.c.l.b16 %v511
      %v1151 = vunpack.c.l.b16 %v512
      %v1152 = vunpack.c.l.b16 %v513
      %v1153 = vunpack.c.l.b16 %v514
      %v1154 = vunpack.c.l.b16 %v515
      %v1155 = vunpack.c.l.b16 %v516
      %v1156 = vunpack.c.l.b16 %v517
      %v1157 = vunpack.c.l.b16 %v518
      %v1158 = vunpack.c.l.b16 %v519
      %v1159 = vunpack.c.l.b16 %v520
      %v1160 = vunpack.c.l.b16 %v521
      %v1161 = vunpack.c.l.b16 %v522
      %v1162 = vunpack.c.l.b16 %v523
      %v1163 = vunpack.c.l.b16 %v524
      %v1164 = vunpack.c.l.b16 %v525
      %v1165 = vunpack.c.l.b16 %v526
      %v1166 = vunpack.c.l.b16 %v527
      %v1167 = vunpack.c.l.b16 %v528
      %v1168 = vunpack.c.l.b16 %v529
      %v1169 = vunpack.c.l.b16 %v530
      %v1170 = vunpack.c.l.b16 %v531
      %v1171 = vunpack.c.l.b16 %v532
      %v1172 = vunpack.c.l.b16 %v533
      %v1173 = vunpack.c.l.b16 %v534
      %v1174 = vunpack.c.l.b16 %v535
      %v1175 = vunpack.c.l.b16 %v536
      %v1176 = vunpack.c.l.b16 %v537
      %v1177 = vunpack.c.l.b16 %v538
      %v1178 = vunpack.c.l.b16 %v539
      %v1179 = vunpack.c.l.b16 %v540
      %v1180 = vunpack.c.l.b16 %v541
      %v1181 = vunpack.c.l.b16 %v542
      %v1182 = vunpack.c.l.b16 %v543
      %v1183 = vunpack.c.l.b16 %v544
      %v1184 = vunpack.c.l.b16 %v545
      %v1185 = vunpack.c.l.b16 %v546
      %v1186 = vunpack.c.l.b16 %v547
      %v1187 = vunpack.c.l.b16 %v548
      %v1188 = vunpack.c.l.b16 %v549
      %v1189 = vunpack.c.l.b16 %v550
      %v1190 = vunpack.c.l.b16 %v551
      %v1191 = vunpack.c.l.b16 %v552
      %v1192 = vunpack.c.l.b16 %v553
      %v1193 = vunpack.c.l.b16 %v554
      %v1194 = vunpack.c.l.b16 %v555
      %v1195 = vunpack.c.l.b16 %v556
      %v1196 = vunpack.c.l.b16 %v557
      %v1197 = vunpack.c.l.b16 %v558
      %v1198 = vunpack.c.l.b16 %v559
      %v1199 = vunpack.c.l.b16 %v560
      %v1200 = vunpack.c.l.b16 %v561
      %v1201 = vunpack.c.l.b16 %v562
      %v1202 = vunpack.c.l.b16 %v563
      %v1203 = vunpack.c.l.b16 %v564
      %v1204 = vunpack.c.l.b16 %v565
      %v1205 = vunpack.c.l.b16 %v566
      %v1206 = vunpack.c.l.b16 %v567
      %v1207 = vunpack.c.l.b16 %v568
      %v1208 = vunpack.c.l.b16 %v569
      %v1209 = vunpack.c.l.b16 %v570
      %v1210 = vunpack.c.l.b16 %v571
      %v1211 = vunpack.c.l.b16 %v572
      %v1212 = vunpack.c.l.b16 %v573
      %v1213 = vunpack.c.l.b16 %v574
      %v1214 = vunpack.c.l.b16 %v575
      %v1215 = vunpack.c.l.b16 %v576
      %v1216 = vpack.c.b16 %v929, %v928
      %v1217 = vpack.c.b16 %v931, %v930
      %v1218 = vpack.c.b16 %v933, %v932
      %v1219 = vpack.c.b16 %v935, %v934
      %v1220 = vpack.c.b16 %v937, %v936
      %v1221 = vpack.c.b16 %v939, %v938
      %v1222 = vpack.c.b16 %v941, %v940
      %v1223 = vpack.c.b16 %v943, %v942
      %v1224 = vpack.c.b16 %v945, %v944
      %v1225 = vpack.c.b16 %v947, %v946
      %v1226 = vpack.c.b16 %v949, %v948
      %v1227 = vpack.c.b16 %v951, %v950
      %v1228 = vpack.c.b16 %v953, %v952
      %v1229 = vpack.c.b16 %v955, %v954
      %v1230 = vpack.c.b16 %v957, %v956
      %v1231 = vpack.c.b16 %v959, %v958
      %v1232 = vpack.c.b16 %v961, %v960
      %v1233 = vpack.c.b16 %v963, %v962
      %v1234 = vpack.c.b16 %v965, %v964
      %v1235 = vpack.c.b16 %v967, %v966
      %v1236 = vpack.c.b16 %v969, %v968
      %v1237 = vpack.c.b16 %v971, %v970
      %v1238 = vpack.c.b16 %v973, %v972
      %v1239 = vpack.c.b16 %v975, %v974
      %v1240 = vpack.c.b16 %v977, %v976
      %v1241 = vpack.c.b16 %v979, %v978
      %v1242 = vpack.c.b16 %v981, %v980
      %v1243 = vpack.c.b16 %v983, %v982
      %v1244 = vpack.c.b16 %v985, %v984
      %v1245 = vpack.c.b16 %v987, %v986
      %v1246 = vpack.c.b16 %v989, %v988
      %v1247 = vpack.c.b16 %v991, %v990
      %v1248 = vpack.c.b16 %v993, %v992
      %v1249 = vpack.c.b16 %v995, %v994
      %v1250 = vpack.c.b16 %v997, %v996
      %v1251 = vpack.c.b16 %v999, %v998
      %v1252 = vpack.c.b16 %v1001, %v1000
      %v1253 = vpack.c.b16 %v1003, %v1002
      %v1254 = vpack.c.b16 %v1005, %v1004
      %v1255 = vpack.c.b16 %v1007, %v1006
      %v1256 = vpack.c.b16 %v1009, %v1008
      %v1257 = vpack.c.b16 %v1011, %v1010
      %v1258 = vpack.c.b16 %v1013, %v1012
      %v1259 = vpack.c.b16 %v1015, %v1014
      %v1260 = vpack.c.b16 %v1017, %v1016
      %v1261 = vpack.c.b16 %v1019, %v1018
      %v1262 = vpack.c.b16 %v1021, %v1020
      %v1263 = vpack.c.b16 %v1023, %v1022
      %v1264 = vpack.c.b16 %v1025, %v1024
      %v1265 = vpack.c.b16 %v1027, %v1026
      %v1266 = vpack.c.b16 %v1029, %v1028
      %v1267 = vpack.c.b16 %v1031, %v1030
      %v1268 = vpack.c.b16 %v1033, %v1032
      %v1269 = vpack.c.b16 %v1035, %v1034
      %v1270 = vpack.c.b16 %v1037, %v1036
      %v1271 = vpack.c.b16 %v1039, %v1038
      %v1272 = vpack.c.b16 %v1041, %v1040
      %v1273 = vpack.c.b16 %v1043, %v1042
      %v1274 = vpack.c.b16 %v1045, %v1044
      %v1275 = vpack.c.b16 %v1047, %v1046
      %v1276 = vpack.c.b16 %v1049, %v1048
      %v1277 = vpack.c.b16 %v1051, %v1050
      %v1278 = vpack.c.b16 %v1053, %v1052
      %v1279 = vpack.c.b16 %v1055, %v1054
      %v1280 = vpack.c.b16 %v1057, %v1056
      %v1281 = vpack.c.b16 %v1059, %v1058
      %v1282 = vpack.c.b16 %v1061, %v1060
      %v1283 = vpack.c.b16 %v1063, %v1062
      %v1284 = vpack.c.b16 %v1065, %v1064
      %v1285 = vpack.c.b16 %v1067, %v1066
      %v1286 = vpack.c.b16 %v1069, %v1068
      %v1287 = vpack.c.b16 %v1071, %v1070
      %v1288 = vpack.c.b16 %v1073, %v1072
      %v1289 = vpack.c.b16 %v1075, %v1074
      %v1290 = vpack.c.b16 %v1077, %v1076
      %v1291 = vpack.c.b16 %v1079, %v1078
      %v1292 = vpack.c.b16 %v1081, %v1080
      %v1293 = vpack.c.b16 %v1083, %v1082
      %v1294 = vpack.c.b16 %v1085, %v1084
      %v1295 = vpack.c.b16 %v1087, %v1086
      %v1296 = vpack.c.b16 %v1089, %v1088
      %v1297 = vpack.c.b16 %v1091, %v1090
      %v1298 = vpack.c.b16 %v1093, %v1092
      %v1299 = vpack.c.b16 %v1095, %v1094
      %v1300 = vpack.c.b16 %v1097, %v1096
      %v1301 = vpack.c.b16 %v1099, %v1098
      %v1302 = vpack.c.b16 %v1101, %v1100
      %v1303 = vpack.c.b16 %v1103, %v1102
      %v1304 = vpack.c.b16 %v1105, %v1104
      %v1305 = vpack.c.b16 %v1107, %v1106
      %v1306 = vpack.c.b16 %v1109, %v1108
      %v1307 = vpack.c.b16 %v1111, %v1110
      %v1308 = vpack.c.b16 %v1113, %v1112
      %v1309 = vpack.c.b16 %v1115, %v1114
      %v1310 = vpack.c.b16 %v1117, %v1116
      %v1311 = vpack.c.b16 %v1119, %v1118
      %v1312 = vpack.c.b16 %v1121, %v1120
      %v1313 = vpack.c.b16 %v1123, %v1122
      %v1314 = vpack.c.b16 %v1125, %v1124
      %v1315 = vpack.c.b16 %v1127, %v1126
      %v1316 = vpack.c.b16 %v1129, %v1128
      %v1317 = vpack.c.b16 %v1131, %v1130
      %v1318 = vpack.c.b16 %v1133, %v1132
      %v1319 = vpack.c.b16 %v1135, %v1134
      %v1320 = vpack.c.b16 %v1137, %v1136
      %v1321 = vpack.c.b16 %v1139, %v1138
      %v1322 = vpack.c.b16 %v1141, %v1140
      %v1323 = vpack.c.b16 %v1143, %v1142
      %v1324 = vpack.c.b16 %v1145, %v1144
      %v1325 = vpack.c.b16 %v1147, %v1146
      %v1326 = vpack.c.b16 %v1149, %v1148
      %v1327 = vpack.c.b16 %v1151, %v1150
      %v1328 = vpack.c.b16 %v1153, %v1152
      %v1329 = vpack.c.b16 %v1155, %v1154
      %v1330 = vpack.c.b16 %v1157, %v1156
      %v1331 = vpack.c.b16 %v1159, %v1158
      %v1332 = vpack.c.b16 %v1161, %v1160
      %v1333 = vpack.c.b16 %v1163, %v1162
      %v1334 = vpack.c.b16 %v1165, %v1164
      %v1335 = vpack.c.b16 %v1167, %v1166
      %v1336 = vpack.c.b16 %v1169, %v1168
      %v1337 = vpack.c.b16 %v1171, %v1170
      %v1338 = vpack.c.b16 %v1173, %v1172
      %v1339 = vpack.c.b16 %v1175, %v1174
      %v1340 = vpack.c.b16 %v1177, %v1176
      %v1341 = vpack.c.b16 %v1179, %v1178
      %v1342 = vpack.c.b16 %v1181, %v1180
      %v1343 = vpack.c.b16 %v1183, %v1182
      %v1344 = vpack.c.b16 %v1185, %v1184
      %v1345 = vpack.c.b16 %v1187, %v1186
      %v1346 = vpack.c.b16 %v1189, %v1188
      %v1347 = vpack.c.b16 %v1191, %v1190
      %v1348 = vpack.c.b16 %v1193, %v1192
      %v1349 = vpack.c.b16 %v1195, %v1194
      %v1350 = vpack.c.b16 %v1197, %v1196
      %v1351 = vpack.c.b16 %v1199, %v1198
      %v1352 = vpack.c.b16 %v1201, %v1200
      %v1353 = vpack.c.b16 %v1203, %v1202
      %v1354 = vpack.c.b16 %v1205, %v1204
      %v1355 = vpack.c.b16 %v1207, %v1206
      %v1356 = vpack.c.b16 %v1209, %v1208
      %v1357 = vpack.c.b16 %v1211, %v1210
      %v1358 = vpack.c.b16 %v1213, %v1212
      %v1359 = vpack.c.b16 %v1215, %v1214
      %1504 = vmatprep.subr.bf16.mxu0 0
      %1505 = vmatpush1.bf16.msra.mxu0 %v1216
      %1506 = vmatprep.subr.bf16.mxu0 0
      %1507 = vmatpush1.bf16.msra.mxu0 %v1217
      %1508 = vmatprep.subr.bf16.mxu0 0
      %1509 = vmatpush1.bf16.msra.mxu0 %v1218
      %1510 = vmatprep.subr.bf16.mxu0 0
      %1511 = vmatpush1.bf16.msra.mxu0 %v1219
      %1512 = vmatprep.subr.bf16.mxu0 0
      %1513 = vmatpush1.bf16.msra.mxu0 %v1220
      %1514 = vmatprep.subr.bf16.mxu0 0
      %1515 = vmatpush1.bf16.msra.mxu0 %v1221
      %1516 = vmatprep.subr.bf16.mxu0 0
      %1517 = vmatpush1.bf16.msra.mxu0 %v1222
      %1518 = vmatprep.subr.bf16.mxu0 0
      %1519 = vmatpush1.bf16.msra.mxu0 %v1223
      %1520 = vmatprep.subr.bf16.mxu0 0
      %1521 = vmatpush1.bf16.msra.mxu0 %v1224
      %1522 = vmatprep.subr.bf16.mxu0 0
      %1523 = vmatpush1.bf16.msra.mxu0 %v1225
      %1524 = vmatprep.subr.bf16.mxu0 0
      %1525 = vmatpush1.bf16.msra.mxu0 %v1226
      %1526 = vmatprep.subr.bf16.mxu0 0
      %1527 = vmatpush1.bf16.msra.mxu0 %v1227
      %1528 = vmatprep.subr.bf16.mxu0 0
      %1529 = vmatpush1.bf16.msra.mxu0 %v1228
      %1530 = vmatprep.subr.bf16.mxu0 0
      %1531 = vmatpush1.bf16.msra.mxu0 %v1229
      %1532 = vmatprep.subr.bf16.mxu0 0
      %1533 = vmatpush1.bf16.msra.mxu0 %v1230
      %1534 = vmatprep.subr.bf16.mxu0 0
      %1535 = vmatpush1.bf16.msra.mxu0 %v1231
      %1536 = vmatprep.mubr.bf16.mxu0 %v605
      %1537 = vmatmul.mubr.bf16.gmra.mrb[0].mxu0 %v604
      %v1538 = vpop.f32.mrb[0].mxu0
      %v1539 = vadd.f32 0.0, %v1538
      %v1540 = vpop.f32.mrb[0].mxu0
      %v1541 = vpop.f32.mrb[0].mxu0
      %v1542 = vpop.f32.mrb[0].mxu0
      %1543 = vdwg.mxu0
      %1544 = vmatprep.subr.bf16.mxu0 0
      %1545 = vmatpush1.bf16.msra.mxu0 %v1232
      %1546 = vmatprep.subr.bf16.mxu0 0
      %1547 = vmatpush1.bf16.msra.mxu0 %v1233
      %1548 = vmatprep.subr.bf16.mxu0 0
      %1549 = vmatpush1.bf16.msra.mxu0 %v1234
      %1550 = vmatprep.subr.bf16.mxu0 0
      %1551 = vmatpush1.bf16.msra.mxu0 %v1235
      %1552 = vmatprep.subr.bf16.mxu0 0
      %1553 = vmatpush1.bf16.msra.mxu0 %v1236
      %1554 = vmatprep.subr.bf16.mxu0 0
      %1555 = vmatpush1.bf16.msra.mxu0 %v1237
      %1556 = vmatprep.subr.bf16.mxu0 0
      %1557 = vmatpush1.bf16.msra.mxu0 %v1238
      %1558 = vmatprep.subr.bf16.mxu0 0
      %1559 = vmatpush1.bf16.msra.mxu0 %v1239
      %1560 = vmatprep.subr.bf16.mxu0 0
      %1561 = vmatpush1.bf16.msra.mxu0 %v1240
      %1562 = vmatprep.subr.bf16.mxu0 0
      %1563 = vmatpush1.bf16.msra.mxu0 %v1241
      %1564 = vmatprep.subr.bf16.mxu0 0
      %1565 = vmatpush1.bf16.msra.mxu0 %v1242
      %1566 = vmatprep.subr.bf16.mxu0 0
      %1567 = vmatpush1.bf16.msra.mxu0 %v1243
      %1568 = vmatprep.subr.bf16.mxu0 0
      %1569 = vmatpush1.bf16.msra.mxu0 %v1244
      %1570 = vmatprep.subr.bf16.mxu0 0
      %1571 = vmatpush1.bf16.msra.mxu0 %v1245
      %1572 = vmatprep.subr.bf16.mxu0 0
      %1573 = vmatpush1.bf16.msra.mxu0 %v1246
      %1574 = vmatprep.subr.bf16.mxu0 0
      %1575 = vmatpush1.bf16.msra.mxu0 %v1247
      %1576 = vmatprep.mubr.bf16.mxu0 %v607
      %1577 = vmatmul.mubr.bf16.gmra.mrb[0].mxu0 %v606
      %v1578 = vpop.f32.mrb[0].mxu0
      %v1579 = vadd.f32 %v1539, %v1578
      %v1580 = vpop.f32.mrb[0].mxu0
      %v1581 = vpop.f32.mrb[0].mxu0
      %v1582 = vpop.f32.mrb[0].mxu0
      %1583 = vdwg.mxu0
      %1584 = vmatprep.subr.bf16.mxu0 0
      %1585 = vmatpush1.bf16.msra.mxu0 %v1248
      %1586 = vmatprep.subr.bf16.mxu0 0
      %1587 = vmatpush1.bf16.msra.mxu0 %v1249
      %1588 = vmatprep.subr.bf16.mxu0 0
      %1589 = vmatpush1.bf16.msra.mxu0 %v1250
      %1590 = vmatprep.subr.bf16.mxu0 0
      %1591 = vmatpush1.bf16.msra.mxu0 %v1251
      %1592 = vmatprep.subr.bf16.mxu0 0
      %1593 = vmatpush1.bf16.msra.mxu0 %v1252
      %1594 = vmatprep.subr.bf16.mxu0 0
      %1595 = vmatpush1.bf16.msra.mxu0 %v1253
      %1596 = vmatprep.subr.bf16.mxu0 0
      %1597 = vmatpush1.bf16.msra.mxu0 %v1254
      %1598 = vmatprep.subr.bf16.mxu0 0
      %1599 = vmatpush1.bf16.msra.mxu0 %v1255
      %1600 = vmatprep.subr.bf16.mxu0 0
      %1601 = vmatpush1.bf16.msra.mxu0 %v1256
      %1602 = vmatprep.subr.bf16.mxu0 0
      %1603 = vmatpush1.bf16.msra.mxu0 %v1257
      %1604 = vmatprep.subr.bf16.mxu0 0
      %1605 = vmatpush1.bf16.msra.mxu0 %v1258
      %1606 = vmatprep.subr.bf16.mxu0 0
      %1607 = vmatpush1.bf16.msra.mxu0 %v1259
      %1608 = vmatprep.subr.bf16.mxu0 0
      %1609 = vmatpush1.bf16.msra.mxu0 %v1260
      %1610 = vmatprep.subr.bf16.mxu0 0
      %1611 = vmatpush1.bf16.msra.mxu0 %v1261
      %1612 = vmatprep.subr.bf16.mxu0 0
      %1613 = vmatpush1.bf16.msra.mxu0 %v1262
      %1614 = vmatprep.subr.bf16.mxu0 0
      %1615 = vmatpush1.bf16.msra.mxu0 %v1263
      %1616 = vmatprep.mubr.bf16.mxu0 %v609
      %1617 = vmatmul.mubr.bf16.gmra.mrb[0].mxu0 %v608
      %v1618 = vpop.f32.mrb[0].mxu0
      %v1619 = vadd.f32 %v1579, %v1618
      %v1620 = vpop.f32.mrb[0].mxu0
      %v1621 = vpop.f32.mrb[0].mxu0
      %v1622 = vpop.f32.mrb[0].mxu0
      %1623 = vdwg.mxu0
      %1624 = vmatprep.subr.bf16.mxu0 0
      %1625 = vmatpush1.bf16.msra.mxu0 %v1264
      %1626 = vmatprep.subr.bf16.mxu0 0
      %1627 = vmatpush1.bf16.msra.mxu0 %v1265
      %1628 = vmatprep.subr.bf16.mxu0 0
      %1629 = vmatpush1.bf16.msra.mxu0 %v1266
      %1630 = vmatprep.subr.bf16.mxu0 0
      %1631 = vmatpush1.bf16.msra.mxu0 %v1267
      %1632 = vmatprep.subr.bf16.mxu0 0
      %1633 = vmatpush1.bf16.msra.mxu0 %v1268
      %1634 = vmatprep.subr.bf16.mxu0 0
      %1635 = vmatpush1.bf16.msra.mxu0 %v1269
      %1636 = vmatprep.subr.bf16.mxu0 0
      %1637 = vmatpush1.bf16.msra.mxu0 %v1270
      %1638 = vmatprep.subr.bf16.mxu0 0
      %1639 = vmatpush1.bf16.msra.mxu0 %v1271
      %1640 = vmatprep.subr.bf16.mxu0 0
      %1641 = vmatpush1.bf16.msra.mxu0 %v1272
      %1642 = vmatprep.subr.bf16.mxu0 0
      %1643 = vmatpush1.bf16.msra.mxu0 %v1273
      %1644 = vmatprep.subr.bf16.mxu0 0
      %1645 = vmatpush1.bf16.msra.mxu0 %v1274
      %1646 = vmatprep.subr.bf16.mxu0 0
      %1647 = vmatpush1.bf16.msra.mxu0 %v1275
      %1648 = vmatprep.subr.bf16.mxu0 0
      %1649 = vmatpush1.bf16.msra.mxu0 %v1276
      %1650 = vmatprep.subr.bf16.mxu0 0
      %1651 = vmatpush1.bf16.msra.mxu0 %v1277
      %1652 = vmatprep.subr.bf16.mxu0 0
      %1653 = vmatpush1.bf16.msra.mxu0 %v1278
      %1654 = vmatprep.subr.bf16.mxu0 0
      %1655 = vmatpush1.bf16.msra.mxu0 %v1279
      %1656 = vmatprep.mubr.bf16.mxu0 %v611
      %1657 = vmatmul.mubr.bf16.gmra.mrb[0].mxu0 %v610
      %v1658 = vpop.f32.mrb[0].mxu0
      %v1659 = vadd.f32 %v1619, %v1658
      %v1660 = vpop.f32.mrb[0].mxu0
      %v1661 = vpop.f32.mrb[0].mxu0
      %v1662 = vpop.f32.mrb[0].mxu0
      %1663 = vdwg.mxu0
      %1664 = vmatprep.subr.bf16.mxu0 0
      %1665 = vmatpush1.bf16.msra.mxu0 %v1280
      %1666 = vmatprep.subr.bf16.mxu0 0
      %1667 = vmatpush1.bf16.msra.mxu0 %v1281
      %1668 = vmatprep.subr.bf16.mxu0 0
      %1669 = vmatpush1.bf16.msra.mxu0 %v1282
      %1670 = vmatprep.subr.bf16.mxu0 0
      %1671 = vmatpush1.bf16.msra.mxu0 %v1283
      %1672 = vmatprep.subr.bf16.mxu0 0
      %1673 = vmatpush1.bf16.msra.mxu0 %v1284
      %1674 = vmatprep.subr.bf16.mxu0 0
      %1675 = vmatpush1.bf16.msra.mxu0 %v1285
      %1676 = vmatprep.subr.bf16.mxu0 0
      %1677 = vmatpush1.bf16.msra.mxu0 %v1286
      %1678 = vmatprep.subr.bf16.mxu0 0
      %1679 = vmatpush1.bf16.msra.mxu0 %v1287
      %1680 = vmatprep.subr.bf16.mxu0 0
      %1681 = vmatpush1.bf16.msra.mxu0 %v1288
      %1682 = vmatprep.subr.bf16.mxu0 0
      %1683 = vmatpush1.bf16.msra.mxu0 %v1289
      %1684 = vmatprep.subr.bf16.mxu0 0
      %1685 = vmatpush1.bf16.msra.mxu0 %v1290
      %1686 = vmatprep.subr.bf16.mxu0 0
      %1687 = vmatpush1.bf16.msra.mxu0 %v1291
      %1688 = vmatprep.subr.bf16.mxu0 0
      %1689 = vmatpush1.bf16.msra.mxu0 %v1292
      %1690 = vmatprep.subr.bf16.mxu0 0
      %1691 = vmatpush1.bf16.msra.mxu0 %v1293
      %1692 = vmatprep.subr.bf16.mxu0 0
      %1693 = vmatpush1.bf16.msra.mxu0 %v1294
      %1694 = vmatprep.subr.bf16.mxu0 0
      %1695 = vmatpush1.bf16.msra.mxu0 %v1295
      %1696 = vmatprep.mubr.bf16.mxu0 %v613
      %1697 = vmatmul.mubr.bf16.gmra.mrb[0].mxu0 %v612
      %v1698 = vpop.f32.mrb[0].mxu0
      %v1699 = vadd.f32 %v1659, %v1698
      %v1700 = vpop.f32.mrb[0].mxu0
      %v1701 = vpop.f32.mrb[0].mxu0
      %v1702 = vpop.f32.mrb[0].mxu0
      %1703 = vdwg.mxu0
      %1704 = vmatprep.subr.bf16.mxu0 0
      %1705 = vmatpush1.bf16.msra.mxu0 %v1296
      %1706 = vmatprep.subr.bf16.mxu0 0
      %1707 = vmatpush1.bf16.msra.mxu0 %v1297
      %1708 = vmatprep.subr.bf16.mxu0 0
      %1709 = vmatpush1.bf16.msra.mxu0 %v1298
      %1710 = vmatprep.subr.bf16.mxu0 0
      %1711 = vmatpush1.bf16.msra.mxu0 %v1299
      %1712 = vmatprep.subr.bf16.mxu0 0
      %1713 = vmatpush1.bf16.msra.mxu0 %v1300
      %1714 = vmatprep.subr.bf16.mxu0 0
      %1715 = vmatpush1.bf16.msra.mxu0 %v1301
      %1716 = vmatprep.subr.bf16.mxu0 0
      %1717 = vmatpush1.bf16.msra.mxu0 %v1302
      %1718 = vmatprep.subr.bf16.mxu0 0
      %1719 = vmatpush1.bf16.msra.mxu0 %v1303
      %1720 = vmatprep.subr.bf16.mxu0 0
      %1721 = vmatpush1.bf16.msra.mxu0 %v1304
      %1722 = vmatprep.subr.bf16.mxu0 0
      %1723 = vmatpush1.bf16.msra.mxu0 %v1305
      %1724 = vmatprep.subr.bf16.mxu0 0
      %1725 = vmatpush1.bf16.msra.mxu0 %v1306
      %1726 = vmatprep.subr.bf16.mxu0 0
      %1727 = vmatpush1.bf16.msra.mxu0 %v1307
      %1728 = vmatprep.subr.bf16.mxu0 0
      %1729 = vmatpush1.bf16.msra.mxu0 %v1308
      %1730 = vmatprep.subr.bf16.mxu0 0
      %1731 = vmatpush1.bf16.msra.mxu0 %v1309
      %1732 = vmatprep.subr.bf16.mxu0 0
      %1733 = vmatpush1.bf16.msra.mxu0 %v1310
      %1734 = vmatprep.subr.bf16.mxu0 0
      %1735 = vmatpush1.bf16.msra.mxu0 %v1311
      %1736 = vmatprep.mubr.bf16.mxu0 %v615
      %1737 = vmatmul.mubr.bf16.gmra.mrb[0].mxu0 %v614
      %v1738 = vpop.f32.mrb[0].mxu0
      %v1739 = vadd.f32 %v1699, %v1738
      %v1740 = vpop.f32.mrb[0].mxu0
      %v1741 = vpop.f32.mrb[0].mxu0
      %v1742 = vpop.f32.mrb[0].mxu0
      %1743 = vdwg.mxu0
      %1744 = vmatprep.subr.bf16.mxu0 0
      %1745 = vmatpush1.bf16.msra.mxu0 %v1312
      %1746 = vmatprep.subr.bf16.mxu0 0
      %1747 = vmatpush1.bf16.msra.mxu0 %v1313
      %1748 = vmatprep.subr.bf16.mxu0 0
      %1749 = vmatpush1.bf16.msra.mxu0 %v1314
      %1750 = vmatprep.subr.bf16.mxu0 0
      %1751 = vmatpush1.bf16.msra.mxu0 %v1315
      %1752 = vmatprep.subr.bf16.mxu0 0
      %1753 = vmatpush1.bf16.msra.mxu0 %v1316
      %1754 = vmatprep.subr.bf16.mxu0 0
      %1755 = vmatpush1.bf16.msra.mxu0 %v1317
      %1756 = vmatprep.subr.bf16.mxu0 0
      %1757 = vmatpush1.bf16.msra.mxu0 %v1318
      %1758 = vmatprep.subr.bf16.mxu0 0
      %1759 = vmatpush1.bf16.msra.mxu0 %v1319
      %1760 = vmatprep.subr.bf16.mxu0 0
      %1761 = vmatpush1.bf16.msra.mxu0 %v1320
      %1762 = vmatprep.subr.bf16.mxu0 0
      %1763 = vmatpush1.bf16.msra.mxu0 %v1321
      %1764 = vmatprep.subr.bf16.mxu0 0
      %1765 = vmatpush1.bf16.msra.mxu0 %v1322
      %1766 = vmatprep.subr.bf16.mxu0 0
      %1767 = vmatpush1.bf16.msra.mxu0 %v1323
      %1768 = vmatprep.subr.bf16.mxu0 0
      %1769 = vmatpush1.bf16.msra.mxu0 %v1324
      %1770 = vmatprep.subr.bf16.mxu0 0
      %1771 = vmatpush1.bf16.msra.mxu0 %v1325
      %1772 = vmatprep.subr.bf16.mxu0 0
      %1773 = vmatpush1.bf16.msra.mxu0 %v1326
      %1774 = vmatprep.subr.bf16.mxu0 0
      %1775 = vmatpush1.bf16.msra.mxu0 %v1327
      %1776 = vmatprep.mubr.bf16.mxu0 %v617
      %1777 = vmatmul.mubr.bf16.gmra.mrb[0].mxu0 %v616
      %v1778 = vpop.f32.mrb[0].mxu0
      %v1779 = vadd.f32 %v1739, %v1778
      %v1780 = vpop.f32.mrb[0].mxu0
      %v1781 = vpop.f32.mrb[0].mxu0
      %v1782 = vpop.f32.mrb[0].mxu0
      %1783 = vdwg.mxu0
      %1784 = vmatprep.subr.bf16.mxu0 0
      %1785 = vmatpush1.bf16.msra.mxu0 %v1328
      %1786 = vmatprep.subr.bf16.mxu0 0
      %1787 = vmatpush1.bf16.msra.mxu0 %v1329
      %1788 = vmatprep.subr.bf16.mxu0 0
      %1789 = vmatpush1.bf16.msra.mxu0 %v1330
      %1790 = vmatprep.subr.bf16.mxu0 0
      %1791 = vmatpush1.bf16.msra.mxu0 %v1331
      %1792 = vmatprep.subr.bf16.mxu0 0
      %1793 = vmatpush1.bf16.msra.mxu0 %v1332
      %1794 = vmatprep.subr.bf16.mxu0 0
      %1795 = vmatpush1.bf16.msra.mxu0 %v1333
      %1796 = vmatprep.subr.bf16.mxu0 0
      %1797 = vmatpush1.bf16.msra.mxu0 %v1334
      %1798 = vmatprep.subr.bf16.mxu0 0
      %1799 = vmatpush1.bf16.msra.mxu0 %v1335
      %1800 = vmatprep.subr.bf16.mxu0 0
      %1801 = vmatpush1.bf16.msra.mxu0 %v1336
      %1802 = vmatprep.subr.bf16.mxu0 0
      %1803 = vmatpush1.bf16.msra.mxu0 %v1337
      %1804 = vmatprep.subr.bf16.mxu0 0
      %1805 = vmatpush1.bf16.msra.mxu0 %v1338
      %1806 = vmatprep.subr.bf16.mxu0 0
      %1807 = vmatpush1.bf16.msra.mxu0 %v1339
      %1808 = vmatprep.subr.bf16.mxu0 0
      %1809 = vmatpush1.bf16.msra.mxu0 %v1340
      %1810 = vmatprep.subr.bf16.mxu0 0
      %1811 = vmatpush1.bf16.msra.mxu0 %v1341
      %1812 = vmatprep.subr.bf16.mxu0 0
      %1813 = vmatpush1.bf16.msra.mxu0 %v1342
      %1814 = vmatprep.subr.bf16.mxu0 0
      %1815 = vmatpush1.bf16.msra.mxu0 %v1343
      %1816 = vmatprep.mubr.bf16.mxu0 %v619
      %1817 = vmatmul.mubr.bf16.gmra.mrb[0].mxu0 %v618
      %v1818 = vpop.f32.mrb[0].mxu0
      %v1819 = vadd.f32 %v1779, %v1818
      %v1820 = vpop.f32.mrb[0].mxu0
      %v1821 = vpop.f32.mrb[0].mxu0
      %v1822 = vpop.f32.mrb[0].mxu0
      %1823 = vdwg.mxu0
      %1824 = vmatprep.subr.bf16.mxu0 0
      %1825 = vmatpush1.bf16.msra.mxu0 %v1344
      %1826 = vmatprep.subr.bf16.mxu0 0
      %1827 = vmatpush1.bf16.msra.mxu0 %v1345
      %1828 = vmatprep.subr.bf16.mxu0 0
      %1829 = vmatpush1.bf16.msra.mxu0 %v1346
      %1830 = vmatprep.subr.bf16.mxu0 0
      %1831 = vmatpush1.bf16.msra.mxu0 %v1347
      %1832 = vmatprep.subr.bf16.mxu0 0
      %1833 = vmatpush1.bf16.msra.mxu0 %v1348
      %1834 = vmatprep.subr.bf16.mxu0 0
      %1835 = vmatpush1.bf16.msra.mxu0 %v1349
      %1836 = vmatprep.subr.bf16.mxu0 0
      %1837 = vmatpush1.bf16.msra.mxu0 %v1350
      %1838 = vmatprep.subr.bf16.mxu0 0
      %1839 = vmatpush1.bf16.msra.mxu0 %v1351
      %1840 = vmatprep.subr.bf16.mxu0 0
      %1841 = vmatpush1.bf16.msra.mxu0 %v1352
      %1842 = vmatprep.subr.bf16.mxu0 0
      %1843 = vmatpush1.bf16.msra.mxu0 %v1353
      %1844 = vmatprep.subr.bf16.mxu0 0
      %1845 = vmatpush1.bf16.msra.mxu0 %v1354
      %1846 = vmatprep.subr.bf16.mxu0 0
      %1847 = vmatpush1.bf16.msra.mxu0 %v1355
      %1848 = vmatprep.subr.bf16.mxu0 0
      %1849 = vmatpush1.bf16.msra.mxu0 %v1356
      %1850 = vmatprep.subr.bf16.mxu0 0
      %1851 = vmatpush1.bf16.msra.mxu0 %v1357
      %1852 = vmatprep.subr.bf16.mxu0 0
      %1853 = vmatpush1.bf16.msra.mxu0 %v1358
      %1854 = vmatprep.subr.bf16.mxu0 0
      %1855 = vmatpush1.bf16.msra.mxu0 %v1359
      %1856 = vmatprep.mubr.bf16.mxu0 %v621
      %1857 = vmatmul.mubr.bf16.gmra.mrb[0].mxu0 %v620
      %v1858 = vpop.f32.mrb[0].mxu0
      %v1859 = vadd.f32 %v1819, %v1858
      %v1860 = vpop.f32.mrb[0].mxu0
      %v1861 = vpop.f32.mrb[0].mxu0
      %v1862 = vpop.f32.mrb[0].mxu0
      %1863 = vdwg.mxu0
      %v1864 = vadd.f32 %v279, %v1859
      %1865 = vst [vmem:[#allocation2] sm:$0xff] %v1864
      %p1866 = scmp.eq.s32.totalorder %s21, 3
      // Predicated region
      $region45: #{net_forward.3} parent=39 // pred_check
        %p1867 = pneg %p1866
      $region46: #{net_forward.3} parent=39 // pred_check_branch
        %1869 = sbr.rel (%p1867) target = $region48
      $region47: #{net_forward.3} parent=39 // pred_region
        %v1870 = vld [vmem:[#allocation2] sm:$0xff]
        %v1871 = vld [vmem:[%s2] sm:$0x1]
        %v1873 = vlaneseq
        %v1874 = vshrl.u32 %v1873, 7
        %v1875 = vsub.s32 0, %v1874
        %v1876 = vrot.slane %v1871, %v1875
        %v1878 = vadd.f32 %v1870, %v1876
        %v1879 = vmax.f32 %v1878, 0.0
        %v1880 = vld [vmem:[%s3] sm:$0xff]
        %v1881 = vld [vmem:[%s3 + $0x8] sm:$0xff]
        %v1882 = vld [vmem:[%s3 + $0x10] sm:$0xff]
        %v1883 = vld [vmem:[%s3 + $0x18] sm:$0xff]
        %v1884 = vld [vmem:[%s3 + $0x20] sm:$0xff]
        %v1885 = vld [vmem:[%s3 + $0x28] sm:$0xff]
        %v1886 = vld [vmem:[%s3 + $0x30] sm:$0xff]
        %v1887 = vld [vmem:[%s3 + $0x38] sm:$0xff]
        %v1888 = vld [vmem:[%s3 + $0x40] sm:$0xff]
        %v1889 = vld [vmem:[%s3 + $0x48] sm:$0xff]
        %v1890 = vld [vmem:[%s3 + $0x50] sm:$0xff]
        %v1891 = vld [vmem:[%s3 + $0x58] sm:$0xff]
        %v1892 = vld [vmem:[%s3 + $0x60] sm:$0xff]
        %v1893 = vld [vmem:[%s3 + $0x68] sm:$0xff]
        %v1894 = vld [vmem:[%s3 + $0x70] sm:$0xff]
        %v1895 = vld [vmem:[%s3 + $0x78] sm:$0xff]
        %v1896 = vld [vmem:[%s4] sm:$0x1]
        %v1898 = vlaneseq
        %v1899 = vshrl.u32 %v1898, 7
        %v1900 = vsub.s32 0, %v1899
        %v1901 = vrot.slane %v1896, %v1900
        %1903 = vmatprep.subr.mxu0 0.0
        %1904 = vmatpush1.msra.mxu0 %v1880
        %1905 = vmatprep.subr.mxu0 0.0
        %1906 = vmatpush1.msra.mxu0 %v1881
        %1907 = vmatprep.subr.mxu0 0.0
        %1908 = vmatpush1.msra.mxu0 %v1882
        %1909 = vmatprep.subr.mxu0 0.0
        %1910 = vmatpush1.msra.mxu0 %v1883
        %1911 = vmatprep.subr.mxu0 0.0
        %1912 = vmatpush1.msra.mxu0 %v1884
        %1913 = vmatprep.subr.mxu0 0.0
        %1914 = vmatpush1.msra.mxu0 %v1885
        %1915 = vmatprep.subr.mxu0 0.0
        %1916 = vmatpush1.msra.mxu0 %v1886
        %1917 = vmatprep.subr.mxu0 0.0
        %1918 = vmatpush1.msra.mxu0 %v1887
        %1919 = vmatprep.subr.mxu0 0.0
        %1920 = vmatpush1.msra.mxu0 %v1888
        %1921 = vmatprep.subr.mxu0 0.0
        %1922 = vmatpush1.msra.mxu0 %v1889
        %1923 = vmatprep.subr.mxu0 0.0
        %1924 = vmatpush1.msra.mxu0 %v1890
        %1925 = vmatprep.subr.mxu0 0.0
        %1926 = vmatpush1.msra.mxu0 %v1891
        %1927 = vmatprep.subr.mxu0 0.0
        %1928 = vmatpush1.msra.mxu0 %v1892
        %1929 = vmatprep.subr.mxu0 0.0
        %1930 = vmatpush1.msra.mxu0 %v1893
        %1931 = vmatprep.subr.mxu0 0.0
        %1932 = vmatpush1.msra.mxu0 %v1894
        %1933 = vmatprep.subr.mxu0 0.0
        %1934 = vmatpush1.msra.mxu0 %v1895
        %1935 = vmatprep.subr.mxu0 0.0
        %1936 = vmatpush1.msra.mxu0 0.0
        %1937 = vmatprep.subr.mxu0 0.0
        %1938 = vmatpush1.msra.mxu0 0.0
        %1939 = vmatprep.subr.mxu0 0.0
        %1940 = vmatpush1.msra.mxu0 0.0
        %1941 = vmatprep.subr.mxu0 0.0
        %1942 = vmatpush1.msra.mxu0 0.0
        %1943 = vmatprep.subr.mxu0 0.0
        %1944 = vmatpush1.msra.mxu0 0.0
        %1945 = vmatprep.subr.mxu0 0.0
        %1946 = vmatpush1.msra.mxu0 0.0
        %1947 = vmatprep.subr.mxu0 0.0
        %1948 = vmatpush1.msra.mxu0 0.0
        %1949 = vmatprep.subr.mxu0 0.0
        %1950 = vmatpush1.msra.mxu0 0.0
        %1951 = vmatprep.subr.mxu0 0.0
        %1952 = vmatpush1.msra.mxu0 0.0
        %1953 = vmatprep.subr.mxu0 0.0
        %1954 = vmatpush1.msra.mxu0 0.0
        %1955 = vmatprep.subr.mxu0 0.0
        %1956 = vmatpush1.msra.mxu0 0.0
        %1957 = vmatprep.subr.mxu0 0.0
        %1958 = vmatpush1.msra.mxu0 0.0
        %1959 = vmatprep.subr.mxu0 0.0
        %1960 = vmatpush1.msra.mxu0 0.0
        %1961 = vmatprep.subr.mxu0 0.0
        %1962 = vmatpush1.msra.mxu0 0.0
        %1963 = vmatprep.subr.mxu0 0.0
        %1964 = vmatpush1.msra.mxu0 0.0
        %1965 = vmatprep.subr.mxu0 0.0
        %1966 = vmatpush1.msra.mxu0 0.0
        %1967 = vmatprep.mubr.f32.mxu0 0.0
        %1968 = vmatmul.mubr.f32.gmra.mrb[0].mxu0 %v1879
        %v1969 = vpop.f32.mrb[0].mxu0
        %v1970 = vadd.f32 %v1901, %v1969
        %v1971 = vpop.f32.mrb[0].mxu0
        %1972 = vdwg.mxu0
        %vm1973 = vcmask 80896
        %v1974 = vsel %vm1973, %v1970, -inf
        %1975 = vmax.xlane.f32.xlu0 %v1974
        %v1976 = vpop.xlane.xlu0 %1975
        %v1977 = vsub.f32 %v1970, %v1976
        %v1978 = vmul.f32 %v1977, 1.442695
        %v1979 = vpow.pop %v1978
        %v1980 = vsel %vm1973, %v1979, 0.0
        %1981 = vadd.xlane.f32.xlu0 %v1980
        %v1982 = vpop.xlane.xlu0 %1981
        %v1983 = vlog2.pop %v1982
        %v1984 = vmul.f32 %v1983, 0.6931472
        %v1985 = vadd.f32 %v1984, %v1976
        %v1986 = vsub.f32 %v1970, %v1985
        %1987 = vst.msk [vmem:[%s272] sm:$0xff] %vm1973, %v1986
      $region48: #{net_forward.3} parent=39 // pred_fallthru
        _
      %p1988 = scmp.lt.s32.totalorder %s20, 0
      %s1989 = scalar_select %p1988, %s20, 0
      %s1990 = smul.addr %s1989, 8
      %s1991 = scalar_lea.vmem %s5, %s1990
      // Predicated region
      $region49: #{net_forward.3} parent=39 // pred_check
        %p1992 = pneg %p163
      $region50: #{net_forward.3} parent=39 // pred_check_branch
        %1994 = sbr.rel (%p1992) target = $region52
      $region51: #{net_forward.3} parent=39 // pred_region
        _
      $region52: #{net_forward.3} parent=39 // pred_fallthru
        _
      // Predicated region
      $region53: #{net_forward.3} parent=39 // pred_check
        %p1995 = pneg %p163
      $region54: #{net_forward.3} parent=39 // pred_check_branch
        %1997 = sbr.rel (%p1995) target = $region56
      $region55: #{net_forward.3} parent=39 // pred_region
        %p1998 = scmp.lt.s32.totalorder %s20, 0
        %s1999 = scalar_select %p1998, %s20, 0
        %s2000 = smul.addr %s1999, 8
        %s2001 = scalar_lea.vmem %s5, %s2000
      $region56: #{net_forward.3} parent=39 // pred_fallthru
        _
    $region40: #{net_forward.3} parent=5 // pred_fallthru
      _
    %p2002 = scmp.le.s32.totalorder 2, %s11
    // Predicated region
    $region57: #{net_forward.3} parent=5 // pred_check
      %p2003 = pneg %p2002
    $region58: #{net_forward.3} parent=5 // pred_check_branch
      %2005 = sbr.rel (%p2003) target = $region60
    $region59: #{net_forward.3} parent=5 // pred_region
      %s2006 = ssub.s32 %s11, 2
    $region60: #{net_forward.3} parent=5 // pred_fallthru
      _
  $region6: #{net_forward.3} parent=0 // loop_footer
    %s15 = sadd.s32 1, %s11
  $region7: #{net_forward.3} parent=0 // loop_footer_branch
    %10 = sbr.rel target = $region3
  $region8: #{net_forward.3} parent=0 // loop_exit
    _

// kernel: net_forward.2
$region0: #{net_forward.2}
  #allocation0 [shape = 'u32[]', space=smem, size = 0x4, offset = 0x4, fixed_abs, tag = 'smem constant byte address 0x4 - core index']
  #allocation1 [shape = 'u32[144,128]{1,0:T(1,128)}', space=vmem, size = 0x12000, scoped, tag = 'internal scratch']
  #allocation2 [shape = 'f32[416,128]{1,0:T(8,128)}', space=vmem, size = 0x34000, scoped, tag = 'scratch operand']
  %s0 = inlined_call_operand.vmem [shape: f32[2,416,36], index: 0, kind: input, shape index: {}]
  %s1 = inlined_call_operand.vmem [shape: f32[36,128], index: 1, kind: input, shape index: {}]
  %s2 = inlined_call_operand.vmem [shape: f32[1,128], index: 2, kind: input, shape index: {}]
  %s3 = inlined_call_operand.vmem [shape: f32[3,128,128], index: 3, kind: input, shape index: {}]
  %s4 = inlined_call_operand.vmem [shape: f32[1,128], index: 4, kind: input, shape index: {}]
  %s5 = inlined_call_operand.vmem [shape: bf16[2,12,12,64], index: 5, kind: output, shape index: {}]
  %s6 = sld [smem:[#allocation0]]
  $region53: #{net_forward.2} parent=0
    _
  %s8 = ssub.s32 1, %s6
  %s9 = scalar_select 0, %s8, %s6
  loop: start=0, step=1, limit=4
  $region2: #{net_forward.2} parent=0 // loop_pre_header
    _
  $region3: #{net_forward.2} parent=0 // loop_header
    %s11 = sphi 0, %s15
    %p12 = scmp.ge.s32.totalorder %s11, 4
    %s21 = sphi 0, %s23
    %s24 = sphi 0, %s21
    %s25 = sphi 0, %s24
    %s41 = sphi 0, %s25
    %s45 = sphi 0, %s45
    %s47 = sphi 0, %s45
    %s48 = sphi 0, %s47
    %s62 = sphi 0, %s48
    %s66 = sphi 0, %s66
    %s68 = sphi 0, %s66
    %s69 = sphi 0, %s68
    %s83 = sphi 0, %s69
    %s87 = sphi 0, %s87
    %s89 = sphi 0, %s87
    %s90 = sphi 0, %s89
    %s104 = sphi 0, %s90
    %s108 = sphi 0, %s108
    %s110 = sphi 0, %s108
    %s111 = sphi 0, %s110
    %s125 = sphi 0, %s111
    %s131 = sphi 0, %s133
    %s134 = sphi 0, %s131
    %s135 = sphi 0, %s134
    %s151 = sphi 0, %s135
  $region4: #{net_forward.2} parent=0 // loop_header_branch
    %14 = sbr.rel (%p12) target = $region8
  $region5: #{net_forward.2} parent=0 // loop_body
    %s16 = ssub.s32 %s11, 1
    %s17 = ssub.s32 %s11, 2
    %s18 = sadd.s32 %s11, 1
    %s19 = ssub.s32 %s11, %s18
    %p20 = scmp.eq.s32.totalorder %s19, 0
    %s22 = sadd.s32 %s21, 1
    %s23 = scalar_select %p20, %s21, %s22
    %p26 = pneg %p20
    %p27 = scmp.eq.s32.totalorder %s11, 1
    %p28 = por %p26, %p27
    %p29 = scmp.ne.s32.totalorder %s21, %s24
    %p30 = scmp.eq.s32.totalorder %s11, 0
    %p31 = por %p29, %p30
    %p32 = scmp.ne.s32.totalorder %s21, %s24
    %p33 = scmp.eq.s32.totalorder %s16, 1
    %p34 = por %p32, %p33
    %p35 = scmp.ne.s32.totalorder %s24, %s25
    %p36 = scmp.eq.s32.totalorder %s16, 0
    %p37 = por %p35, %p36
    %p38 = scmp.ne.s32.totalorder %s24, %s25
    %p39 = scmp.eq.s32.totalorder %s17, 1
    %p40 = por %p38, %p39
    %p42 = scmp.ne.s32.totalorder %s25, %s41
    %p43 = scmp.eq.s32.totalorder %s17, 0
    %p44 = por %p42, %p43
    %s46 = sadd.s32 %s45, 1
    %p49 = scmp.eq.s32.totalorder %s11, 1
    %p50 = scmp.ne.s32.totalorder %s45, %s47
    %p51 = scmp.eq.s32.totalorder %s11, 0
    %p52 = por %p50, %p51
    %p53 = scmp.ne.s32.totalorder %s45, %s47
    %p54 = scmp.eq.s32.totalorder %s16, 1
    %p55 = por %p53, %p54
    %p56 = scmp.ne.s32.totalorder %s47, %s48
    %p57 = scmp.eq.s32.totalorder %s16, 0
    %p58 = por %p56, %p57
    %p59 = scmp.ne.s32.totalorder %s47, %s48
    %p60 = scmp.eq.s32.totalorder %s17, 1
    %p61 = por %p59, %p60
    %p63 = scmp.ne.s32.totalorder %s48, %s62
    %p64 = scmp.eq.s32.totalorder %s17, 0
    %p65 = por %p63, %p64
    %s67 = sadd.s32 %s66, 1
    %p70 = scmp.eq.s32.totalorder %s11, 1
    %p71 = scmp.ne.s32.totalorder %s66, %s68
    %p72 = scmp.eq.s32.totalorder %s11, 0
    %p73 = por %p71, %p72
    %p74 = scmp.ne.s32.totalorder %s66, %s68
    %p75 = scmp.eq.s32.totalorder %s16, 1
    %p76 = por %p74, %p75
    %p77 = scmp.ne.s32.totalorder %s68, %s69
    %p78 = scmp.eq.s32.totalorder %s16, 0
    %p79 = por %p77, %p78
    %p80 = scmp.ne.s32.totalorder %s68, %s69
    %p81 = scmp.eq.s32.totalorder %s17, 1
    %p82 = por %p80, %p81
    %p84 = scmp.ne.s32.totalorder %s69, %s83
    %p85 = scmp.eq.s32.totalorder %s17, 0
    %p86 = por %p84, %p85
    %s88 = sadd.s32 %s87, 1
    %p91 = scmp.eq.s32.totalorder %s11, 1
    %p92 = scmp.ne.s32.totalorder %s87, %s89
    %p93 = scmp.eq.s32.totalorder %s11, 0
    %p94 = por %p92, %p93
    %p95 = scmp.ne.s32.totalorder %s87, %s89
    %p96 = scmp.eq.s32.totalorder %s16, 1
    %p97 = por %p95, %p96
    %p98 = scmp.ne.s32.totalorder %s89, %s90
    %p99 = scmp.eq.s32.totalorder %s16, 0
    %p100 = por %p98, %p99
    %p101 = scmp.ne.s32.totalorder %s89, %s90
    %p102 = scmp.eq.s32.totalorder %s17, 1
    %p103 = por %p101, %p102
    %p105 = scmp.ne.s32.totalorder %s90, %s104
    %p106 = scmp.eq.s32.totalorder %s17, 0
    %p107 = por %p105, %p106
    %s109 = sadd.s32 %s108, 1
    %p112 = scmp.eq.s32.totalorder %s11, 1
    %p113 = scmp.ne.s32.totalorder %s108, %s110
    %p114 = scmp.eq.s32.totalorder %s11, 0
    %p115 = por %p113, %p114
    %p116 = scmp.ne.s32.totalorder %s108, %s110
    %p117 = scmp.eq.s32.totalorder %s16, 1
    %p118 = por %p116, %p117
    %p119 = scmp.ne.s32.totalorder %s110, %s111
    %p120 = scmp.eq.s32.totalorder %s16, 0
    %p121 = por %p119, %p120
    %p122 = scmp.ne.s32.totalorder %s110, %s111
    %p123 = scmp.eq.s32.totalorder %s17, 1
    %p124 = por %p122, %p123
    %p126 = scmp.ne.s32.totalorder %s111, %s125
    %p127 = scmp.eq.s32.totalorder %s17, 0
    %p128 = por %p126, %p127
    %s129 = ssub.s32 %s11, %s18
    %p130 = scmp.eq.s32.totalorder %s129, 0
    %s132 = sadd.s32 %s131, 1
    %s133 = scalar_select %p130, %s131, %s132
    %p136 = pneg %p130
    %p137 = scmp.eq.s32.totalorder %s11, 1
    %p138 = por %p136, %p137
    %p139 = scmp.ne.s32.totalorder %s131, %s134
    %p140 = scmp.eq.s32.totalorder %s11, 0
    %p141 = por %p139, %p140
    %p142 = scmp.ne.s32.totalorder %s131, %s134
    %p143 = scmp.eq.s32.totalorder %s16, 1
    %p144 = por %p142, %p143
    %p145 = scmp.ne.s32.totalorder %s134, %s135
    %p146 = scmp.eq.s32.totalorder %s16, 0
    %p147 = por %p145, %p146
    %p148 = scmp.ne.s32.totalorder %s134, %s135
    %p149 = scmp.eq.s32.totalorder %s17, 1
    %p150 = por %p148, %p149
    %p152 = scmp.ne.s32.totalorder %s135, %s151
    %p153 = scmp.eq.s32.totalorder %s17, 0
    %p154 = por %p152, %p153
    %p155 = scmp.le.s32.totalorder 1, %s11
    %p156 = scmp.lt.s32.totalorder %s11, 3
    %p157 = pnand %p155, %p156
    %p158 = pneg %p157
    // Predicated region
    $region9: #{net_forward.2} parent=5 // pred_check
      _
    $region10: #{net_forward.2} parent=5 // pred_check_branch
      %160 = sbr.rel (%p157) target = $region12
    $region11: #{net_forward.2} parent=5 // pred_region
      %s161 = ssub.s32 %s11, 1
      // Predicated region
      $region13: #{net_forward.2} parent=11 // pred_check
        %p162 = pneg %p58
      $region14: #{net_forward.2} parent=11 // pred_check_branch
        %164 = sbr.rel (%p162) target = $region16
      $region15: #{net_forward.2} parent=11 // pred_region
        _
      $region16: #{net_forward.2} parent=11 // pred_fallthru
        _
      // Predicated region
      $region17: #{net_forward.2} parent=11 // pred_check
        %p165 = pneg %p79
      $region18: #{net_forward.2} parent=11 // pred_check_branch
        %167 = sbr.rel (%p165) target = $region20
      $region19: #{net_forward.2} parent=11 // pred_region
        _
      $region20: #{net_forward.2} parent=11 // pred_fallthru
        _
      // Predicated region
      $region21: #{net_forward.2} parent=11 // pred_check
        %p168 = pneg %p100
      $region22: #{net_forward.2} parent=11 // pred_check_branch
        %170 = sbr.rel (%p168) target = $region24
      $region23: #{net_forward.2} parent=11 // pred_region
        _
      $region24: #{net_forward.2} parent=11 // pred_fallthru
        _
      // Predicated region
      $region25: #{net_forward.2} parent=11 // pred_check
        %p171 = pneg %p121
      $region26: #{net_forward.2} parent=11 // pred_check_branch
        %173 = sbr.rel (%p171) target = $region28
      $region27: #{net_forward.2} parent=11 // pred_region
        _
      $region28: #{net_forward.2} parent=11 // pred_fallthru
        _
    $region12: #{net_forward.2} parent=5 // pred_fallthru
      _
    %p174 = scmp.lt.s32.totalorder %s11, 2
    // Predicated region
    $region29: #{net_forward.2} parent=5 // pred_check
      %p175 = pneg %p174
    $region30: #{net_forward.2} parent=5 // pred_check_branch
      %177 = sbr.rel (%p175) target = $region32
    $region31: #{net_forward.2} parent=5 // pred_region
      // Predicated region
      $region33: #{net_forward.2} parent=31 // pred_check
        %p178 = pneg %p31
      $region34: #{net_forward.2} parent=31 // pred_check_branch
        %180 = sbr.rel (%p178) target = $region36
      $region35: #{net_forward.2} parent=31 // pred_region
        %p181 = scmp.lt.s32.totalorder %s11, 1
        %s182 = scalar_select %p181, %s11, 1
        %s183 = smul.addr %s182, 52
        %s184 = smul.addr %s183, 8
        %s185 = scalar_lea.vmem %s0, %s184
      $region36: #{net_forward.2} parent=31 // pred_fallthru
        _
    $region32: #{net_forward.2} parent=5 // pred_fallthru
      _
    %p186 = scmp.le.s32.totalorder 1, %s11
    %p187 = scmp.lt.s32.totalorder %s11, 3
    %p188 = pnand %p186, %p187
    %p189 = pneg %p188
    // Predicated region
    $region37: #{net_forward.2} parent=5 // pred_check
      _
    $region38: #{net_forward.2} parent=5 // pred_check_branch
      %191 = sbr.rel (%p188) target = $region40
    $region39: #{net_forward.2} parent=5 // pred_region
      %s192 = ssub.s32 %s11, 1
      %p193 = scmp.lt.s32.totalorder %s16, 1
      %s194 = scalar_select %p193, %s16, 1
      %s195 = smul.addr %s194, 52
      %s196 = smul.addr %s195, 8
      %s197 = scalar_lea.vmem %s0, %s196
      %p198 = pneg %p37
      %p199 = pneg %p34
      %p200 = pneg %p58
      %p201 = pneg %p55
      %p202 = pneg %p79
      %p203 = pneg %p76
      %p204 = pneg %p100
      %p205 = pneg %p97
      %p206 = pneg %p121
      %p207 = pneg %p118
      %p208 = pneg %p147
      %p209 = pneg %p144
      %p210 = scmp.lt.s32.totalorder %s16, 1
      %s211 = scalar_select %p210, %s16, 1
      %s212 = smul.addr %s211, 24
      %s213 = smul.addr %s212, 4
      %s214 = scalar_lea.vmem %s5, %s213
      %p215 = scmp.lt.s32.totalorder %s16, 1
      %s216 = scalar_select %p215, %s16, 1
      %s217 = smul.addr %s216, 52
      %s218 = smul.addr %s217, 8
      %s219 = scalar_lea.vmem %s0, %s218
      %p220 = scmp.lt.s32.totalorder %s16, 1
      %s221 = scalar_select %p220, %s16, 1
      %s222 = smul.addr %s221, 24
      %s223 = smul.addr %s222, 4
      %s224 = scalar_lea.vmem %s5, %s223
      %v225 = vld [vmem:[%s219] sm:$0xff]
      %v226 = vld [vmem:[%s219 + $0x8] sm:$0xff]
      %v227 = vld [vmem:[%s219 + $0x10] sm:$0xff]
      %v228 = vld [vmem:[%s219 + $0x18] sm:$0xff]
      %v229 = vld [vmem:[%s219 + $0x20] sm:$0xff]
      %v230 = vld [vmem:[%s219 + $0x28] sm:$0xff]
      %v231 = vld [vmem:[%s219 + $0x30] sm:$0xff]
      %v232 = vld [vmem:[%s219 + $0x38] sm:$0xff]
      %v233 = vld [vmem:[%s219 + $0x40] sm:$0xff]
      %v234 = vld [vmem:[%s219 + $0x48] sm:$0xff]
      %v235 = vld [vmem:[%s219 + $0x50] sm:$0xff]
      %v236 = vld [vmem:[%s219 + $0x58] sm:$0xff]
      %v237 = vld [vmem:[%s219 + $0x60] sm:$0xff]
      %v238 = vld [vmem:[%s219 + $0x68] sm:$0xff]
      %v239 = vld [vmem:[%s219 + $0x70] sm:$0xff]
      %v240 = vld [vmem:[%s219 + $0x78] sm:$0xff]
      %v241 = vld [vmem:[%s219 + $0x80] sm:$0xff]
      %v242 = vld [vmem:[%s219 + $0x88] sm:$0xff]
      %v243 = vld [vmem:[%s219 + $0x90] sm:$0xff]
      %v244 = vld [vmem:[%s219 + $0x98] sm:$0xff]
      %v245 = vld [vmem:[%s219 + $0xa0] sm:$0xff]
      %v246 = vld [vmem:[%s219 + $0xa8] sm:$0xff]
      %v247 = vld [vmem:[%s219 + $0xb0] sm:$0xff]
      %v248 = vld [vmem:[%s219 + $0xb8] sm:$0xff]
      %v249 = vld [vmem:[%s219 + $0xc0] sm:$0xff]
      %v250 = vld [vmem:[%s219 + $0xc8] sm:$0xff]
      %v251 = vld [vmem:[%s1] sm:$0xff]
      %v252 = vld [vmem:[%s1 + $0x8] sm:$0xff]
      %v253 = vld [vmem:[%s1 + $0x10] sm:$0xff]
      %v254 = vld [vmem:[%s1 + $0x18] sm:$0xff]
      %v255 = vld [vmem:[%s1 + $0x20] sm:$0xf]
      %v256 = vld [vmem:[%s2] sm:$0x1]
      %v258 = vlaneseq
      %v259 = vshrl.u32 %v258, 7
      %v260 = vsub.s32 0, %v259
      %v261 = vrot.slane %v256, %v260
      %vm263 = vcmask 293888
      %v265 = vsel %vm263, %v225, 0
      %v268 = vsel %vm263, %v226, 0
      %v271 = vsel %vm263, %v227, 0
      %v274 = vsel %vm263, %v228, 0
      %v277 = vsel %vm263, %v229, 0
      %v280 = vsel %vm263, %v230, 0
      %v283 = vsel %vm263, %v231, 0
      %v286 = vsel %vm263, %v232, 0
      %v289 = vsel %vm263, %v233, 0
      %v292 = vsel %vm263, %v234, 0
      %v295 = vsel %vm263, %v235, 0
      %v298 = vsel %vm263, %v236, 0
      %v301 = vsel %vm263, %v237, 0
      %v304 = vsel %vm263, %v238, 0
      %v307 = vsel %vm263, %v239, 0
      %v310 = vsel %vm263, %v240, 0
      %v313 = vsel %vm263, %v241, 0
      %v316 = vsel %vm263, %v242, 0
      %v319 = vsel %vm263, %v243, 0
      %v322 = vsel %vm263, %v244, 0
      %v325 = vsel %vm263, %v245, 0
      %v328 = vsel %vm263, %v246, 0
      %v331 = vsel %vm263, %v247, 0
      %v334 = vsel %vm263, %v248, 0
      %v337 = vsel %vm263, %v249, 0
      %v340 = vsel %vm263, %v250, 0
      %vm342 = vcmask 1043456
      %v344 = vsel %vm342, %v255, 0
      %346 = vmatprep.subr.mxu0 0.0
      %347 = vmatpush1.msra.mxu0 %v251
      %348 = vmatprep.subr.mxu0 0.0
      %349 = vmatpush1.msra.mxu0 %v252
      %350 = vmatprep.subr.mxu0 0.0
      %351 = vmatpush1.msra.mxu0 %v253
      %352 = vmatprep.subr.mxu0 0.0
      %353 = vmatpush1.msra.mxu0 %v254
      %354 = vmatprep.subr.mxu0 0.0
      %355 = vmatpush1.msra.mxu0 %v344
      %356 = vmatprep.subr.mxu0 0.0
      %357 = vmatpush1.msra.mxu0 0.0
      %358 = vmatprep.subr.mxu0 0.0
      %359 = vmatpush1.msra.mxu0 0.0
      %360 = vmatprep.subr.mxu0 0.0
      %361 = vmatpush1.msra.mxu0 0.0
      %362 = vmatprep.subr.mxu0 0.0
      %363 = vmatpush1.msra.mxu0 0.0
      %364 = vmatprep.subr.mxu0 0.0
      %365 = vmatpush1.msra.mxu0 0.0
      %366 = vmatprep.subr.mxu0 0.0
      %367 = vmatpush1.msra.mxu0 0.0
      %368 = vmatprep.subr.mxu0 0.0
      %369 = vmatpush1.msra.mxu0 0.0
      %370 = vmatprep.subr.mxu0 0.0
      %371 = vmatpush1.msra.mxu0 0.0
      %372 = vmatprep.subr.mxu0 0.0
      %373 = vmatpush1.msra.mxu0 0.0
      %374 = vmatprep.subr.mxu0 0.0
      %375 = vmatpush1.msra.mxu0 0.0
      %376 = vmatprep.subr.mxu0 0.0
      %377 = vmatpush1.msra.mxu0 0.0
      %378 = vmatprep.subr.mxu0 0.0
      %379 = vmatpush1.msra.mxu0 0.0
      %380 = vmatprep.subr.mxu0 0.0
      %381 = vmatpush1.msra.mxu0 0.0
      %382 = vmatprep.subr.mxu0 0.0
      %383 = vmatpush1.msra.mxu0 0.0
      %384 = vmatprep.subr.mxu0 0.0
      %385 = vmatpush1.msra.mxu0 0.0
      %386 = vmatprep.subr.mxu0 0.0
      %387 = vmatpush1.msra.mxu0 0.0
      %388 = vmatprep.subr.mxu0 0.0
      %389 = vmatpush1.msra.mxu0 0.0
      %390 = vmatprep.subr.mxu0 0.0
      %391 = vmatpush1.msra.mxu0 0.0
      %392 = vmatprep.subr.mxu0 0.0
      %393 = vmatpush1.msra.mxu0 0.0
      %394 = vmatprep.subr.mxu0 0.0
      %395 = vmatpush1.msra.mxu0 0.0
      %396 = vmatprep.subr.mxu0 0.0
      %397 = vmatpush1.msra.mxu0 0.0
      %398 = vmatprep.subr.mxu0 0.0
      %399 = vmatpush1.msra.mxu0 0.0
      %400 = vmatprep.subr.mxu0 0.0
      %401 = vmatpush1.msra.mxu0 0.0
      %402 = vmatprep.subr.mxu0 0.0
      %403 = vmatpush1.msra.mxu0 0.0
      %404 = vmatprep.subr.mxu0 0.0
      %405 = vmatpush1.msra.mxu0 0.0
      %406 = vmatprep.subr.mxu0 0.0
      %407 = vmatpush1.msra.mxu0 0.0
      %408 = vmatprep.subr.mxu0 0.0
      %409 = vmatpush1.msra.mxu0 0.0
      %410 = vmatprep.mubr.f32.mxu0 0.0
      %411 = vmatmul.mubr.f32.gmra.mrb[0].mxu0 %v265
      %v412 = vpop.f32.mrb[0].mxu0
      %v413 = vadd.f32 %v261, %v412
      %v414 = vpop.f32.mrb[0].mxu0
      %415 = vmatprep.mubr.f32.mxu0 0.0
      %416 = vmatmul.mubr.f32.gmra.mrb[0].mxu0 %v268
      %v417 = vpop.f32.mrb[0].mxu0
      %v418 = vadd.f32 %v261, %v417
      %v419 = vpop.f32.mrb[0].mxu0
      %420 = vmatprep.mubr.f32.mxu0 0.0
      %421 = vmatmul.mubr.f32.gmra.mrb[0].mxu0 %v271
      %v422 = vpop.f32.mrb[0].mxu0
      %v423 = vadd.f32 %v261, %v422
      %v424 = vpop.f32.mrb[0].mxu0
      %425 = vmatprep.mubr.f32.mxu0 0.0
      %426 = vmatmul.mubr.f32.gmra.mrb[0].mxu0 %v274
      %v427 = vpop.f32.mrb[0].mxu0
      %v428 = vadd.f32 %v261, %v427
      %v429 = vpop.f32.mrb[0].mxu0
      %430 = vmatprep.mubr.f32.mxu0 0.0
      %431 = vmatmul.mubr.f32.gmra.mrb[0].mxu0 %v277
      %v432 = vpop.f32.mrb[0].mxu0
      %v433 = vadd.f32 %v261, %v432
      %v434 = vpop.f32.mrb[0].mxu0
      %435 = vmatprep.mubr.f32.mxu0 0.0
      %436 = vmatmul.mubr.f32.gmra.mrb[0].mxu0 %v280
      %v437 = vpop.f32.mrb[0].mxu0
      %v438 = vadd.f32 %v261, %v437
      %v439 = vpop.f32.mrb[0].mxu0
      %440 = vmatprep.mubr.f32.mxu0 0.0
      %441 = vmatmul.mubr.f32.gmra.mrb[0].mxu0 %v283
      %v442 = vpop.f32.mrb[0].mxu0
      %v443 = vadd.f32 %v261, %v442
      %v444 = vpop.f32.mrb[0].mxu0
      %445 = vmatprep.mubr.f32.mxu0 0.0
      %446 = vmatmul.mubr.f32.gmra.mrb[0].mxu0 %v286
      %v447 = vpop.f32.mrb[0].mxu0
      %v448 = vadd.f32 %v261, %v447
      %v449 = vpop.f32.mrb[0].mxu0
      %450 = vmatprep.mubr.f32.mxu0 0.0
      %451 = vmatmul.mubr.f32.gmra.mrb[0].mxu0 %v289
      %v452 = vpop.f32.mrb[0].mxu0
      %v453 = vadd.f32 %v261, %v452
      %v454 = vpop.f32.mrb[0].mxu0
      %455 = vmatprep.mubr.f32.mxu0 0.0
      %456 = vmatmul.mubr.f32.gmra.mrb[0].mxu0 %v292
      %v457 = vpop.f32.mrb[0].mxu0
      %v458 = vadd.f32 %v261, %v457
      %v459 = vpop.f32.mrb[0].mxu0
      %460 = vmatprep.mubr.f32.mxu0 0.0
      %461 = vmatmul.mubr.f32.gmra.mrb[0].mxu0 %v295
      %v462 = vpop.f32.mrb[0].mxu0
      %v463 = vadd.f32 %v261, %v462
      %v464 = vpop.f32.mrb[0].mxu0
      %465 = vmatprep.mubr.f32.mxu0 0.0
      %466 = vmatmul.mubr.f32.gmra.mrb[0].mxu0 %v298
      %v467 = vpop.f32.mrb[0].mxu0
      %v468 = vadd.f32 %v261, %v467
      %v469 = vpop.f32.mrb[0].mxu0
      %470 = vmatprep.mubr.f32.mxu0 0.0
      %471 = vmatmul.mubr.f32.gmra.mrb[0].mxu0 %v301
      %v472 = vpop.f32.mrb[0].mxu0
      %v473 = vadd.f32 %v261, %v472
      %v474 = vpop.f32.mrb[0].mxu0
      %475 = vmatprep.mubr.f32.mxu0 0.0
      %476 = vmatmul.mubr.f32.gmra.mrb[0].mxu0 %v304
      %v477 = vpop.f32.mrb[0].mxu0
      %v478 = vadd.f32 %v261, %v477
      %v479 = vpop.f32.mrb[0].mxu0
      %480 = vmatprep.mubr.f32.mxu0 0.0
      %481 = vmatmul.mubr.f32.gmra.mrb[0].mxu0 %v307
      %v482 = vpop.f32.mrb[0].mxu0
      %v483 = vadd.f32 %v261, %v482
      %v484 = vpop.f32.mrb[0].mxu0
      %485 = vmatprep.mubr.f32.mxu0 0.0
      %486 = vmatmul.mubr.f32.gmra.mrb[0].mxu0 %v310
      %v487 = vpop.f32.mrb[0].mxu0
      %v488 = vadd.f32 %v261, %v487
      %v489 = vpop.f32.mrb[0].mxu0
      %490 = vmatprep.mubr.f32.mxu0 0.0
      %491 = vmatmul.mubr.f32.gmra.mrb[0].mxu0 %v313
      %v492 = vpop.f32.mrb[0].mxu0
      %v493 = vadd.f32 %v261, %v492
      %v494 = vpop.f32.mrb[0].mxu0
      %495 = vmatprep.mubr.f32.mxu0 0.0
      %496 = vmatmul.mubr.f32.gmra.mrb[0].mxu0 %v316
      %v497 = vpop.f32.mrb[0].mxu0
      %v498 = vadd.f32 %v261, %v497
      %v499 = vpop.f32.mrb[0].mxu0
      %500 = vmatprep.mubr.f32.mxu0 0.0
      %501 = vmatmul.mubr.f32.gmra.mrb[0].mxu0 %v319
      %v502 = vpop.f32.mrb[0].mxu0
      %v503 = vadd.f32 %v261, %v502
      %v504 = vpop.f32.mrb[0].mxu0
      %505 = vmatprep.mubr.f32.mxu0 0.0
      %506 = vmatmul.mubr.f32.gmra.mrb[0].mxu0 %v322
      %v507 = vpop.f32.mrb[0].mxu0
      %v508 = vadd.f32 %v261, %v507
      %v509 = vpop.f32.mrb[0].mxu0
      %510 = vmatprep.mubr.f32.mxu0 0.0
      %511 = vmatmul.mubr.f32.gmra.mrb[0].mxu0 %v325
      %v512 = vpop.f32.mrb[0].mxu0
      %v513 = vadd.f32 %v261, %v512
      %v514 = vpop.f32.mrb[0].mxu0
      %515 = vmatprep.mubr.f32.mxu0 0.0
      %516 = vmatmul.mubr.f32.gmra.mrb[0].mxu0 %v328
      %v517 = vpop.f32.mrb[0].mxu0
      %v518 = vadd.f32 %v261, %v517
      %v519 = vpop.f32.mrb[0].mxu0
      %520 = vmatprep.mubr.f32.mxu0 0.0
      %521 = vmatmul.mubr.f32.gmra.mrb[0].mxu0 %v331
      %v522 = vpop.f32.mrb[0].mxu0
      %v523 = vadd.f32 %v261, %v522
      %v524 = vpop.f32.mrb[0].mxu0
      %525 = vmatprep.mubr.f32.mxu0 0.0
      %526 = vmatmul.mubr.f32.gmra.mrb[0].mxu0 %v334
      %v527 = vpop.f32.mrb[0].mxu0
      %v528 = vadd.f32 %v261, %v527
      %v529 = vpop.f32.mrb[0].mxu0
      %530 = vmatprep.mubr.f32.mxu0 0.0
      %531 = vmatmul.mubr.f32.gmra.mrb[0].mxu0 %v337
      %v532 = vpop.f32.mrb[0].mxu0
      %v533 = vadd.f32 %v261, %v532
      %v534 = vpop.f32.mrb[0].mxu0
      %535 = vmatprep.mubr.f32.mxu0 0.0
      %536 = vmatmul.mubr.f32.gmra.mrb[0].mxu0 %v340
      %v537 = vpop.f32.mrb[0].mxu0
      %v538 = vadd.f32 %v261, %v537
      %v539 = vpop.f32.mrb[0].mxu0
      %540 = vdwg.mxu0
      %v541 = vmax.f32 %v413, 0.0
      %v542 = vmax.f32 %v418, 0.0
      %v543 = vmax.f32 %v423, 0.0
      %v544 = vmax.f32 %v428, 0.0
      %v545 = vmax.f32 %v433, 0.0
      %v546 = vmax.f32 %v438, 0.0
      %v547 = vmax.f32 %v443, 0.0
      %v548 = vmax.f32 %v448, 0.0
      %v549 = vmax.f32 %v453, 0.0
      %v550 = vmax.f32 %v458, 0.0
      %v551 = vmax.f32 %v463, 0.0
      %v552 = vmax.f32 %v468, 0.0
      %v553 = vmax.f32 %v473, 0.0
      %v554 = vmax.f32 %v478, 0.0
      %v555 = vmax.f32 %v483, 0.0
      %v556 = vmax.f32 %v488, 0.0
      %v557 = vmax.f32 %v493, 0.0
      %v558 = vmax.f32 %v498, 0.0
      %v559 = vmax.f32 %v503, 0.0
      %v560 = vmax.f32 %v508, 0.0
      %v561 = vmax.f32 %v513, 0.0
      %v562 = vmax.f32 %v518, 0.0
      %v563 = vmax.f32 %v523, 0.0
      %v564 = vmax.f32 %v528, 0.0
      %v565 = vmax.f32 %v533, 0.0
      %v566 = vmax.f32 %v538, 0.0
      %567 = vst [vmem:[#allocation2] sm:$0xff] %v541
      %568 = vst [vmem:[#allocation2 + $0x8] sm:$0xff] %v542
      %569 = vst [vmem:[#allocation2 + $0x10] sm:$0xff] %v543
      %570 = vst [vmem:[#allocation2 + $0x18] sm:$0xff] %v544
      %571 = vst [vmem:[#allocation2 + $0x20] sm:$0xff] %v545
      %572 = vst [vmem:[#allocation2 + $0x28] sm:$0xff] %v546
      %573 = vst [vmem:[#allocation2 + $0x30] sm:$0xff] %v547
      %574 = vst [vmem:[#allocation2 + $0x38] sm:$0xff] %v548
      %575 = vst [vmem:[#allocation2 + $0x40] sm:$0xff] %v549
      %576 = vst [vmem:[#allocation2 + $0x48] sm:$0xff] %v550
      %577 = vst [vmem:[#allocation2 + $0x50] sm:$0xff] %v551
      %578 = vst [vmem:[#allocation2 + $0x58] sm:$0xff] %v552
      %579 = vst [vmem:[#allocation2 + $0x60] sm:$0xff] %v553
      %580 = vst [vmem:[#allocation2 + $0x68] sm:$0xff] %v554
      %581 = vst [vmem:[#allocation2 + $0x70] sm:$0xff] %v555
      %582 = vst [vmem:[#allocation2 + $0x78] sm:$0xff] %v556
      %583 = vst [vmem:[#allocation2 + $0x80] sm:$0xff] %v557
      %584 = vst [vmem:[#allocation2 + $0x88] sm:$0xff] %v558
      %585 = vst [vmem:[#allocation2 + $0x90] sm:$0xff] %v559
      %586 = vst [vmem:[#allocation2 + $0x98] sm:$0xff] %v560
      %587 = vst [vmem:[#allocation2 + $0xa0] sm:$0xff] %v561
      %588 = vst [vmem:[#allocation2 + $0xa8] sm:$0xff] %v562
      %589 = vst [vmem:[#allocation2 + $0xb0] sm:$0xff] %v563
      %590 = vst [vmem:[#allocation2 + $0xb8] sm:$0xff] %v564
      %591 = vst [vmem:[#allocation2 + $0xc0] sm:$0xff] %v565
      %592 = vst [vmem:[#allocation2 + $0xc8] sm:$0xff] %v566
      %v593 = vld [vmem:[%s219 + $0xd0] sm:$0xff]
      %v594 = vld [vmem:[%s219 + $0xd8] sm:$0xff]
      %v595 = vld [vmem:[%s219 + $0xe0] sm:$0xff]
      %v596 = vld [vmem:[%s219 + $0xe8] sm:$0xff]
      %v597 = vld [vmem:[%s219 + $0xf0] sm:$0xff]
      %v598 = vld [vmem:[%s219 + $0xf8] sm:$0xff]
      %v599 = vld [vmem:[%s219 + $0x100] sm:$0xff]
      %v600 = vld [vmem:[%s219 + $0x108] sm:$0xff]
      %v601 = vld [vmem:[%s219 + $0x110] sm:$0xff]
      %v602 = vld [vmem:[%s219 + $0x118] sm:$0xff]
      %v603 = vld [vmem:[%s219 + $0x120] sm:$0xff]
      %v604 = vld [vmem:[%s219 + $0x128] sm:$0xff]
      %v605 = vld [vmem:[%s219 + $0x130] sm:$0xff]
      %v606 = vld [vmem:[%s219 + $0x138] sm:$0xff]
      %v607 = vld [vmem:[%s219 + $0x140] sm:$0xff]
      %v608 = vld [vmem:[%s219 + $0x148] sm:$0xff]
      %v609 = vld [vmem:[%s219 + $0x150] sm:$0xff]
      %v610 = vld [vmem:[%s219 + $0x158] sm:$0xff]
      %v611 = vld [vmem:[%s219 + $0x160] sm:$0xff]
      %v612 = vld [vmem:[%s219 + $0x168] sm:$0xff]
      %v613 = vld [vmem:[%s219 + $0x170] sm:$0xff]
      %v614 = vld [vmem:[%s219 + $0x178] sm:$0xff]
      %v615 = vld [vmem:[%s219 + $0x180] sm:$0xff]
      %v616 = vld [vmem:[%s219 + $0x188] sm:$0xff]
      %v617 = vld [vmem:[%s219 + $0x190] sm:$0xff]
      %v618 = vld [vmem:[%s219 + $0x198] sm:$0xff]
      %v619 = vld [vmem:[%s1] sm:$0xff]
      %v620 = vld [vmem:[%s1 + $0x8] sm:$0xff]
      %v621 = vld [vmem:[%s1 + $0x10] sm:$0xff]
      %v622 = vld [vmem:[%s1 + $0x18] sm:$0xff]
      %v623 = vld [vmem:[%s1 + $0x20] sm:$0xf]
      %v624 = vld [vmem:[%s2] sm:$0x1]
      %v626 = vlaneseq
      %v627 = vshrl.u32 %v626, 7
      %v628 = vsub.s32 0, %v627
      %v629 = vrot.slane %v624, %v628
      %v632 = vsel %vm263, %v593, 0
      %v635 = vsel %vm263, %v594, 0
      %v638 = vsel %vm263, %v595, 0
      %v641 = vsel %vm263, %v596, 0
      %v644 = vsel %vm263, %v597, 0
      %v647 = vsel %vm263, %v598, 0
      %v650 = vsel %vm263, %v599, 0
      %v653 = vsel %vm263, %v600, 0
      %v656 = vsel %vm263, %v601, 0
      %v659 = vsel %vm263, %v602, 0
      %v662 = vsel %vm263, %v603, 0
      %v665 = vsel %vm263, %v604, 0
      %v668 = vsel %vm263, %v605, 0
      %v671 = vsel %vm263, %v606, 0
      %v674 = vsel %vm263, %v607, 0
      %v677 = vsel %vm263, %v608, 0
      %v680 = vsel %vm263, %v609, 0
      %v683 = vsel %vm263, %v610, 0
      %v686 = vsel %vm263, %v611, 0
      %v689 = vsel %vm263, %v612, 0
      %v692 = vsel %vm263, %v613, 0
      %v695 = vsel %vm263, %v614, 0
      %v698 = vsel %vm263, %v615, 0
      %v701 = vsel %vm263, %v616, 0
      %v704 = vsel %vm263, %v617, 0
      %v707 = vsel %vm263, %v618, 0
      %v710 = vsel %vm342, %v623, 0
      %712 = vmatprep.subr.mxu0 0.0
      %713 = vmatpush1.msra.mxu0 %v619
      %714 = vmatprep.subr.mxu0 0.0
      %715 = vmatpush1.msra.mxu0 %v620
      %716 = vmatprep.subr.mxu0 0.0
      %717 = vmatpush1.msra.mxu0 %v621
      %718 = vmatprep.subr.mxu0 0.0
      %719 = vmatpush1.msra.mxu0 %v622
      %720 = vmatprep.subr.mxu0 0.0
      %721 = vmatpush1.msra.mxu0 %v710
      %722 = vmatprep.subr.mxu0 0.0
      %723 = vmatpush1.msra.mxu0 0.0
      %724 = vmatprep.subr.mxu0 0.0
      %725 = vmatpush1.msra.mxu0 0.0
      %726 = vmatprep.subr.mxu0 0.0
      %727 = vmatpush1.msra.mxu0 0.0
      %728 = vmatprep.subr.mxu0 0.0
      %729 = vmatpush1.msra.mxu0 0.0
      %730 = vmatprep.subr.mxu0 0.0
      %731 = vmatpush1.msra.mxu0 0.0
      %732 = vmatprep.subr.mxu0 0.0
      %733 = vmatpush1.msra.mxu0 0.0
      %734 = vmatprep.subr.mxu0 0.0
      %735 = vmatpush1.msra.mxu0 0.0
      %736 = vmatprep.subr.mxu0 0.0
      %737 = vmatpush1.msra.mxu0 0.0
      %738 = vmatprep.subr.mxu0 0.0
      %739 = vmatpush1.msra.mxu0 0.0
      %740 = vmatprep.subr.mxu0 0.0
      %741 = vmatpush1.msra.mxu0 0.0
      %742 = vmatprep.subr.mxu0 0.0
      %743 = vmatpush1.msra.mxu0 0.0
      %744 = vmatprep.subr.mxu0 0.0
      %745 = vmatpush1.msra.mxu0 0.0
      %746 = vmatprep.subr.mxu0 0.0
      %747 = vmatpush1.msra.mxu0 0.0
      %748 = vmatprep.subr.mxu0 0.0
      %749 = vmatpush1.msra.mxu0 0.0
      %750 = vmatprep.subr.mxu0 0.0
      %751 = vmatpush1.msra.mxu0 0.0
      %752 = vmatprep.subr.mxu0 0.0
      %753 = vmatpush1.msra.mxu0 0.0
      %754 = vmatprep.subr.mxu0 0.0
      %755 = vmatpush1.msra.mxu0 0.0
      %756 = vmatprep.subr.mxu0 0.0
      %757 = vmatpush1.msra.mxu0 0.0
      %758 = vmatprep.subr.mxu0 0.0
      %759 = vmatpush1.msra.mxu0 0.0
      %760 = vmatprep.subr.mxu0 0.0
      %761 = vmatpush1.msra.mxu0 0.0
      %762 = vmatprep.subr.mxu0 0.0
      %763 = vmatpush1.msra.mxu0 0.0
      %764 = vmatprep.subr.mxu0 0.0
      %765 = vmatpush1.msra.mxu0 0.0
      %766 = vmatprep.subr.mxu0 0.0
      %767 = vmatpush1.msra.mxu0 0.0
      %768 = vmatprep.subr.mxu0 0.0
      %769 = vmatpush1.msra.mxu0 0.0
      %770 = vmatprep.subr.mxu0 0.0
      %771 = vmatpush1.msra.mxu0 0.0
      %772 = vmatprep.subr.mxu0 0.0
      %773 = vmatpush1.msra.mxu0 0.0
      %774 = vmatprep.subr.mxu0 0.0
      %775 = vmatpush1.msra.mxu0 0.0
      %776 = vmatprep.mubr.f32.mxu0 0.0
      %777 = vmatmul.mubr.f32.gmra.mrb[0].mxu0 %v632
      %v778 = vpop.f32.mrb[0].mxu0
      %v779 = vadd.f32 %v629, %v778
      %v780 = vpop.f32.mrb[0].mxu0
      %781 = vmatprep.mubr.f32.mxu0 0.0
      %782 = vmatmul.mubr.f32.gmra.mrb[0].mxu0 %v635
      %v783 = vpop.f32.mrb[0].mxu0
      %v784 = vadd.f32 %v629, %v783
      %v785 = vpop.f32.mrb[0].mxu0
      %786 = vmatprep.mubr.f32.mxu0 0.0
      %787 = vmatmul.mubr.f32.gmra.mrb[0].mxu0 %v638
      %v788 = vpop.f32.mrb[0].mxu0
      %v789 = vadd.f32 %v629, %v788
      %v790 = vpop.f32.mrb[0].mxu0
      %791 = vmatprep.mubr.f32.mxu0 0.0
      %792 = vmatmul.mubr.f32.gmra.mrb[0].mxu0 %v641
      %v793 = vpop.f32.mrb[0].mxu0
      %v794 = vadd.f32 %v629, %v793
      %v795 = vpop.f32.mrb[0].mxu0
      %796 = vmatprep.mubr.f32.mxu0 0.0
      %797 = vmatmul.mubr.f32.gmra.mrb[0].mxu0 %v644
      %v798 = vpop.f32.mrb[0].mxu0
      %v799 = vadd.f32 %v629, %v798
      %v800 = vpop.f32.mrb[0].mxu0
      %801 = vmatprep.mubr.f32.mxu0 0.0
      %802 = vmatmul.mubr.f32.gmra.mrb[0].mxu0 %v647
      %v803 = vpop.f32.mrb[0].mxu0
      %v804 = vadd.f32 %v629, %v803
      %v805 = vpop.f32.mrb[0].mxu0
      %806 = vmatprep.mubr.f32.mxu0 0.0
      %807 = vmatmul.mubr.f32.gmra.mrb[0].mxu0 %v650
      %v808 = vpop.f32.mrb[0].mxu0
      %v809 = vadd.f32 %v629, %v808
      %v810 = vpop.f32.mrb[0].mxu0
      %811 = vmatprep.mubr.f32.mxu0 0.0
      %812 = vmatmul.mubr.f32.gmra.mrb[0].mxu0 %v653
      %v813 = vpop.f32.mrb[0].mxu0
      %v814 = vadd.f32 %v629, %v813
      %v815 = vpop.f32.mrb[0].mxu0
      %816 = vmatprep.mubr.f32.mxu0 0.0
      %817 = vmatmul.mubr.f32.gmra.mrb[0].mxu0 %v656
      %v818 = vpop.f32.mrb[0].mxu0
      %v819 = vadd.f32 %v629, %v818
      %v820 = vpop.f32.mrb[0].mxu0
      %821 = vmatprep.mubr.f32.mxu0 0.0
      %822 = vmatmul.mubr.f32.gmra.mrb[0].mxu0 %v659
      %v823 = vpop.f32.mrb[0].mxu0
      %v824 = vadd.f32 %v629, %v823
      %v825 = vpop.f32.mrb[0].mxu0
      %826 = vmatprep.mubr.f32.mxu0 0.0
      %827 = vmatmul.mubr.f32.gmra.mrb[0].mxu0 %v662
      %v828 = vpop.f32.mrb[0].mxu0
      %v829 = vadd.f32 %v629, %v828
      %v830 = vpop.f32.mrb[0].mxu0
      %831 = vmatprep.mubr.f32.mxu0 0.0
      %832 = vmatmul.mubr.f32.gmra.mrb[0].mxu0 %v665
      %v833 = vpop.f32.mrb[0].mxu0
      %v834 = vadd.f32 %v629, %v833
      %v835 = vpop.f32.mrb[0].mxu0
      %836 = vmatprep.mubr.f32.mxu0 0.0
      %837 = vmatmul.mubr.f32.gmra.mrb[0].mxu0 %v668
      %v838 = vpop.f32.mrb[0].mxu0
      %v839 = vadd.f32 %v629, %v838
      %v840 = vpop.f32.mrb[0].mxu0
      %841 = vmatprep.mubr.f32.mxu0 0.0
      %842 = vmatmul.mubr.f32.gmra.mrb[0].mxu0 %v671
      %v843 = vpop.f32.mrb[0].mxu0
      %v844 = vadd.f32 %v629, %v843
      %v845 = vpop.f32.mrb[0].mxu0
      %846 = vmatprep.mubr.f32.mxu0 0.0
      %847 = vmatmul.mubr.f32.gmra.mrb[0].mxu0 %v674
      %v848 = vpop.f32.mrb[0].mxu0
      %v849 = vadd.f32 %v629, %v848
      %v850 = vpop.f32.mrb[0].mxu0
      %851 = vmatprep.mubr.f32.mxu0 0.0
      %852 = vmatmul.mubr.f32.gmra.mrb[0].mxu0 %v677
      %v853 = vpop.f32.mrb[0].mxu0
      %v854 = vadd.f32 %v629, %v853
      %v855 = vpop.f32.mrb[0].mxu0
      %856 = vmatprep.mubr.f32.mxu0 0.0
      %857 = vmatmul.mubr.f32.gmra.mrb[0].mxu0 %v680
      %v858 = vpop.f32.mrb[0].mxu0
      %v859 = vadd.f32 %v629, %v858
      %v860 = vpop.f32.mrb[0].mxu0
      %861 = vmatprep.mubr.f32.mxu0 0.0
      %862 = vmatmul.mubr.f32.gmra.mrb[0].mxu0 %v683
      %v863 = vpop.f32.mrb[0].mxu0
      %v864 = vadd.f32 %v629, %v863
      %v865 = vpop.f32.mrb[0].mxu0
      %866 = vmatprep.mubr.f32.mxu0 0.0
      %867 = vmatmul.mubr.f32.gmra.mrb[0].mxu0 %v686
      %v868 = vpop.f32.mrb[0].mxu0
      %v869 = vadd.f32 %v629, %v868
      %v870 = vpop.f32.mrb[0].mxu0
      %871 = vmatprep.mubr.f32.mxu0 0.0
      %872 = vmatmul.mubr.f32.gmra.mrb[0].mxu0 %v689
      %v873 = vpop.f32.mrb[0].mxu0
      %v874 = vadd.f32 %v629, %v873
      %v875 = vpop.f32.mrb[0].mxu0
      %876 = vmatprep.mubr.f32.mxu0 0.0
      %877 = vmatmul.mubr.f32.gmra.mrb[0].mxu0 %v692
      %v878 = vpop.f32.mrb[0].mxu0
      %v879 = vadd.f32 %v629, %v878
      %v880 = vpop.f32.mrb[0].mxu0
      %881 = vmatprep.mubr.f32.mxu0 0.0
      %882 = vmatmul.mubr.f32.gmra.mrb[0].mxu0 %v695
      %v883 = vpop.f32.mrb[0].mxu0
      %v884 = vadd.f32 %v629, %v883
      %v885 = vpop.f32.mrb[0].mxu0
      %886 = vmatprep.mubr.f32.mxu0 0.0
      %887 = vmatmul.mubr.f32.gmra.mrb[0].mxu0 %v698
      %v888 = vpop.f32.mrb[0].mxu0
      %v889 = vadd.f32 %v629, %v888
      %v890 = vpop.f32.mrb[0].mxu0
      %891 = vmatprep.mubr.f32.mxu0 0.0
      %892 = vmatmul.mubr.f32.gmra.mrb[0].mxu0 %v701
      %v893 = vpop.f32.mrb[0].mxu0
      %v894 = vadd.f32 %v629, %v893
      %v895 = vpop.f32.mrb[0].mxu0
      %896 = vmatprep.mubr.f32.mxu0 0.0
      %897 = vmatmul.mubr.f32.gmra.mrb[0].mxu0 %v704
      %v898 = vpop.f32.mrb[0].mxu0
      %v899 = vadd.f32 %v629, %v898
      %v900 = vpop.f32.mrb[0].mxu0
      %901 = vmatprep.mubr.f32.mxu0 0.0
      %902 = vmatmul.mubr.f32.gmra.mrb[0].mxu0 %v707
      %v903 = vpop.f32.mrb[0].mxu0
      %v904 = vadd.f32 %v629, %v903
      %v905 = vpop.f32.mrb[0].mxu0
      %906 = vdwg.mxu0
      %v907 = vmax.f32 %v779, 0.0
      %v908 = vmax.f32 %v784, 0.0
      %v909 = vmax.f32 %v789, 0.0
      %v910 = vmax.f32 %v794, 0.0
      %v911 = vmax.f32 %v799, 0.0
      %v912 = vmax.f32 %v804, 0.0
      %v913 = vmax.f32 %v809, 0.0
      %v914 = vmax.f32 %v814, 0.0
      %v915 = vmax.f32 %v819, 0.0
      %v916 = vmax.f32 %v824, 0.0
      %v917 = vmax.f32 %v829, 0.0
      %v918 = vmax.f32 %v834, 0.0
      %v919 = vmax.f32 %v839, 0.0
      %v920 = vmax.f32 %v844, 0.0
      %v921 = vmax.f32 %v849, 0.0
      %v922 = vmax.f32 %v854, 0.0
      %v923 = vmax.f32 %v859, 0.0
      %v924 = vmax.f32 %v864, 0.0
      %v925 = vmax.f32 %v869, 0.0
      %v926 = vmax.f32 %v874, 0.0
      %v927 = vmax.f32 %v879, 0.0
      %v928 = vmax.f32 %v884, 0.0
      %v929 = vmax.f32 %v889, 0.0
      %v930 = vmax.f32 %v894, 0.0
      %v931 = vmax.f32 %v899, 0.0
      %v932 = vmax.f32 %v904, 0.0
      %933 = vst [vmem:[#allocation2 + $0xd0] sm:$0xff] %v907
      %934 = vst [vmem:[#allocation2 + $0xd8] sm:$0xff] %v908
      %935 = vst [vmem:[#allocation2 + $0xe0] sm:$0xff] %v909
      %936 = vst [vmem:[#allocation2 + $0xe8] sm:$0xff] %v910
      %937 = vst [vmem:[#allocation2 + $0xf0] sm:$0xff] %v911
      %938 = vst [vmem:[#allocation2 + $0xf8] sm:$0xff] %v912
      %939 = vst [vmem:[#allocation2 + $0x100] sm:$0xff] %v913
      %940 = vst [vmem:[#allocation2 + $0x108] sm:$0xff] %v914
      %941 = vst [vmem:[#allocation2 + $0x110] sm:$0xff] %v915
      %942 = vst [vmem:[#allocation2 + $0x118] sm:$0xff] %v916
      %943 = vst [vmem:[#allocation2 + $0x120] sm:$0xff] %v917
      %944 = vst [vmem:[#allocation2 + $0x128] sm:$0xff] %v918
      %945 = vst [vmem:[#allocation2 + $0x130] sm:$0xff] %v919
      %946 = vst [vmem:[#allocation2 + $0x138] sm:$0xff] %v920
      %947 = vst [vmem:[#allocation2 + $0x140] sm:$0xff] %v921
      %948 = vst [vmem:[#allocation2 + $0x148] sm:$0xff] %v922
      %949 = vst [vmem:[#allocation2 + $0x150] sm:$0xff] %v923
      %950 = vst [vmem:[#allocation2 + $0x158] sm:$0xff] %v924
      %951 = vst [vmem:[#allocation2 + $0x160] sm:$0xff] %v925
      %952 = vst [vmem:[#allocation2 + $0x168] sm:$0xff] %v926
      %953 = vst [vmem:[#allocation2 + $0x170] sm:$0xff] %v927
      %954 = vst [vmem:[#allocation2 + $0x178] sm:$0xff] %v928
      %955 = vst [vmem:[#allocation2 + $0x180] sm:$0xff] %v929
      %956 = vst [vmem:[#allocation2 + $0x188] sm:$0xff] %v930
      %957 = vst [vmem:[#allocation2 + $0x190] sm:$0xff] %v931
      %958 = vst [vmem:[#allocation2 + $0x198] sm:$0xff] %v932
      %v959 = vld [vmem:[#allocation2] sm:$0xff]
      %v960 = vld [vmem:[#allocation2 + $0x8] sm:$0xff]
      %v961 = vld [vmem:[#allocation2 + $0x10] sm:$0xff]
      %v962 = vld [vmem:[#allocation2 + $0x18] sm:$0xff]
      %v963 = vld [vmem:[#allocation2 + $0x20] sm:$0xff]
      %v964 = vld [vmem:[#allocation2 + $0x28] sm:$0xff]
      %v965 = vld [vmem:[#allocation2 + $0x30] sm:$0xff]
      %v966 = vld [vmem:[#allocation2 + $0x38] sm:$0xff]
      %v967 = vld [vmem:[#allocation2 + $0x40] sm:$0xff]
      %v968 = vld [vmem:[#allocation2 + $0x48] sm:$0xff]
      %v969 = vld [vmem:[#allocation2 + $0x50] sm:$0xff]
      %v970 = vld [vmem:[#allocation2 + $0x58] sm:$0xff]
      %v971 = vld [vmem:[#allocation2 + $0x60] sm:$0xff]
      %v972 = vld [vmem:[#allocation2 + $0x68] sm:$0xff]
      %v973 = vld [vmem:[#allocation2 + $0x70] sm:$0xff]
      %v974 = vld [vmem:[#allocation2 + $0x78] sm:$0xff]
      %v975 = vld [vmem:[#allocation2 + $0x80] sm:$0xff]
      %v976 = vld [vmem:[#allocation2 + $0x88] sm:$0xff]
      %v977 = vld [vmem:[#allocation2 + $0x90] sm:$0xff]
      %v978 = vld [vmem:[#allocation2 + $0x98] sm:$0xff]
      %v979 = vld [vmem:[#allocation2 + $0xa0] sm:$0xff]
      %v980 = vld [vmem:[#allocation2 + $0xa8] sm:$0xff]
      %v981 = vld [vmem:[#allocation2 + $0xb0] sm:$0xff]
      %v982 = vld [vmem:[#allocation2 + $0xb8] sm:$0xff]
      %v983 = vld [vmem:[#allocation2 + $0xc0] sm:$0xff]
      %v984 = vld [vmem:[#allocation2 + $0xc8] sm:$0xff]
      %v985 = vld [vmem:[#allocation2 + $0xd0] sm:$0xff]
      %v986 = vld [vmem:[#allocation2 + $0xd8] sm:$0xff]
      %v987 = vld [vmem:[#allocation2 + $0xe0] sm:$0xff]
      %v988 = vld [vmem:[#allocation2 + $0xe8] sm:$0xff]
      %v989 = vld [vmem:[#allocation2 + $0xf0] sm:$0xff]
      %v990 = vld [vmem:[#allocation2 + $0xf8] sm:$0xff]
      %v991 = vld [vmem:[#allocation2 + $0x100] sm:$0xff]
      %v992 = vld [vmem:[#allocation2 + $0x108] sm:$0xff]
      %v993 = vld [vmem:[#allocation2 + $0x110] sm:$0xff]
      %v994 = vld [vmem:[#allocation2 + $0x118] sm:$0xff]
      %v995 = vld [vmem:[#allocation2 + $0x120] sm:$0xff]
      %v996 = vld [vmem:[#allocation2 + $0x128] sm:$0xff]
      %v997 = vld [vmem:[#allocation2 + $0x130] sm:$0xff]
      %v998 = vld [vmem:[#allocation2 + $0x138] sm:$0xff]
      %v999 = vld [vmem:[#allocation2 + $0x140] sm:$0xff]
      %v1000 = vld [vmem:[#allocation2 + $0x148] sm:$0xff]
      %v1001 = vld [vmem:[#allocation2 + $0x150] sm:$0xff]
      %v1002 = vld [vmem:[#allocation2 + $0x158] sm:$0xff]
      %v1003 = vld [vmem:[#allocation2 + $0x160] sm:$0xff]
      %v1004 = vld [vmem:[#allocation2 + $0x168] sm:$0xff]
      %v1005 = vld [vmem:[#allocation2 + $0x170] sm:$0xff]
      %v1006 = vld [vmem:[#allocation2 + $0x178] sm:$0xff]
      %v1007 = vld [vmem:[%s3] sm:$0xff]
      %v1008 = vld [vmem:[%s3 + $0x8] sm:$0xff]
      %v1009 = vld [vmem:[%s3 + $0x10] sm:$0xff]
      %v1010 = vld [vmem:[%s3 + $0x18] sm:$0xff]
      %v1011 = vld [vmem:[%s3 + $0x20] sm:$0xff]
      %v1012 = vld [vmem:[%s3 + $0x28] sm:$0xff]
      %v1013 = vld [vmem:[%s3 + $0x30] sm:$0xff]
      %v1014 = vld [vmem:[%s3 + $0x38] sm:$0xff]
      %v1015 = vld [vmem:[%s3 + $0x40] sm:$0xff]
      %v1016 = vld [vmem:[%s3 + $0x48] sm:$0xff]
      %v1017 = vld [vmem:[%s3 + $0x50] sm:$0xff]
      %v1018 = vld [vmem:[%s3 + $0x58] sm:$0xff]
      %v1019 = vld [vmem:[%s3 + $0x60] sm:$0xff]
      %v1020 = vld [vmem:[%s3 + $0x68] sm:$0xff]
      %v1021 = vld [vmem:[%s3 + $0x70] sm:$0xff]
      %v1022 = vld [vmem:[%s3 + $0x78] sm:$0xff]
      %v1023 = vld [vmem:[#allocation2 + $0x180] sm:$0xff]
      %v1024 = vld [vmem:[#allocation2 + $0x188] sm:$0xff]
      %s1025 = scalar_lea.vmem %s3, 128
      %v1026 = vld [vmem:[%s1025] sm:$0xff]
      %v1027 = vld [vmem:[%s1025 + $0x8] sm:$0xff]
      %v1028 = vld [vmem:[%s1025 + $0x10] sm:$0xff]
      %v1029 = vld [vmem:[%s1025 + $0x18] sm:$0xff]
      %v1030 = vld [vmem:[%s1025 + $0x20] sm:$0xff]
      %v1031 = vld [vmem:[%s1025 + $0x28] sm:$0xff]
      %v1032 = vld [vmem:[%s1025 + $0x30] sm:$0xff]
      %v1033 = vld [vmem:[%s1025 + $0x38] sm:$0xff]
      %v1034 = vld [vmem:[%s1025 + $0x40] sm:$0xff]
      %v1035 = vld [vmem:[%s1025 + $0x48] sm:$0xff]
      %v1036 = vld [vmem:[%s1025 + $0x50] sm:$0xff]
      %v1037 = vld [vmem:[%s1025 + $0x58] sm:$0xff]
      %v1038 = vld [vmem:[%s1025 + $0x60] sm:$0xff]
      %v1039 = vld [vmem:[%s1025 + $0x68] sm:$0xff]
      %v1040 = vld [vmem:[%s1025 + $0x70] sm:$0xff]
      %v1041 = vld [vmem:[%s1025 + $0x78] sm:$0xff]
      %1042 = vmatprep.subr.mxu0 0.0
      %1043 = vmatpush1.msra.mxu0 %v1026
      %1044 = vmatprep.subr.mxu0 0.0
      %1045 = vmatpush1.msra.mxu0 %v1027
      %1046 = vmatprep.subr.mxu0 0.0
      %1047 = vmatpush1.msra.mxu0 %v1028
      %1048 = vmatprep.subr.mxu0 0.0
      %1049 = vmatpush1.msra.mxu0 %v1029
      %1050 = vmatprep.subr.mxu0 0.0
      %1051 = vmatpush1.msra.mxu0 %v1030
      %1052 = vmatprep.subr.mxu0 0.0
      %1053 = vmatpush1.msra.mxu0 %v1031
      %1054 = vmatprep.subr.mxu0 0.0
      %1055 = vmatpush1.msra.mxu0 %v1032
      %1056 = vmatprep.subr.mxu0 0.0
      %1057 = vmatpush1.msra.mxu0 %v1033
      %1058 = vmatprep.subr.mxu0 0.0
      %1059 = vmatpush1.msra.mxu0 %v1034
      %1060 = vmatprep.subr.mxu0 0.0
      %1061 = vmatpush1.msra.mxu0 %v1035
      %1062 = vmatprep.subr.mxu0 0.0
      %1063 = vmatpush1.msra.mxu0 %v1036
      %1064 = vmatprep.subr.mxu0 0.0
      %1065 = vmatpush1.msra.mxu0 %v1037
      %1066 = vmatprep.subr.mxu0 0.0
      %1067 = vmatpush1.msra.mxu0 %v1038
      %1068 = vmatprep.subr.mxu0 0.0
      %1069 = vmatpush1.msra.mxu0 %v1039
      %1070 = vmatprep.subr.mxu0 0.0
      %1071 = vmatpush1.msra.mxu0 %v1040
      %1072 = vmatprep.subr.mxu0 0.0
      %1073 = vmatpush1.msra.mxu0 %v1041
      %1074 = vmatprep.subr.mxu0 0.0
      %1075 = vmatpush1.msra.mxu0 0.0
      %1076 = vmatprep.subr.mxu0 0.0
      %1077 = vmatpush1.msra.mxu0 0.0
      %1078 = vmatprep.subr.mxu0 0.0
      %1079 = vmatpush1.msra.mxu0 0.0
      %1080 = vmatprep.subr.mxu0 0.0
      %1081 = vmatpush1.msra.mxu0 0.0
      %1082 = vmatprep.subr.mxu0 0.0
      %1083 = vmatpush1.msra.mxu0 0.0
      %1084 = vmatprep.subr.mxu0 0.0
      %1085 = vmatpush1.msra.mxu0 0.0
      %1086 = vmatprep.subr.mxu0 0.0
      %1087 = vmatpush1.msra.mxu0 0.0
      %1088 = vmatprep.subr.mxu0 0.0
      %1089 = vmatpush1.msra.mxu0 0.0
      %1090 = vmatprep.subr.mxu0 0.0
      %1091 = vmatpush1.msra.mxu0 0.0
      %1092 = vmatprep.subr.mxu0 0.0
      %1093 = vmatpush1.msra.mxu0 0.0
      %1094 = vmatprep.subr.mxu0 0.0
      %1095 = vmatpush1.msra.mxu0 0.0
      %1096 = vmatprep.subr.mxu0 0.0
      %1097 = vmatpush1.msra.mxu0 0.0
      %1098 = vmatprep.subr.mxu0 0.0
      %1099 = vmatpush1.msra.mxu0 0.0
      %1100 = vmatprep.subr.mxu0 0.0
      %1101 = vmatpush1.msra.mxu0 0.0
      %1102 = vmatprep.subr.mxu0 0.0
      %1103 = vmatpush1.msra.mxu0 0.0
      %1104 = vmatprep.subr.mxu0 0.0
      %1105 = vmatpush1.msra.mxu0 0.0
      %1106 = vmatprep.mubr.f32.mxu0 0.0
      %1107 = vmatmul.mubr.f32.gmra.mrb[0].mxu0 %v961
      %v1108 = vpop.f32.mrb[0].mxu0
      %v1109 = vadd.f32 0.0, %v1108
      %v1110 = vpop.f32.mrb[0].mxu0
      %1111 = vmatprep.mubr.f32.mxu0 0.0
      %1112 = vmatmul.mubr.f32.gmra.mrb[0].mxu0 %v962
      %v1113 = vpop.f32.mrb[0].mxu0
      %v1114 = vadd.f32 0.0, %v1113
      %v1115 = vpop.f32.mrb[0].mxu0
      %1116 = vmatprep.mubr.f32.mxu0 0.0
      %1117 = vmatmul.mubr.f32.gmra.mrb[0].mxu0 %v963
      %v1118 = vpop.f32.mrb[0].mxu0
      %v1119 = vadd.f32 0.0, %v1118
      %v1120 = vpop.f32.mrb[0].mxu0
      %1121 = vmatprep.mubr.f32.mxu0 0.0
      %1122 = vmatmul.mubr.f32.gmra.mrb[0].mxu0 %v964
      %v1123 = vpop.f32.mrb[0].mxu0
      %v1124 = vadd.f32 0.0, %v1123
      %v1125 = vpop.f32.mrb[0].mxu0
      %1126 = vmatprep.mubr.f32.mxu0 0.0
      %1127 = vmatmul.mubr.f32.gmra.mrb[0].mxu0 %v965
      %v1128 = vpop.f32.mrb[0].mxu0
      %v1129 = vadd.f32 0.0, %v1128
      %v1130 = vpop.f32.mrb[0].mxu0
      %1131 = vmatprep.mubr.f32.mxu0 0.0
      %1132 = vmatmul.mubr.f32.gmra.mrb[0].mxu0 %v966
      %v1133 = vpop.f32.mrb[0].mxu0
      %v1134 = vadd.f32 0.0, %v1133
      %v1135 = vpop.f32.mrb[0].mxu0
      %1136 = vmatprep.mubr.f32.mxu0 0.0
      %1137 = vmatmul.mubr.f32.gmra.mrb[0].mxu0 %v967
      %v1138 = vpop.f32.mrb[0].mxu0
      %v1139 = vadd.f32 0.0, %v1138
      %v1140 = vpop.f32.mrb[0].mxu0
      %1141 = vmatprep.mubr.f32.mxu0 0.0
      %1142 = vmatmul.mubr.f32.gmra.mrb[0].mxu0 %v968
      %v1143 = vpop.f32.mrb[0].mxu0
      %v1144 = vadd.f32 0.0, %v1143
      %v1145 = vpop.f32.mrb[0].mxu0
      %1146 = vmatprep.mubr.f32.mxu0 0.0
      %1147 = vmatmul.mubr.f32.gmra.mrb[0].mxu0 %v969
      %v1148 = vpop.f32.mrb[0].mxu0
      %v1149 = vadd.f32 0.0, %v1148
      %v1150 = vpop.f32.mrb[0].mxu0
      %1151 = vmatprep.mubr.f32.mxu0 0.0
      %1152 = vmatmul.mubr.f32.gmra.mrb[0].mxu0 %v970
      %v1153 = vpop.f32.mrb[0].mxu0
      %v1154 = vadd.f32 0.0, %v1153
      %v1155 = vpop.f32.mrb[0].mxu0
      %1156 = vmatprep.mubr.f32.mxu0 0.0
      %1157 = vmatmul.mubr.f32.gmra.mrb[0].mxu0 %v971
      %v1158 = vpop.f32.mrb[0].mxu0
      %v1159 = vadd.f32 0.0, %v1158
      %v1160 = vpop.f32.mrb[0].mxu0
      %1161 = vmatprep.mubr.f32.mxu0 0.0
      %1162 = vmatmul.mubr.f32.gmra.mrb[0].mxu0 %v972
      %v1163 = vpop.f32.mrb[0].mxu0
      %v1164 = vadd.f32 0.0, %v1163
      %v1165 = vpop.f32.mrb[0].mxu0
      %1166 = vmatprep.mubr.f32.mxu0 0.0
      %1167 = vmatmul.mubr.f32.gmra.mrb[0].mxu0 %v973
      %v1168 = vpop.f32.mrb[0].mxu0
      %v1169 = vadd.f32 0.0, %v1168
      %v1170 = vpop.f32.mrb[0].mxu0
      %1171 = vmatprep.mubr.f32.mxu0 0.0
      %1172 = vmatmul.mubr.f32.gmra.mrb[0].mxu0 %v974
      %v1173 = vpop.f32.mrb[0].mxu0
      %v1174 = vadd.f32 0.0, %v1173
      %v1175 = vpop.f32.mrb[0].mxu0
      %1176 = vmatprep.mubr.f32.mxu0 0.0
      %1177 = vmatmul.mubr.f32.gmra.mrb[0].mxu0 %v975
      %v1178 = vpop.f32.mrb[0].mxu0
      %v1179 = vadd.f32 0.0, %v1178
      %v1180 = vpop.f32.mrb[0].mxu0
      %1181 = vmatprep.mubr.f32.mxu0 0.0
      %1182 = vmatmul.mubr.f32.gmra.mrb[0].mxu0 %v976
      %v1183 = vpop.f32.mrb[0].mxu0
      %v1184 = vadd.f32 0.0, %v1183
      %v1185 = vpop.f32.mrb[0].mxu0
      %1186 = vmatprep.mubr.f32.mxu0 0.0
      %1187 = vmatmul.mubr.f32.gmra.mrb[0].mxu0 %v977
      %v1188 = vpop.f32.mrb[0].mxu0
      %v1189 = vadd.f32 0.0, %v1188
      %v1190 = vpop.f32.mrb[0].mxu0
      %1191 = vmatprep.mubr.f32.mxu0 0.0
      %1192 = vmatmul.mubr.f32.gmra.mrb[0].mxu0 %v978
      %v1193 = vpop.f32.mrb[0].mxu0
      %v1194 = vadd.f32 0.0, %v1193
      %v1195 = vpop.f32.mrb[0].mxu0
      %1196 = vmatprep.mubr.f32.mxu0 0.0
      %1197 = vmatmul.mubr.f32.gmra.mrb[0].mxu0 %v979
      %v1198 = vpop.f32.mrb[0].mxu0
      %v1199 = vadd.f32 0.0, %v1198
      %v1200 = vpop.f32.mrb[0].mxu0
      %1201 = vmatprep.mubr.f32.mxu0 0.0
      %1202 = vmatmul.mubr.f32.gmra.mrb[0].mxu0 %v980
      %v1203 = vpop.f32.mrb[0].mxu0
      %v1204 = vadd.f32 0.0, %v1203
      %v1205 = vpop.f32.mrb[0].mxu0
      %1206 = vmatprep.mubr.f32.mxu0 0.0
      %1207 = vmatmul.mubr.f32.gmra.mrb[0].mxu0 %v981
      %v1208 = vpop.f32.mrb[0].mxu0
      %v1209 = vadd.f32 0.0, %v1208
      %v1210 = vpop.f32.mrb[0].mxu0
      %1211 = vmatprep.mubr.f32.mxu0 0.0
      %1212 = vmatmul.mubr.f32.gmra.mrb[0].mxu0 %v982
      %v1213 = vpop.f32.mrb[0].mxu0
      %v1214 = vadd.f32 0.0, %v1213
      %v1215 = vpop.f32.mrb[0].mxu0
      %1216 = vmatprep.mubr.f32.mxu0 0.0
      %1217 = vmatmul.mubr.f32.gmra.mrb[0].mxu0 %v983
      %v1218 = vpop.f32.mrb[0].mxu0
      %v1219 = vadd.f32 0.0, %v1218
      %v1220 = vpop.f32.mrb[0].mxu0
      %1221 = vmatprep.mubr.f32.mxu0 0.0
      %1222 = vmatmul.mubr.f32.gmra.mrb[0].mxu0 %v984
      %v1223 = vpop.f32.mrb[0].mxu0
      %v1224 = vadd.f32 0.0, %v1223
      %v1225 = vpop.f32.mrb[0].mxu0
      %1226 = vmatprep.mubr.f32.mxu0 0.0
      %1227 = vmatmul.mubr.f32.gmra.mrb[0].mxu0 %v985
      %v1228 = vpop.f32.mrb[0].mxu0
      %v1229 = vadd.f32 0.0, %v1228
      %v1230 = vpop.f32.mrb[0].mxu0
      %1231 = vmatprep.mubr.f32.mxu0 0.0
      %1232 = vmatmul.mubr.f32.gmra.mrb[0].mxu0 %v986
      %v1233 = vpop.f32.mrb[0].mxu0
      %v1234 = vadd.f32 0.0, %v1233
      %v1235 = vpop.f32.mrb[0].mxu0
      %1236 = vmatprep.mubr.f32.mxu0 0.0
      %1237 = vmatmul.mubr.f32.gmra.mrb[0].mxu0 %v987
      %v1238 = vpop.f32.mrb[0].mxu0
      %v1239 = vadd.f32 0.0, %v1238
      %v1240 = vpop.f32.mrb[0].mxu0
      %1241 = vmatprep.mubr.f32.mxu0 0.0
      %1242 = vmatmul.mubr.f32.gmra.mrb[0].mxu0 %v988
      %v1243 = vpop.f32.mrb[0].mxu0
      %v1244 = vadd.f32 0.0, %v1243
      %v1245 = vpop.f32.mrb[0].mxu0
      %1246 = vmatprep.mubr.f32.mxu0 0.0
      %1247 = vmatmul.mubr.f32.gmra.mrb[0].mxu0 %v989
      %v1248 = vpop.f32.mrb[0].mxu0
      %v1249 = vadd.f32 0.0, %v1248
      %v1250 = vpop.f32.mrb[0].mxu0
      %1251 = vmatprep.mubr.f32.mxu0 0.0
      %1252 = vmatmul.mubr.f32.gmra.mrb[0].mxu0 %v990
      %v1253 = vpop.f32.mrb[0].mxu0
      %v1254 = vadd.f32 0.0, %v1253
      %v1255 = vpop.f32.mrb[0].mxu0
      %1256 = vmatprep.mubr.f32.mxu0 0.0
      %1257 = vmatmul.mubr.f32.gmra.mrb[0].mxu0 %v991
      %v1258 = vpop.f32.mrb[0].mxu0
      %v1259 = vadd.f32 0.0, %v1258
      %v1260 = vpop.f32.mrb[0].mxu0
      %1261 = vmatprep.mubr.f32.mxu0 0.0
      %1262 = vmatmul.mubr.f32.gmra.mrb[0].mxu0 %v992
      %v1263 = vpop.f32.mrb[0].mxu0
      %v1264 = vadd.f32 0.0, %v1263
      %v1265 = vpop.f32.mrb[0].mxu0
      %1266 = vmatprep.mubr.f32.mxu0 0.0
      %1267 = vmatmul.mubr.f32.gmra.mrb[0].mxu0 %v993
      %v1268 = vpop.f32.mrb[0].mxu0
      %v1269 = vadd.f32 0.0, %v1268
      %v1270 = vpop.f32.mrb[0].mxu0
      %1271 = vmatprep.mubr.f32.mxu0 0.0
      %1272 = vmatmul.mubr.f32.gmra.mrb[0].mxu0 %v994
      %v1273 = vpop.f32.mrb[0].mxu0
      %v1274 = vadd.f32 0.0, %v1273
      %v1275 = vpop.f32.mrb[0].mxu0
      %1276 = vmatprep.mubr.f32.mxu0 0.0
      %1277 = vmatmul.mubr.f32.gmra.mrb[0].mxu0 %v995
      %v1278 = vpop.f32.mrb[0].mxu0
      %v1279 = vadd.f32 0.0, %v1278
      %v1280 = vpop.f32.mrb[0].mxu0
      %1281 = vmatprep.mubr.f32.mxu0 0.0
      %1282 = vmatmul.mubr.f32.gmra.mrb[0].mxu0 %v996
      %v1283 = vpop.f32.mrb[0].mxu0
      %v1284 = vadd.f32 0.0, %v1283
      %v1285 = vpop.f32.mrb[0].mxu0
      %1286 = vmatprep.mubr.f32.mxu0 0.0
      %1287 = vmatmul.mubr.f32.gmra.mrb[0].mxu0 %v997
      %v1288 = vpop.f32.mrb[0].mxu0
      %v1289 = vadd.f32 0.0, %v1288
      %v1290 = vpop.f32.mrb[0].mxu0
      %1291 = vmatprep.mubr.f32.mxu0 0.0
      %1292 = vmatmul.mubr.f32.gmra.mrb[0].mxu0 %v998
      %v1293 = vpop.f32.mrb[0].mxu0
      %v1294 = vadd.f32 0.0, %v1293
      %v1295 = vpop.f32.mrb[0].mxu0
      %1296 = vmatprep.mubr.f32.mxu0 0.0
      %1297 = vmatmul.mubr.f32.gmra.mrb[0].mxu0 %v999
      %v1298 = vpop.f32.mrb[0].mxu0
      %v1299 = vadd.f32 0.0, %v1298
      %v1300 = vpop.f32.mrb[0].mxu0
      %1301 = vmatprep.mubr.f32.mxu0 0.0
      %1302 = vmatmul.mubr.f32.gmra.mrb[0].mxu0 %v1000
      %v1303 = vpop.f32.mrb[0].mxu0
      %v1304 = vadd.f32 0.0, %v1303
      %v1305 = vpop.f32.mrb[0].mxu0
      %1306 = vmatprep.mubr.f32.mxu0 0.0
      %1307 = vmatmul.mubr.f32.gmra.mrb[0].mxu0 %v1001
      %v1308 = vpop.f32.mrb[0].mxu0
      %v1309 = vadd.f32 0.0, %v1308
      %v1310 = vpop.f32.mrb[0].mxu0
      %1311 = vmatprep.mubr.f32.mxu0 0.0
      %1312 = vmatmul.mubr.f32.gmra.mrb[0].mxu0 %v1002
      %v1313 = vpop.f32.mrb[0].mxu0
      %v1314 = vadd.f32 0.0, %v1313
      %v1315 = vpop.f32.mrb[0].mxu0
      %1316 = vmatprep.mubr.f32.mxu0 0.0
      %1317 = vmatmul.mubr.f32.gmra.mrb[0].mxu0 %v1003
      %v1318 = vpop.f32.mrb[0].mxu0
      %v1319 = vadd.f32 0.0, %v1318
      %v1320 = vpop.f32.mrb[0].mxu0
      %1321 = vmatprep.mubr.f32.mxu0 0.0
      %1322 = vmatmul.mubr.f32.gmra.mrb[0].mxu0 %v1004
      %v1323 = vpop.f32.mrb[0].mxu0
      %v1324 = vadd.f32 0.0, %v1323
      %v1325 = vpop.f32.mrb[0].mxu0
      %1326 = vmatprep.mubr.f32.mxu0 0.0
      %1327 = vmatmul.mubr.f32.gmra.mrb[0].mxu0 %v1005
      %v1328 = vpop.f32.mrb[0].mxu0
      %v1329 = vadd.f32 0.0, %v1328
      %v1330 = vpop.f32.mrb[0].mxu0
      %1331 = vmatprep.mubr.f32.mxu0 0.0
      %1332 = vmatmul.mubr.f32.gmra.mrb[0].mxu0 %v1006
      %v1333 = vpop.f32.mrb[0].mxu0
      %v1334 = vadd.f32 0.0, %v1333
      %v1335 = vpop.f32.mrb[0].mxu0
      %1336 = vmatprep.mubr.f32.mxu0 0.0
      %1337 = vmatmul.mubr.f32.gmra.mrb[0].mxu0 %v1023
      %v1338 = vpop.f32.mrb[0].mxu0
      %v1339 = vadd.f32 0.0, %v1338
      %v1340 = vpop.f32.mrb[0].mxu0
      %1341 = vmatprep.mubr.f32.mxu0 0.0
      %1342 = vmatmul.mubr.f32.gmra.mrb[0].mxu0 %v1024
      %v1343 = vpop.f32.mrb[0].mxu0
      %v1344 = vadd.f32 0.0, %v1343
      %v1345 = vpop.f32.mrb[0].mxu0
      %1346 = vdwg.mxu0
      %1347 = vmatprep.subr.mxu0 0.0
      %1348 = vmatpush1.msra.mxu0 %v1007
      %1349 = vmatprep.subr.mxu0 0.0
      %1350 = vmatpush1.msra.mxu0 %v1008
      %1351 = vmatprep.subr.mxu0 0.0
      %1352 = vmatpush1.msra.mxu0 %v1009
      %1353 = vmatprep.subr.mxu0 0.0
      %1354 = vmatpush1.msra.mxu0 %v1010
      %1355 = vmatprep.subr.mxu0 0.0
      %1356 = vmatpush1.msra.mxu0 %v1011
      %1357 = vmatprep.subr.mxu0 0.0
      %1358 = vmatpush1.msra.mxu0 %v1012
      %1359 = vmatprep.subr.mxu0 0.0
      %1360 = vmatpush1.msra.mxu0 %v1013
      %1361 = vmatprep.subr.mxu0 0.0
      %1362 = vmatpush1.msra.mxu0 %v1014
      %1363 = vmatprep.subr.mxu0 0.0
      %1364 = vmatpush1.msra.mxu0 %v1015
      %1365 = vmatprep.subr.mxu0 0.0
      %1366 = vmatpush1.msra.mxu0 %v1016
      %1367 = vmatprep.subr.mxu0 0.0
      %1368 = vmatpush1.msra.mxu0 %v1017
      %1369 = vmatprep.subr.mxu0 0.0
      %1370 = vmatpush1.msra.mxu0 %v1018
      %1371 = vmatprep.subr.mxu0 0.0
      %1372 = vmatpush1.msra.mxu0 %v1019
      %1373 = vmatprep.subr.mxu0 0.0
      %1374 = vmatpush1.msra.mxu0 %v1020
      %1375 = vmatprep.subr.mxu0 0.0
      %1376 = vmatpush1.msra.mxu0 %v1021
      %1377 = vmatprep.subr.mxu0 0.0
      %1378 = vmatpush1.msra.mxu0 %v1022
      %1379 = vmatprep.subr.mxu0 0.0
      %1380 = vmatpush1.msra.mxu0 0.0
      %1381 = vmatprep.subr.mxu0 0.0
      %1382 = vmatpush1.msra.mxu0 0.0
      %1383 = vmatprep.subr.mxu0 0.0
      %1384 = vmatpush1.msra.mxu0 0.0
      %1385 = vmatprep.subr.mxu0 0.0
      %1386 = vmatpush1.msra.mxu0 0.0
      %1387 = vmatprep.subr.mxu0 0.0
      %1388 = vmatpush1.msra.mxu0 0.0
      %1389 = vmatprep.subr.mxu0 0.0
      %1390 = vmatpush1.msra.mxu0 0.0
      %1391 = vmatprep.subr.mxu0 0.0
      %1392 = vmatpush1.msra.mxu0 0.0
      %1393 = vmatprep.subr.mxu0 0.0
      %1394 = vmatpush1.msra.mxu0 0.0
      %1395 = vmatprep.subr.mxu0 0.0
      %1396 = vmatpush1.msra.mxu0 0.0
      %1397 = vmatprep.subr.mxu0 0.0
      %1398 = vmatpush1.msra.mxu0 0.0
      %1399 = vmatprep.subr.mxu0 0.0
      %1400 = vmatpush1.msra.mxu0 0.0
      %1401 = vmatprep.subr.mxu0 0.0
      %1402 = vmatpush1.msra.mxu0 0.0
      %1403 = vmatprep.subr.mxu0 0.0
      %1404 = vmatpush1.msra.mxu0 0.0
      %1405 = vmatprep.subr.mxu0 0.0
      %1406 = vmatpush1.msra.mxu0 0.0
      %1407 = vmatprep.subr.mxu0 0.0
      %1408 = vmatpush1.msra.mxu0 0.0
      %1409 = vmatprep.subr.mxu0 0.0
      %1410 = vmatpush1.msra.mxu0 0.0
      %1411 = vmatprep.mubr.f32.mxu0 0.0
      %1412 = vmatmul.mubr.f32.gmra.mrb[0].mxu0 %v959
      %v1413 = vpop.f32.mrb[0].mxu0
      %v1414 = vadd.f32 %v1109, %v1413
      %v1415 = vpop.f32.mrb[0].mxu0
      %1416 = vmatprep.mubr.f32.mxu0 0.0
      %1417 = vmatmul.mubr.f32.gmra.mrb[0].mxu0 %v960
      %v1418 = vpop.f32.mrb[0].mxu0
      %v1419 = vadd.f32 %v1114, %v1418
      %v1420 = vpop.f32.mrb[0].mxu0
      %1421 = vmatprep.mubr.f32.mxu0 0.0
      %1422 = vmatmul.mubr.f32.gmra.mrb[0].mxu0 %v961
      %v1423 = vpop.f32.mrb[0].mxu0
      %v1424 = vadd.f32 %v1119, %v1423
      %v1425 = vpop.f32.mrb[0].mxu0
      %1426 = vmatprep.mubr.f32.mxu0 0.0
      %1427 = vmatmul.mubr.f32.gmra.mrb[0].mxu0 %v962
      %v1428 = vpop.f32.mrb[0].mxu0
      %v1429 = vadd.f32 %v1124, %v1428
      %v1430 = vpop.f32.mrb[0].mxu0
      %1431 = vmatprep.mubr.f32.mxu0 0.0
      %1432 = vmatmul.mubr.f32.gmra.mrb[0].mxu0 %v963
      %v1433 = vpop.f32.mrb[0].mxu0
      %v1434 = vadd.f32 %v1129, %v1433
      %v1435 = vpop.f32.mrb[0].mxu0
      %1436 = vmatprep.mubr.f32.mxu0 0.0
      %1437 = vmatmul.mubr.f32.gmra.mrb[0].mxu0 %v964
      %v1438 = vpop.f32.mrb[0].mxu0
      %v1439 = vadd.f32 %v1134, %v1438
      %v1440 = vpop.f32.mrb[0].mxu0
      %1441 = vmatprep.mubr.f32.mxu0 0.0
      %1442 = vmatmul.mubr.f32.gmra.mrb[0].mxu0 %v965
      %v1443 = vpop.f32.mrb[0].mxu0
      %v1444 = vadd.f32 %v1139, %v1443
      %v1445 = vpop.f32.mrb[0].mxu0
      %1446 = vmatprep.mubr.f32.mxu0 0.0
      %1447 = vmatmul.mubr.f32.gmra.mrb[0].mxu0 %v966
      %v1448 = vpop.f32.mrb[0].mxu0
      %v1449 = vadd.f32 %v1144, %v1448
      %v1450 = vpop.f32.mrb[0].mxu0
      %1451 = vmatprep.mubr.f32.mxu0 0.0
      %1452 = vmatmul.mubr.f32.gmra.mrb[0].mxu0 %v967
      %v1453 = vpop.f32.mrb[0].mxu0
      %v1454 = vadd.f32 %v1149, %v1453
      %v1455 = vpop.f32.mrb[0].mxu0
      %1456 = vmatprep.mubr.f32.mxu0 0.0
      %1457 = vmatmul.mubr.f32.gmra.mrb[0].mxu0 %v968
      %v1458 = vpop.f32.mrb[0].mxu0
      %v1459 = vadd.f32 %v1154, %v1458
      %v1460 = vpop.f32.mrb[0].mxu0
      %1461 = vmatprep.mubr.f32.mxu0 0.0
      %1462 = vmatmul.mubr.f32.gmra.mrb[0].mxu0 %v969
      %v1463 = vpop.f32.mrb[0].mxu0
      %v1464 = vadd.f32 %v1159, %v1463
      %v1465 = vpop.f32.mrb[0].mxu0
      %1466 = vmatprep.mubr.f32.mxu0 0.0
      %1467 = vmatmul.mubr.f32.gmra.mrb[0].mxu0 %v970
      %v1468 = vpop.f32.mrb[0].mxu0
      %v1469 = vadd.f32 %v1164, %v1468
      %v1470 = vpop.f32.mrb[0].mxu0
      %1471 = vmatprep.mubr.f32.mxu0 0.0
      %1472 = vmatmul.mubr.f32.gmra.mrb[0].mxu0 %v971
      %v1473 = vpop.f32.mrb[0].mxu0
      %v1474 = vadd.f32 %v1169, %v1473
      %v1475 = vpop.f32.mrb[0].mxu0
      %1476 = vmatprep.mubr.f32.mxu0 0.0
      %1477 = vmatmul.mubr.f32.gmra.mrb[0].mxu0 %v972
      %v1478 = vpop.f32.mrb[0].mxu0
      %v1479 = vadd.f32 %v1174, %v1478
      %v1480 = vpop.f32.mrb[0].mxu0
      %1481 = vmatprep.mubr.f32.mxu0 0.0
      %1482 = vmatmul.mubr.f32.gmra.mrb[0].mxu0 %v973
      %v1483 = vpop.f32.mrb[0].mxu0
      %v1484 = vadd.f32 %v1179, %v1483
      %v1485 = vpop.f32.mrb[0].mxu0
      %1486 = vmatprep.mubr.f32.mxu0 0.0
      %1487 = vmatmul.mubr.f32.gmra.mrb[0].mxu0 %v974
      %v1488 = vpop.f32.mrb[0].mxu0
      %v1489 = vadd.f32 %v1184, %v1488
      %v1490 = vpop.f32.mrb[0].mxu0
      %1491 = vmatprep.mubr.f32.mxu0 0.0
      %1492 = vmatmul.mubr.f32.gmra.mrb[0].mxu0 %v975
      %v1493 = vpop.f32.mrb[0].mxu0
      %v1494 = vadd.f32 %v1189, %v1493
      %v1495 = vpop.f32.mrb[0].mxu0
      %1496 = vmatprep.mubr.f32.mxu0 0.0
      %1497 = vmatmul.mubr.f32.gmra.mrb[0].mxu0 %v976
      %v1498 = vpop.f32.mrb[0].mxu0
      %v1499 = vadd.f32 %v1194, %v1498
      %v1500 = vpop.f32.mrb[0].mxu0
      %1501 = vmatprep.mubr.f32.mxu0 0.0
      %1502 = vmatmul.mubr.f32.gmra.mrb[0].mxu0 %v977
      %v1503 = vpop.f32.mrb[0].mxu0
      %v1504 = vadd.f32 %v1199, %v1503
      %v1505 = vpop.f32.mrb[0].mxu0
      %1506 = vmatprep.mubr.f32.mxu0 0.0
      %1507 = vmatmul.mubr.f32.gmra.mrb[0].mxu0 %v978
      %v1508 = vpop.f32.mrb[0].mxu0
      %v1509 = vadd.f32 %v1204, %v1508
      %v1510 = vpop.f32.mrb[0].mxu0
      %1511 = vmatprep.mubr.f32.mxu0 0.0
      %1512 = vmatmul.mubr.f32.gmra.mrb[0].mxu0 %v979
      %v1513 = vpop.f32.mrb[0].mxu0
      %v1514 = vadd.f32 %v1209, %v1513
      %v1515 = vpop.f32.mrb[0].mxu0
      %1516 = vmatprep.mubr.f32.mxu0 0.0
      %1517 = vmatmul.mubr.f32.gmra.mrb[0].mxu0 %v980
      %v1518 = vpop.f32.mrb[0].mxu0
      %v1519 = vadd.f32 %v1214, %v1518
      %v1520 = vpop.f32.mrb[0].mxu0
      %1521 = vmatprep.mubr.f32.mxu0 0.0
      %1522 = vmatmul.mubr.f32.gmra.mrb[0].mxu0 %v981
      %v1523 = vpop.f32.mrb[0].mxu0
      %v1524 = vadd.f32 %v1219, %v1523
      %v1525 = vpop.f32.mrb[0].mxu0
      %1526 = vmatprep.mubr.f32.mxu0 0.0
      %1527 = vmatmul.mubr.f32.gmra.mrb[0].mxu0 %v982
      %v1528 = vpop.f32.mrb[0].mxu0
      %v1529 = vadd.f32 %v1224, %v1528
      %v1530 = vpop.f32.mrb[0].mxu0
      %1531 = vmatprep.mubr.f32.mxu0 0.0
      %1532 = vmatmul.mubr.f32.gmra.mrb[0].mxu0 %v983
      %v1533 = vpop.f32.mrb[0].mxu0
      %v1534 = vadd.f32 %v1229, %v1533
      %v1535 = vpop.f32.mrb[0].mxu0
      %1536 = vmatprep.mubr.f32.mxu0 0.0
      %1537 = vmatmul.mubr.f32.gmra.mrb[0].mxu0 %v984
      %v1538 = vpop.f32.mrb[0].mxu0
      %v1539 = vadd.f32 %v1234, %v1538
      %v1540 = vpop.f32.mrb[0].mxu0
      %1541 = vmatprep.mubr.f32.mxu0 0.0
      %1542 = vmatmul.mubr.f32.gmra.mrb[0].mxu0 %v985
      %v1543 = vpop.f32.mrb[0].mxu0
      %v1544 = vadd.f32 %v1239, %v1543
      %v1545 = vpop.f32.mrb[0].mxu0
      %1546 = vmatprep.mubr.f32.mxu0 0.0
      %1547 = vmatmul.mubr.f32.gmra.mrb[0].mxu0 %v986
      %v1548 = vpop.f32.mrb[0].mxu0
      %v1549 = vadd.f32 %v1244, %v1548
      %v1550 = vpop.f32.mrb[0].mxu0
      %1551 = vmatprep.mubr.f32.mxu0 0.0
      %1552 = vmatmul.mubr.f32.gmra.mrb[0].mxu0 %v987
      %v1553 = vpop.f32.mrb[0].mxu0
      %v1554 = vadd.f32 %v1249, %v1553
      %v1555 = vpop.f32.mrb[0].mxu0
      %1556 = vmatprep.mubr.f32.mxu0 0.0
      %1557 = vmatmul.mubr.f32.gmra.mrb[0].mxu0 %v988
      %v1558 = vpop.f32.mrb[0].mxu0
      %v1559 = vadd.f32 %v1254, %v1558
      %v1560 = vpop.f32.mrb[0].mxu0
      %1561 = vmatprep.mubr.f32.mxu0 0.0
      %1562 = vmatmul.mubr.f32.gmra.mrb[0].mxu0 %v989
      %v1563 = vpop.f32.mrb[0].mxu0
      %v1564 = vadd.f32 %v1259, %v1563
      %v1565 = vpop.f32.mrb[0].mxu0
      %1566 = vmatprep.mubr.f32.mxu0 0.0
      %1567 = vmatmul.mubr.f32.gmra.mrb[0].mxu0 %v990
      %v1568 = vpop.f32.mrb[0].mxu0
      %v1569 = vadd.f32 %v1264, %v1568
      %v1570 = vpop.f32.mrb[0].mxu0
      %1571 = vmatprep.mubr.f32.mxu0 0.0
      %1572 = vmatmul.mubr.f32.gmra.mrb[0].mxu0 %v991
      %v1573 = vpop.f32.mrb[0].mxu0
      %v1574 = vadd.f32 %v1269, %v1573
      %v1575 = vpop.f32.mrb[0].mxu0
      %1576 = vmatprep.mubr.f32.mxu0 0.0
      %1577 = vmatmul.mubr.f32.gmra.mrb[0].mxu0 %v992
      %v1578 = vpop.f32.mrb[0].mxu0
      %v1579 = vadd.f32 %v1274, %v1578
      %v1580 = vpop.f32.mrb[0].mxu0
      %1581 = vmatprep.mubr.f32.mxu0 0.0
      %1582 = vmatmul.mubr.f32.gmra.mrb[0].mxu0 %v993
      %v1583 = vpop.f32.mrb[0].mxu0
      %v1584 = vadd.f32 %v1279, %v1583
      %v1585 = vpop.f32.mrb[0].mxu0
      %1586 = vmatprep.mubr.f32.mxu0 0.0
      %1587 = vmatmul.mubr.f32.gmra.mrb[0].mxu0 %v994
      %v1588 = vpop.f32.mrb[0].mxu0
      %v1589 = vadd.f32 %v1284, %v1588
      %v1590 = vpop.f32.mrb[0].mxu0
      %1591 = vmatprep.mubr.f32.mxu0 0.0
      %1592 = vmatmul.mubr.f32.gmra.mrb[0].mxu0 %v995
      %v1593 = vpop.f32.mrb[0].mxu0
      %v1594 = vadd.f32 %v1289, %v1593
      %v1595 = vpop.f32.mrb[0].mxu0
      %1596 = vmatprep.mubr.f32.mxu0 0.0
      %1597 = vmatmul.mubr.f32.gmra.mrb[0].mxu0 %v996
      %v1598 = vpop.f32.mrb[0].mxu0
      %v1599 = vadd.f32 %v1294, %v1598
      %v1600 = vpop.f32.mrb[0].mxu0
      %1601 = vmatprep.mubr.f32.mxu0 0.0
      %1602 = vmatmul.mubr.f32.gmra.mrb[0].mxu0 %v997
      %v1603 = vpop.f32.mrb[0].mxu0
      %v1604 = vadd.f32 %v1299, %v1603
      %v1605 = vpop.f32.mrb[0].mxu0
      %1606 = vmatprep.mubr.f32.mxu0 0.0
      %1607 = vmatmul.mubr.f32.gmra.mrb[0].mxu0 %v998
      %v1608 = vpop.f32.mrb[0].mxu0
      %v1609 = vadd.f32 %v1304, %v1608
      %v1610 = vpop.f32.mrb[0].mxu0
      %1611 = vmatprep.mubr.f32.mxu0 0.0
      %1612 = vmatmul.mubr.f32.gmra.mrb[0].mxu0 %v999
      %v1613 = vpop.f32.mrb[0].mxu0
      %v1614 = vadd.f32 %v1309, %v1613
      %v1615 = vpop.f32.mrb[0].mxu0
      %1616 = vmatprep.mubr.f32.mxu0 0.0
      %1617 = vmatmul.mubr.f32.gmra.mrb[0].mxu0 %v1000
      %v1618 = vpop.f32.mrb[0].mxu0
      %v1619 = vadd.f32 %v1314, %v1618
      %v1620 = vpop.f32.mrb[0].mxu0
      %1621 = vmatprep.mubr.f32.mxu0 0.0
      %1622 = vmatmul.mubr.f32.gmra.mrb[0].mxu0 %v1001
      %v1623 = vpop.f32.mrb[0].mxu0
      %v1624 = vadd.f32 %v1319, %v1623
      %v1625 = vpop.f32.mrb[0].mxu0
      %1626 = vmatprep.mubr.f32.mxu0 0.0
      %1627 = vmatmul.mubr.f32.gmra.mrb[0].mxu0 %v1002
      %v1628 = vpop.f32.mrb[0].mxu0
      %v1629 = vadd.f32 %v1324, %v1628
      %v1630 = vpop.f32.mrb[0].mxu0
      %1631 = vmatprep.mubr.f32.mxu0 0.0
      %1632 = vmatmul.mubr.f32.gmra.mrb[0].mxu0 %v1003
      %v1633 = vpop.f32.mrb[0].mxu0
      %v1634 = vadd.f32 %v1329, %v1633
      %v1635 = vpop.f32.mrb[0].mxu0
      %1636 = vmatprep.mubr.f32.mxu0 0.0
      %1637 = vmatmul.mubr.f32.gmra.mrb[0].mxu0 %v1004
      %v1638 = vpop.f32.mrb[0].mxu0
      %v1639 = vadd.f32 %v1334, %v1638
      %v1640 = vpop.f32.mrb[0].mxu0
      %1641 = vmatprep.mubr.f32.mxu0 0.0
      %1642 = vmatmul.mubr.f32.gmra.mrb[0].mxu0 %v1005
      %v1643 = vpop.f32.mrb[0].mxu0
      %v1644 = vadd.f32 %v1339, %v1643
      %v1645 = vpop.f32.mrb[0].mxu0
      %1646 = vmatprep.mubr.f32.mxu0 0.0
      %1647 = vmatmul.mubr.f32.gmra.mrb[0].mxu0 %v1006
      %v1648 = vpop.f32.mrb[0].mxu0
      %v1649 = vadd.f32 %v1344, %v1648
      %v1650 = vpop.f32.mrb[0].mxu0
      %1651 = vdwg.mxu0
      %v1652 = vld [vmem:[#allocation2 + $0x20] sm:$0xff]
      %v1653 = vld [vmem:[#allocation2 + $0x28] sm:$0xff]
      %v1654 = vld [vmem:[#allocation2 + $0x30] sm:$0xff]
      %v1655 = vld [vmem:[#allocation2 + $0x38] sm:$0xff]
      %v1656 = vld [vmem:[#allocation2 + $0x40] sm:$0xff]
      %v1657 = vld [vmem:[#allocation2 + $0x48] sm:$0xff]
      %v1658 = vld [vmem:[#allocation2 + $0x50] sm:$0xff]
      %v1659 = vld [vmem:[#allocation2 + $0x58] sm:$0xff]
      %v1660 = vld [vmem:[#allocation2 + $0x60] sm:$0xff]
      %v1661 = vld [vmem:[#allocation2 + $0x68] sm:$0xff]
      %v1662 = vld [vmem:[#allocation2 + $0x70] sm:$0xff]
      %v1663 = vld [vmem:[#allocation2 + $0x78] sm:$0xff]
      %v1664 = vld [vmem:[#allocation2 + $0x80] sm:$0xff]
      %v1665 = vld [vmem:[#allocation2 + $0x88] sm:$0xff]
      %v1666 = vld [vmem:[#allocation2 + $0x90] sm:$0xff]
      %v1667 = vld [vmem:[#allocation2 + $0x98] sm:$0xff]
      %v1668 = vld [vmem:[#allocation2 + $0xa0] sm:$0xff]
      %v1669 = vld [vmem:[#allocation2 + $0xa8] sm:$0xff]
      %v1670 = vld [vmem:[#allocation2 + $0xb0] sm:$0xff]
      %v1671 = vld [vmem:[#allocation2 + $0xb8] sm:$0xff]
      %v1672 = vld [vmem:[#allocation2 + $0xc0] sm:$0xff]
      %v1673 = vld [vmem:[#allocation2 + $0xc8] sm:$0xff]
      %v1674 = vld [vmem:[#allocation2 + $0xd0] sm:$0xff]
      %v1675 = vld [vmem:[#allocation2 + $0xd8] sm:$0xff]
      %v1676 = vld [vmem:[#allocation2 + $0xe0] sm:$0xff]
      %v1677 = vld [vmem:[#allocation2 + $0xe8] sm:$0xff]
      %v1678 = vld [vmem:[#allocation2 + $0xf0] sm:$0xff]
      %v1679 = vld [vmem:[#allocation2 + $0xf8] sm:$0xff]
      %v1680 = vld [vmem:[#allocation2 + $0x100] sm:$0xff]
      %v1681 = vld [vmem:[#allocation2 + $0x108] sm:$0xff]
      %v1682 = vld [vmem:[#allocation2 + $0x110] sm:$0xff]
      %v1683 = vld [vmem:[#allocation2 + $0x118] sm:$0xff]
      %v1684 = vld [vmem:[#allocation2 + $0x120] sm:$0xff]
      %v1685 = vld [vmem:[#allocation2 + $0x128] sm:$0xff]
      %v1686 = vld [vmem:[#allocation2 + $0x130] sm:$0xff]
      %v1687 = vld [vmem:[#allocation2 + $0x138] sm:$0xff]
      %v1688 = vld [vmem:[#allocation2 + $0x140] sm:$0xff]
      %v1689 = vld [vmem:[#allocation2 + $0x148] sm:$0xff]
      %v1690 = vld [vmem:[#allocation2 + $0x150] sm:$0xff]
      %v1691 = vld [vmem:[#allocation2 + $0x158] sm:$0xff]
      %v1692 = vld [vmem:[#allocation2 + $0x160] sm:$0xff]
      %v1693 = vld [vmem:[#allocation2 + $0x168] sm:$0xff]
      %v1694 = vld [vmem:[#allocation2 + $0x170] sm:$0xff]
      %v1695 = vld [vmem:[#allocation2 + $0x178] sm:$0xff]
      %v1696 = vld [vmem:[#allocation2 + $0x180] sm:$0xff]
      %v1697 = vld [vmem:[#allocation2 + $0x188] sm:$0xff]
      %v1698 = vld [vmem:[#allocation2 + $0x190] sm:$0xff]
      %v1699 = vld [vmem:[#allocation2 + $0x198] sm:$0xff]
      %s1700 = scalar_lea.vmem %s3, 256
      %v1701 = vld [vmem:[%s1700] sm:$0xff]
      %v1702 = vld [vmem:[%s1700 + $0x8] sm:$0xff]
      %v1703 = vld [vmem:[%s1700 + $0x10] sm:$0xff]
      %v1704 = vld [vmem:[%s1700 + $0x18] sm:$0xff]
      %v1705 = vld [vmem:[%s1700 + $0x20] sm:$0xff]
      %v1706 = vld [vmem:[%s1700 + $0x28] sm:$0xff]
      %v1707 = vld [vmem:[%s1700 + $0x30] sm:$0xff]
      %v1708 = vld [vmem:[%s1700 + $0x38] sm:$0xff]
      %v1709 = vld [vmem:[%s1700 + $0x40] sm:$0xff]
      %v1710 = vld [vmem:[%s1700 + $0x48] sm:$0xff]
      %v1711 = vld [vmem:[%s1700 + $0x50] sm:$0xff]
      %v1712 = vld [vmem:[%s1700 + $0x58] sm:$0xff]
      %v1713 = vld [vmem:[%s1700 + $0x60] sm:$0xff]
      %v1714 = vld [vmem:[%s1700 + $0x68] sm:$0xff]
      %v1715 = vld [vmem:[%s1700 + $0x70] sm:$0xff]
      %v1716 = vld [vmem:[%s1700 + $0x78] sm:$0xff]
      %1717 = vmatprep.subr.mxu0 0.0
      %1718 = vmatpush1.msra.mxu0 %v1701
      %1719 = vmatprep.subr.mxu0 0.0
      %1720 = vmatpush1.msra.mxu0 %v1702
      %1721 = vmatprep.subr.mxu0 0.0
      %1722 = vmatpush1.msra.mxu0 %v1703
      %1723 = vmatprep.subr.mxu0 0.0
      %1724 = vmatpush1.msra.mxu0 %v1704
      %1725 = vmatprep.subr.mxu0 0.0
      %1726 = vmatpush1.msra.mxu0 %v1705
      %1727 = vmatprep.subr.mxu0 0.0
      %1728 = vmatpush1.msra.mxu0 %v1706
      %1729 = vmatprep.subr.mxu0 0.0
      %1730 = vmatpush1.msra.mxu0 %v1707
      %1731 = vmatprep.subr.mxu0 0.0
      %1732 = vmatpush1.msra.mxu0 %v1708
      %1733 = vmatprep.subr.mxu0 0.0
      %1734 = vmatpush1.msra.mxu0 %v1709
      %1735 = vmatprep.subr.mxu0 0.0
      %1736 = vmatpush1.msra.mxu0 %v1710
      %1737 = vmatprep.subr.mxu0 0.0
      %1738 = vmatpush1.msra.mxu0 %v1711
      %1739 = vmatprep.subr.mxu0 0.0
      %1740 = vmatpush1.msra.mxu0 %v1712
      %1741 = vmatprep.subr.mxu0 0.0
      %1742 = vmatpush1.msra.mxu0 %v1713
      %1743 = vmatprep.subr.mxu0 0.0
      %1744 = vmatpush1.msra.mxu0 %v1714
      %1745 = vmatprep.subr.mxu0 0.0
      %1746 = vmatpush1.msra.mxu0 %v1715
      %1747 = vmatprep.subr.mxu0 0.0
      %1748 = vmatpush1.msra.mxu0 %v1716
      %1749 = vmatprep.subr.mxu0 0.0
      %1750 = vmatpush1.msra.mxu0 0.0
      %1751 = vmatprep.subr.mxu0 0.0
      %1752 = vmatpush1.msra.mxu0 0.0
      %1753 = vmatprep.subr.mxu0 0.0
      %1754 = vmatpush1.msra.mxu0 0.0
      %1755 = vmatprep.subr.mxu0 0.0
      %1756 = vmatpush1.msra.mxu0 0.0
      %1757 = vmatprep.subr.mxu0 0.0
      %1758 = vmatpush1.msra.mxu0 0.0
      %1759 = vmatprep.subr.mxu0 0.0
      %1760 = vmatpush1.msra.mxu0 0.0
      %1761 = vmatprep.subr.mxu0 0.0
      %1762 = vmatpush1.msra.mxu0 0.0
      %1763 = vmatprep.subr.mxu0 0.0
      %1764 = vmatpush1.msra.mxu0 0.0
      %1765 = vmatprep.subr.mxu0 0.0
      %1766 = vmatpush1.msra.mxu0 0.0
      %1767 = vmatprep.subr.mxu0 0.0
      %1768 = vmatpush1.msra.mxu0 0.0
      %1769 = vmatprep.subr.mxu0 0.0
      %1770 = vmatpush1.msra.mxu0 0.0
      %1771 = vmatprep.subr.mxu0 0.0
      %1772 = vmatpush1.msra.mxu0 0.0
      %1773 = vmatprep.subr.mxu0 0.0
      %1774 = vmatpush1.msra.mxu0 0.0
      %1775 = vmatprep.subr.mxu0 0.0
      %1776 = vmatpush1.msra.mxu0 0.0
      %1777 = vmatprep.subr.mxu0 0.0
      %1778 = vmatpush1.msra.mxu0 0.0
      %1779 = vmatprep.subr.mxu0 0.0
      %1780 = vmatpush1.msra.mxu0 0.0
      %1781 = vmatprep.mubr.f32.mxu0 0.0
      %1782 = vmatmul.mubr.f32.gmra.mrb[0].mxu0 %v1652
      %v1783 = vpop.f32.mrb[0].mxu0
      %v1784 = vadd.f32 0.0, %v1783
      %v1785 = vpop.f32.mrb[0].mxu0
      %1786 = vmatprep.mubr.f32.mxu0 0.0
      %1787 = vmatmul.mubr.f32.gmra.mrb[0].mxu0 %v1653
      %v1788 = vpop.f32.mrb[0].mxu0
      %v1789 = vadd.f32 0.0, %v1788
      %v1790 = vpop.f32.mrb[0].mxu0
      %1791 = vmatprep.mubr.f32.mxu0 0.0
      %1792 = vmatmul.mubr.f32.gmra.mrb[0].mxu0 %v1654
      %v1793 = vpop.f32.mrb[0].mxu0
      %v1794 = vadd.f32 0.0, %v1793
      %v1795 = vpop.f32.mrb[0].mxu0
      %1796 = vmatprep.mubr.f32.mxu0 0.0
      %1797 = vmatmul.mubr.f32.gmra.mrb[0].mxu0 %v1655
      %v1798 = vpop.f32.mrb[0].mxu0
      %v1799 = vadd.f32 0.0, %v1798
      %v1800 = vpop.f32.mrb[0].mxu0
      %1801 = vmatprep.mubr.f32.mxu0 0.0
      %1802 = vmatmul.mubr.f32.gmra.mrb[0].mxu0 %v1656
      %v1803 = vpop.f32.mrb[0].mxu0
      %v1804 = vadd.f32 0.0, %v1803
      %v1805 = vpop.f32.mrb[0].mxu0
      %1806 = vmatprep.mubr.f32.mxu0 0.0
      %1807 = vmatmul.mubr.f32.gmra.mrb[0].mxu0 %v1657
      %v1808 = vpop.f32.mrb[0].mxu0
      %v1809 = vadd.f32 0.0, %v1808
      %v1810 = vpop.f32.mrb[0].mxu0
      %1811 = vmatprep.mubr.f32.mxu0 0.0
      %1812 = vmatmul.mubr.f32.gmra.mrb[0].mxu0 %v1658
      %v1813 = vpop.f32.mrb[0].mxu0
      %v1814 = vadd.f32 0.0, %v1813
      %v1815 = vpop.f32.mrb[0].mxu0
      %1816 = vmatprep.mubr.f32.mxu0 0.0
      %1817 = vmatmul.mubr.f32.gmra.mrb[0].mxu0 %v1659
      %v1818 = vpop.f32.mrb[0].mxu0
      %v1819 = vadd.f32 0.0, %v1818
      %v1820 = vpop.f32.mrb[0].mxu0
      %1821 = vmatprep.mubr.f32.mxu0 0.0
      %1822 = vmatmul.mubr.f32.gmra.mrb[0].mxu0 %v1660
      %v1823 = vpop.f32.mrb[0].mxu0
      %v1824 = vadd.f32 0.0, %v1823
      %v1825 = vpop.f32.mrb[0].mxu0
      %1826 = vmatprep.mubr.f32.mxu0 0.0
      %1827 = vmatmul.mubr.f32.gmra.mrb[0].mxu0 %v1661
      %v1828 = vpop.f32.mrb[0].mxu0
      %v1829 = vadd.f32 0.0, %v1828
      %v1830 = vpop.f32.mrb[0].mxu0
      %1831 = vmatprep.mubr.f32.mxu0 0.0
      %1832 = vmatmul.mubr.f32.gmra.mrb[0].mxu0 %v1662
      %v1833 = vpop.f32.mrb[0].mxu0
      %v1834 = vadd.f32 0.0, %v1833
      %v1835 = vpop.f32.mrb[0].mxu0
      %1836 = vmatprep.mubr.f32.mxu0 0.0
      %1837 = vmatmul.mubr.f32.gmra.mrb[0].mxu0 %v1663
      %v1838 = vpop.f32.mrb[0].mxu0
      %v1839 = vadd.f32 0.0, %v1838
      %v1840 = vpop.f32.mrb[0].mxu0
      %1841 = vmatprep.mubr.f32.mxu0 0.0
      %1842 = vmatmul.mubr.f32.gmra.mrb[0].mxu0 %v1664
      %v1843 = vpop.f32.mrb[0].mxu0
      %v1844 = vadd.f32 0.0, %v1843
      %v1845 = vpop.f32.mrb[0].mxu0
      %1846 = vmatprep.mubr.f32.mxu0 0.0
      %1847 = vmatmul.mubr.f32.gmra.mrb[0].mxu0 %v1665
      %v1848 = vpop.f32.mrb[0].mxu0
      %v1849 = vadd.f32 0.0, %v1848
      %v1850 = vpop.f32.mrb[0].mxu0
      %1851 = vmatprep.mubr.f32.mxu0 0.0
      %1852 = vmatmul.mubr.f32.gmra.mrb[0].mxu0 %v1666
      %v1853 = vpop.f32.mrb[0].mxu0
      %v1854 = vadd.f32 0.0, %v1853
      %v1855 = vpop.f32.mrb[0].mxu0
      %1856 = vmatprep.mubr.f32.mxu0 0.0
      %1857 = vmatmul.mubr.f32.gmra.mrb[0].mxu0 %v1667
      %v1858 = vpop.f32.mrb[0].mxu0
      %v1859 = vadd.f32 0.0, %v1858
      %v1860 = vpop.f32.mrb[0].mxu0
      %1861 = vmatprep.mubr.f32.mxu0 0.0
      %1862 = vmatmul.mubr.f32.gmra.mrb[0].mxu0 %v1668
      %v1863 = vpop.f32.mrb[0].mxu0
      %v1864 = vadd.f32 0.0, %v1863
      %v1865 = vpop.f32.mrb[0].mxu0
      %1866 = vmatprep.mubr.f32.mxu0 0.0
      %1867 = vmatmul.mubr.f32.gmra.mrb[0].mxu0 %v1669
      %v1868 = vpop.f32.mrb[0].mxu0
      %v1869 = vadd.f32 0.0, %v1868
      %v1870 = vpop.f32.mrb[0].mxu0
      %1871 = vmatprep.mubr.f32.mxu0 0.0
      %1872 = vmatmul.mubr.f32.gmra.mrb[0].mxu0 %v1670
      %v1873 = vpop.f32.mrb[0].mxu0
      %v1874 = vadd.f32 0.0, %v1873
      %v1875 = vpop.f32.mrb[0].mxu0
      %1876 = vmatprep.mubr.f32.mxu0 0.0
      %1877 = vmatmul.mubr.f32.gmra.mrb[0].mxu0 %v1671
      %v1878 = vpop.f32.mrb[0].mxu0
      %v1879 = vadd.f32 0.0, %v1878
      %v1880 = vpop.f32.mrb[0].mxu0
      %1881 = vmatprep.mubr.f32.mxu0 0.0
      %1882 = vmatmul.mubr.f32.gmra.mrb[0].mxu0 %v1672
      %v1883 = vpop.f32.mrb[0].mxu0
      %v1884 = vadd.f32 0.0, %v1883
      %v1885 = vpop.f32.mrb[0].mxu0
      %1886 = vmatprep.mubr.f32.mxu0 0.0
      %1887 = vmatmul.mubr.f32.gmra.mrb[0].mxu0 %v1673
      %v1888 = vpop.f32.mrb[0].mxu0
      %v1889 = vadd.f32 0.0, %v1888
      %v1890 = vpop.f32.mrb[0].mxu0
      %1891 = vmatprep.mubr.f32.mxu0 0.0
      %1892 = vmatmul.mubr.f32.gmra.mrb[0].mxu0 %v1674
      %v1893 = vpop.f32.mrb[0].mxu0
      %v1894 = vadd.f32 0.0, %v1893
      %v1895 = vpop.f32.mrb[0].mxu0
      %1896 = vmatprep.mubr.f32.mxu0 0.0
      %1897 = vmatmul.mubr.f32.gmra.mrb[0].mxu0 %v1675
      %v1898 = vpop.f32.mrb[0].mxu0
      %v1899 = vadd.f32 0.0, %v1898
      %v1900 = vpop.f32.mrb[0].mxu0
      %1901 = vmatprep.mubr.f32.mxu0 0.0
      %1902 = vmatmul.mubr.f32.gmra.mrb[0].mxu0 %v1676
      %v1903 = vpop.f32.mrb[0].mxu0
      %v1904 = vadd.f32 0.0, %v1903
      %v1905 = vpop.f32.mrb[0].mxu0
      %1906 = vmatprep.mubr.f32.mxu0 0.0
      %1907 = vmatmul.mubr.f32.gmra.mrb[0].mxu0 %v1677
      %v1908 = vpop.f32.mrb[0].mxu0
      %v1909 = vadd.f32 0.0, %v1908
      %v1910 = vpop.f32.mrb[0].mxu0
      %1911 = vmatprep.mubr.f32.mxu0 0.0
      %1912 = vmatmul.mubr.f32.gmra.mrb[0].mxu0 %v1678
      %v1913 = vpop.f32.mrb[0].mxu0
      %v1914 = vadd.f32 0.0, %v1913
      %v1915 = vpop.f32.mrb[0].mxu0
      %1916 = vmatprep.mubr.f32.mxu0 0.0
      %1917 = vmatmul.mubr.f32.gmra.mrb[0].mxu0 %v1679
      %v1918 = vpop.f32.mrb[0].mxu0
      %v1919 = vadd.f32 0.0, %v1918
      %v1920 = vpop.f32.mrb[0].mxu0
      %1921 = vmatprep.mubr.f32.mxu0 0.0
      %1922 = vmatmul.mubr.f32.gmra.mrb[0].mxu0 %v1680
      %v1923 = vpop.f32.mrb[0].mxu0
      %v1924 = vadd.f32 0.0, %v1923
      %v1925 = vpop.f32.mrb[0].mxu0
      %1926 = vmatprep.mubr.f32.mxu0 0.0
      %1927 = vmatmul.mubr.f32.gmra.mrb[0].mxu0 %v1681
      %v1928 = vpop.f32.mrb[0].mxu0
      %v1929 = vadd.f32 0.0, %v1928
      %v1930 = vpop.f32.mrb[0].mxu0
      %1931 = vmatprep.mubr.f32.mxu0 0.0
      %1932 = vmatmul.mubr.f32.gmra.mrb[0].mxu0 %v1682
      %v1933 = vpop.f32.mrb[0].mxu0
      %v1934 = vadd.f32 0.0, %v1933
      %v1935 = vpop.f32.mrb[0].mxu0
      %1936 = vmatprep.mubr.f32.mxu0 0.0
      %1937 = vmatmul.mubr.f32.gmra.mrb[0].mxu0 %v1683
      %v1938 = vpop.f32.mrb[0].mxu0
      %v1939 = vadd.f32 0.0, %v1938
      %v1940 = vpop.f32.mrb[0].mxu0
      %1941 = vmatprep.mubr.f32.mxu0 0.0
      %1942 = vmatmul.mubr.f32.gmra.mrb[0].mxu0 %v1684
      %v1943 = vpop.f32.mrb[0].mxu0
      %v1944 = vadd.f32 0.0, %v1943
      %v1945 = vpop.f32.mrb[0].mxu0
      %1946 = vmatprep.mubr.f32.mxu0 0.0
      %1947 = vmatmul.mubr.f32.gmra.mrb[0].mxu0 %v1685
      %v1948 = vpop.f32.mrb[0].mxu0
      %v1949 = vadd.f32 0.0, %v1948
      %v1950 = vpop.f32.mrb[0].mxu0
      %1951 = vmatprep.mubr.f32.mxu0 0.0
      %1952 = vmatmul.mubr.f32.gmra.mrb[0].mxu0 %v1686
      %v1953 = vpop.f32.mrb[0].mxu0
      %v1954 = vadd.f32 0.0, %v1953
      %v1955 = vpop.f32.mrb[0].mxu0
      %1956 = vmatprep.mubr.f32.mxu0 0.0
      %1957 = vmatmul.mubr.f32.gmra.mrb[0].mxu0 %v1687
      %v1958 = vpop.f32.mrb[0].mxu0
      %v1959 = vadd.f32 0.0, %v1958
      %v1960 = vpop.f32.mrb[0].mxu0
      %1961 = vmatprep.mubr.f32.mxu0 0.0
      %1962 = vmatmul.mubr.f32.gmra.mrb[0].mxu0 %v1688
      %v1963 = vpop.f32.mrb[0].mxu0
      %v1964 = vadd.f32 0.0, %v1963
      %v1965 = vpop.f32.mrb[0].mxu0
      %1966 = vmatprep.mubr.f32.mxu0 0.0
      %1967 = vmatmul.mubr.f32.gmra.mrb[0].mxu0 %v1689
      %v1968 = vpop.f32.mrb[0].mxu0
      %v1969 = vadd.f32 0.0, %v1968
      %v1970 = vpop.f32.mrb[0].mxu0
      %1971 = vmatprep.mubr.f32.mxu0 0.0
      %1972 = vmatmul.mubr.f32.gmra.mrb[0].mxu0 %v1690
      %v1973 = vpop.f32.mrb[0].mxu0
      %v1974 = vadd.f32 0.0, %v1973
      %v1975 = vpop.f32.mrb[0].mxu0
      %1976 = vmatprep.mubr.f32.mxu0 0.0
      %1977 = vmatmul.mubr.f32.gmra.mrb[0].mxu0 %v1691
      %v1978 = vpop.f32.mrb[0].mxu0
      %v1979 = vadd.f32 0.0, %v1978
      %v1980 = vpop.f32.mrb[0].mxu0
      %1981 = vmatprep.mubr.f32.mxu0 0.0
      %1982 = vmatmul.mubr.f32.gmra.mrb[0].mxu0 %v1692
      %v1983 = vpop.f32.mrb[0].mxu0
      %v1984 = vadd.f32 0.0, %v1983
      %v1985 = vpop.f32.mrb[0].mxu0
      %1986 = vmatprep.mubr.f32.mxu0 0.0
      %1987 = vmatmul.mubr.f32.gmra.mrb[0].mxu0 %v1693
      %v1988 = vpop.f32.mrb[0].mxu0
      %v1989 = vadd.f32 0.0, %v1988
      %v1990 = vpop.f32.mrb[0].mxu0
      %1991 = vmatprep.mubr.f32.mxu0 0.0
      %1992 = vmatmul.mubr.f32.gmra.mrb[0].mxu0 %v1694
      %v1993 = vpop.f32.mrb[0].mxu0
      %v1994 = vadd.f32 0.0, %v1993
      %v1995 = vpop.f32.mrb[0].mxu0
      %1996 = vmatprep.mubr.f32.mxu0 0.0
      %1997 = vmatmul.mubr.f32.gmra.mrb[0].mxu0 %v1695
      %v1998 = vpop.f32.mrb[0].mxu0
      %v1999 = vadd.f32 0.0, %v1998
      %v2000 = vpop.f32.mrb[0].mxu0
      %2001 = vmatprep.mubr.f32.mxu0 0.0
      %2002 = vmatmul.mubr.f32.gmra.mrb[0].mxu0 %v1696
      %v2003 = vpop.f32.mrb[0].mxu0
      %v2004 = vadd.f32 0.0, %v2003
      %v2005 = vpop.f32.mrb[0].mxu0
      %2006 = vmatprep.mubr.f32.mxu0 0.0
      %2007 = vmatmul.mubr.f32.gmra.mrb[0].mxu0 %v1697
      %v2008 = vpop.f32.mrb[0].mxu0
      %v2009 = vadd.f32 0.0, %v2008
      %v2010 = vpop.f32.mrb[0].mxu0
      %2011 = vmatprep.mubr.f32.mxu0 0.0
      %2012 = vmatmul.mubr.f32.gmra.mrb[0].mxu0 %v1698
      %v2013 = vpop.f32.mrb[0].mxu0
      %v2014 = vadd.f32 0.0, %v2013
      %v2015 = vpop.f32.mrb[0].mxu0
      %2016 = vmatprep.mubr.f32.mxu0 0.0
      %2017 = vmatmul.mubr.f32.gmra.mrb[0].mxu0 %v1699
      %v2018 = vpop.f32.mrb[0].mxu0
      %v2019 = vadd.f32 0.0, %v2018
      %v2020 = vpop.f32.mrb[0].mxu0
      %2021 = vdwg.mxu0
      %v2022 = vadd.f32 %v1414, %v1784
      %v2023 = vadd.f32 %v1419, %v1789
      %v2024 = vadd.f32 %v1424, %v1794
      %v2025 = vadd.f32 %v1429, %v1799
      %v2026 = vadd.f32 %v1434, %v1804
      %v2027 = vadd.f32 %v1439, %v1809
      %v2028 = vadd.f32 %v1444, %v1814
      %v2029 = vadd.f32 %v1449, %v1819
      %v2030 = vadd.f32 %v1454, %v1824
      %v2031 = vadd.f32 %v1459, %v1829
      %v2032 = vadd.f32 %v1464, %v1834
      %v2033 = vadd.f32 %v1469, %v1839
      %v2034 = vadd.f32 %v1474, %v1844
      %v2035 = vadd.f32 %v1479, %v1849
      %v2036 = vadd.f32 %v1484, %v1854
      %v2037 = vadd.f32 %v1489, %v1859
      %v2038 = vadd.f32 %v1494, %v1864
      %v2039 = vadd.f32 %v1499, %v1869
      %v2040 = vadd.f32 %v1504, %v1874
      %v2041 = vadd.f32 %v1509, %v1879
      %v2042 = vadd.f32 %v1514, %v1884
      %v2043 = vadd.f32 %v1519, %v1889
      %v2044 = vadd.f32 %v1524, %v1894
      %v2045 = vadd.f32 %v1529, %v1899
      %v2046 = vadd.f32 %v1534, %v1904
      %v2047 = vadd.f32 %v1539, %v1909
      %v2048 = vadd.f32 %v1544, %v1914
      %v2049 = vadd.f32 %v1549, %v1919
      %v2050 = vadd.f32 %v1554, %v1924
      %v2051 = vadd.f32 %v1559, %v1929
      %v2052 = vadd.f32 %v1564, %v1934
      %v2053 = vadd.f32 %v1569, %v1939
      %v2054 = vadd.f32 %v1574, %v1944
      %v2055 = vadd.f32 %v1579, %v1949
      %v2056 = vadd.f32 %v1584, %v1954
      %v2057 = vadd.f32 %v1589, %v1959
      %v2058 = vadd.f32 %v1594, %v1964
      %v2059 = vadd.f32 %v1599, %v1969
      %v2060 = vadd.f32 %v1604, %v1974
      %v2061 = vadd.f32 %v1609, %v1979
      %v2062 = vadd.f32 %v1614, %v1984
      %v2063 = vadd.f32 %v1619, %v1989
      %v2064 = vadd.f32 %v1624, %v1994
      %v2065 = vadd.f32 %v1629, %v1999
      %v2066 = vadd.f32 %v1634, %v2004
      %v2067 = vadd.f32 %v1639, %v2009
      %v2068 = vadd.f32 %v1644, %v2014
      %v2069 = vadd.f32 %v1649, %v2019
      %v2070 = vld [vmem:[%s4] sm:$0x1]
      %v2072 = vlaneseq
      %v2073 = vshrl.u32 %v2072, 7
      %v2074 = vsub.s32 0, %v2073
      %v2075 = vrot.slane %v2070, %v2074
      %v2077 = vadd.f32 %v2022, %v2075
      %v2078 = vadd.f32 %v2023, %v2075
      %v2079 = vadd.f32 %v2024, %v2075
      %v2080 = vadd.f32 %v2025, %v2075
      %v2081 = vadd.f32 %v2026, %v2075
      %v2082 = vadd.f32 %v2027, %v2075
      %v2083 = vadd.f32 %v2028, %v2075
      %v2084 = vadd.f32 %v2029, %v2075
      %v2085 = vadd.f32 %v2030, %v2075
      %v2086 = vadd.f32 %v2031, %v2075
      %v2087 = vadd.f32 %v2032, %v2075
      %v2088 = vadd.f32 %v2033, %v2075
      %v2089 = vadd.f32 %v2034, %v2075
      %v2090 = vadd.f32 %v2035, %v2075
      %v2091 = vadd.f32 %v2036, %v2075
      %v2092 = vadd.f32 %v2037, %v2075
      %v2093 = vadd.f32 %v2038, %v2075
      %v2094 = vadd.f32 %v2039, %v2075
      %v2095 = vadd.f32 %v2040, %v2075
      %v2096 = vadd.f32 %v2041, %v2075
      %v2097 = vadd.f32 %v2042, %v2075
      %v2098 = vadd.f32 %v2043, %v2075
      %v2099 = vadd.f32 %v2044, %v2075
      %v2100 = vadd.f32 %v2045, %v2075
      %v2101 = vadd.f32 %v2046, %v2075
      %v2102 = vadd.f32 %v2047, %v2075
      %v2103 = vadd.f32 %v2048, %v2075
      %v2104 = vadd.f32 %v2049, %v2075
      %v2105 = vadd.f32 %v2050, %v2075
      %v2106 = vadd.f32 %v2051, %v2075
      %v2107 = vadd.f32 %v2052, %v2075
      %v2108 = vadd.f32 %v2053, %v2075
      %v2109 = vadd.f32 %v2054, %v2075
      %v2110 = vadd.f32 %v2055, %v2075
      %v2111 = vadd.f32 %v2056, %v2075
      %v2112 = vadd.f32 %v2057, %v2075
      %v2113 = vadd.f32 %v2058, %v2075
      %v2114 = vadd.f32 %v2059, %v2075
      %v2115 = vadd.f32 %v2060, %v2075
      %v2116 = vadd.f32 %v2061, %v2075
      %v2117 = vadd.f32 %v2062, %v2075
      %v2118 = vadd.f32 %v2063, %v2075
      %v2119 = vadd.f32 %v2064, %v2075
      %v2120 = vadd.f32 %v2065, %v2075
      %v2121 = vadd.f32 %v2066, %v2075
      %v2122 = vadd.f32 %v2067, %v2075
      %v2123 = vadd.f32 %v2068, %v2075
      %v2124 = vadd.f32 %v2069, %v2075
      %v2125 = vmax.f32 %v2077, 0.0
      %v2126 = vmax.f32 %v2078, 0.0
      %v2127 = vmax.f32 %v2079, 0.0
      %v2128 = vmax.f32 %v2080, 0.0
      %v2129 = vmax.f32 %v2081, 0.0
      %v2130 = vmax.f32 %v2082, 0.0
      %v2131 = vmax.f32 %v2083, 0.0
      %v2132 = vmax.f32 %v2084, 0.0
      %v2133 = vmax.f32 %v2085, 0.0
      %v2134 = vmax.f32 %v2086, 0.0
      %v2135 = vmax.f32 %v2087, 0.0
      %v2136 = vmax.f32 %v2088, 0.0
      %v2137 = vmax.f32 %v2089, 0.0
      %v2138 = vmax.f32 %v2090, 0.0
      %v2139 = vmax.f32 %v2091, 0.0
      %v2140 = vmax.f32 %v2092, 0.0
      %v2141 = vmax.f32 %v2093, 0.0
      %v2142 = vmax.f32 %v2094, 0.0
      %v2143 = vmax.f32 %v2095, 0.0
      %v2144 = vmax.f32 %v2096, 0.0
      %v2145 = vmax.f32 %v2097, 0.0
      %v2146 = vmax.f32 %v2098, 0.0
      %v2147 = vmax.f32 %v2099, 0.0
      %v2148 = vmax.f32 %v2100, 0.0
      %v2149 = vmax.f32 %v2101, 0.0
      %v2150 = vmax.f32 %v2102, 0.0
      %v2151 = vmax.f32 %v2103, 0.0
      %v2152 = vmax.f32 %v2104, 0.0
      %v2153 = vmax.f32 %v2105, 0.0
      %v2154 = vmax.f32 %v2106, 0.0
      %v2155 = vmax.f32 %v2107, 0.0
      %v2156 = vmax.f32 %v2108, 0.0
      %v2157 = vmax.f32 %v2109, 0.0
      %v2158 = vmax.f32 %v2110, 0.0
      %v2159 = vmax.f32 %v2111, 0.0
      %v2160 = vmax.f32 %v2112, 0.0
      %v2161 = vmax.f32 %v2113, 0.0
      %v2162 = vmax.f32 %v2114, 0.0
      %v2163 = vmax.f32 %v2115, 0.0
      %v2164 = vmax.f32 %v2116, 0.0
      %v2165 = vmax.f32 %v2117, 0.0
      %v2166 = vmax.f32 %v2118, 0.0
      %v2167 = vmax.f32 %v2119, 0.0
      %v2168 = vmax.f32 %v2120, 0.0
      %v2169 = vmax.f32 %v2121, 0.0
      %v2170 = vmax.f32 %v2122, 0.0
      %v2171 = vmax.f32 %v2123, 0.0
      %v2172 = vmax.f32 %v2124, 0.0
      %v2173 = vmax.f32 %v2125, %v2127
      %v2174 = vmax.f32 %v2126, %v2128
      %2177 = vrot.lane.b32.xlu0 %v2173, 64
      %v2178 = vpop.permute.xlu0 %2177
      %2179 = vrot.lane.b32.xlu0 %v2174, 64
      %v2180 = vpop.permute.xlu0 %2179
      %v2183 = vmax.f32 %v2173, %v2178
      %v2184 = vmax.f32 %v2174, %v2180
      %v2185 = vpack.c.bf16 %v2184, %v2183
      %v2187 = vunpack.c.l.b16 %v2185
      %v2188 = vunpack.c.h.b16 %v2185
      %v2189 = vpack.c.b16 %v2187, %v2187
      %v2190 = vpack.c.b16 %v2188, %v2188
      %vm2193 = vcmask 519168
      %2194 = vst.msk [vmem:[%s224] sm:$0xf] %vm2193, %v2189
      %vm2195 = vcmask 517120
      %2196 = vst.msk [vmem:[%s224 + $0x4] sm:$0x3] %vm2195, %v2190
      %v2197 = vmax.f32 %v2129, %v2131
      %v2198 = vmax.f32 %v2130, %v2132
      %2201 = vrot.lane.b32.xlu0 %v2197, 64
      %v2202 = vpop.permute.xlu0 %2201
      %2203 = vrot.lane.b32.xlu0 %v2198, 64
      %v2204 = vpop.permute.xlu0 %2203
      %v2207 = vmax.f32 %v2197, %v2202
      %v2208 = vmax.f32 %v2198, %v2204
      %v2209 = vpack.c.bf16 %v2208, %v2207
      %v2211 = vunpack.c.l.b16 %v2209
      %v2212 = vunpack.c.h.b16 %v2209
      %v2213 = vpack.c.b16 %v2211, %v2211
      %v2214 = vpack.c.b16 %v2212, %v2212
      %s2217 = scalar_lea.vmem %s224, 8
      %2218 = vst.msk [vmem:[%s2217] sm:$0xf] %vm2193, %v2213
      %2219 = vst.msk [vmem:[%s2217 + $0x4] sm:$0x3] %vm2195, %v2214
      %v2220 = vmax.f32 %v2133, %v2135
      %v2221 = vmax.f32 %v2134, %v2136
      %2224 = vrot.lane.b32.xlu0 %v2220, 64
      %v2225 = vpop.permute.xlu0 %2224
      %2226 = vrot.lane.b32.xlu0 %v2221, 64
      %v2227 = vpop.permute.xlu0 %2226
      %v2230 = vmax.f32 %v2220, %v2225
      %v2231 = vmax.f32 %v2221, %v2227
      %v2232 = vpack.c.bf16 %v2231, %v2230
      %v2234 = vunpack.c.l.b16 %v2232
      %v2235 = vunpack.c.h.b16 %v2232
      %v2236 = vpack.c.b16 %v2234, %v2234
      %v2237 = vpack.c.b16 %v2235, %v2235
      %s2240 = scalar_lea.vmem %s224, 16
      %2241 = vst.msk [vmem:[%s2240] sm:$0xf] %vm2193, %v2236
      %2242 = vst.msk [vmem:[%s2240 + $0x4] sm:$0x3] %vm2195, %v2237
      %v2243 = vmax.f32 %v2137, %v2139
      %v2244 = vmax.f32 %v2138, %v2140
      %2247 = vrot.lane.b32.xlu0 %v2243, 64
      %v2248 = vpop.permute.xlu0 %2247
      %2249 = vrot.lane.b32.xlu0 %v2244, 64
      %v2250 = vpop.permute.xlu0 %2249
      %v2253 = vmax.f32 %v2243, %v2248
      %v2254 = vmax.f32 %v2244, %v2250
      %v2255 = vpack.c.bf16 %v2254, %v2253
      %v2257 = vunpack.c.l.b16 %v2255
      %v2258 = vunpack.c.h.b16 %v2255
      %v2259 = vpack.c.b16 %v2257, %v2257
      %v2260 = vpack.c.b16 %v2258, %v2258
      %s2263 = scalar_lea.vmem %s224, 24
      %2264 = vst.msk [vmem:[%s2263] sm:$0xf] %vm2193, %v2259
      %2265 = vst.msk [vmem:[%s2263 + $0x4] sm:$0x3] %vm2195, %v2260
      %v2266 = vmax.f32 %v2141, %v2143
      %v2267 = vmax.f32 %v2142, %v2144
      %2270 = vrot.lane.b32.xlu0 %v2266, 64
      %v2271 = vpop.permute.xlu0 %2270
      %2272 = vrot.lane.b32.xlu0 %v2267, 64
      %v2273 = vpop.permute.xlu0 %2272
      %v2276 = vmax.f32 %v2266, %v2271
      %v2277 = vmax.f32 %v2267, %v2273
      %v2278 = vpack.c.bf16 %v2277, %v2276
      %v2280 = vunpack.c.l.b16 %v2278
      %v2281 = vunpack.c.h.b16 %v2278
      %v2282 = vpack.c.b16 %v2280, %v2280
      %v2283 = vpack.c.b16 %v2281, %v2281
      %s2286 = scalar_lea.vmem %s224, 32
      %2287 = vst.msk [vmem:[%s2286] sm:$0xf] %vm2193, %v2282
      %2288 = vst.msk [vmem:[%s2286 + $0x4] sm:$0x3] %vm2195, %v2283
      %v2289 = vmax.f32 %v2145, %v2147
      %v2290 = vmax.f32 %v2146, %v2148
      %2293 = vrot.lane.b32.xlu0 %v2289, 64
      %v2294 = vpop.permute.xlu0 %2293
      %2295 = vrot.lane.b32.xlu0 %v2290, 64
      %v2296 = vpop.permute.xlu0 %2295
      %v2299 = vmax.f32 %v2289, %v2294
      %v2300 = vmax.f32 %v2290, %v2296
      %v2301 = vpack.c.bf16 %v2300, %v2299
      %v2303 = vunpack.c.l.b16 %v2301
      %v2304 = vunpack.c.h.b16 %v2301
      %v2305 = vpack.c.b16 %v2303, %v2303
      %v2306 = vpack.c.b16 %v2304, %v2304
      %s2309 = scalar_lea.vmem %s224, 40
      %2310 = vst.msk [vmem:[%s2309] sm:$0xf] %vm2193, %v2305
      %2311 = vst.msk [vmem:[%s2309 + $0x4] sm:$0x3] %vm2195, %v2306
      %v2312 = vmax.f32 %v2149, %v2151
      %v2313 = vmax.f32 %v2150, %v2152
      %2316 = vrot.lane.b32.xlu0 %v2312, 64
      %v2317 = vpop.permute.xlu0 %2316
      %2318 = vrot.lane.b32.xlu0 %v2313, 64
      %v2319 = vpop.permute.xlu0 %2318
      %v2322 = vmax.f32 %v2312, %v2317
      %v2323 = vmax.f32 %v2313, %v2319
      %v2324 = vpack.c.bf16 %v2323, %v2322
      %v2326 = vunpack.c.l.b16 %v2324
      %v2327 = vunpack.c.h.b16 %v2324
      %v2328 = vpack.c.b16 %v2326, %v2326
      %v2329 = vpack.c.b16 %v2327, %v2327
      %s2332 = scalar_lea.vmem %s224, 48
      %2333 = vst.msk [vmem:[%s2332] sm:$0xf] %vm2193, %v2328
      %2334 = vst.msk [vmem:[%s2332 + $0x4] sm:$0x3] %vm2195, %v2329
      %v2335 = vmax.f32 %v2153, %v2155
      %v2336 = vmax.f32 %v2154, %v2156
      %2339 = vrot.lane.b32.xlu0 %v2335, 64
      %v2340 = vpop.permute.xlu0 %2339
      %2341 = vrot.lane.b32.xlu0 %v2336, 64
      %v2342 = vpop.permute.xlu0 %2341
      %v2345 = vmax.f32 %v2335, %v2340
      %v2346 = vmax.f32 %v2336, %v2342
      %v2347 = vpack.c.bf16 %v2346, %v2345
      %v2349 = vunpack.c.l.b16 %v2347
      %v2350 = vunpack.c.h.b16 %v2347
      %v2351 = vpack.c.b16 %v2349, %v2349
      %v2352 = vpack.c.b16 %v2350, %v2350
      %s2355 = scalar_lea.vmem %s224, 56
      %2356 = vst.msk [vmem:[%s2355] sm:$0xf] %vm2193, %v2351
      %2357 = vst.msk [vmem:[%s2355 + $0x4] sm:$0x3] %vm2195, %v2352
      %v2358 = vmax.f32 %v2157, %v2159
      %v2359 = vmax.f32 %v2158, %v2160
      %2362 = vrot.lane.b32.xlu0 %v2358, 64
      %v2363 = vpop.permute.xlu0 %2362
      %2364 = vrot.lane.b32.xlu0 %v2359, 64
      %v2365 = vpop.permute.xlu0 %2364
      %v2368 = vmax.f32 %v2358, %v2363
      %v2369 = vmax.f32 %v2359, %v2365
      %v2370 = vpack.c.bf16 %v2369, %v2368
      %v2372 = vunpack.c.l.b16 %v2370
      %v2373 = vunpack.c.h.b16 %v2370
      %v2374 = vpack.c.b16 %v2372, %v2372
      %v2375 = vpack.c.b16 %v2373, %v2373
      %s2378 = scalar_lea.vmem %s224, 64
      %2379 = vst.msk [vmem:[%s2378] sm:$0xf] %vm2193, %v2374
      %2380 = vst.msk [vmem:[%s2378 + $0x4] sm:$0x3] %vm2195, %v2375
      %v2381 = vmax.f32 %v2161, %v2163
      %v2382 = vmax.f32 %v2162, %v2164
      %2385 = vrot.lane.b32.xlu0 %v2381, 64
      %v2386 = vpop.permute.xlu0 %2385
      %2387 = vrot.lane.b32.xlu0 %v2382, 64
      %v2388 = vpop.permute.xlu0 %2387
      %v2391 = vmax.f32 %v2381, %v2386
      %v2392 = vmax.f32 %v2382, %v2388
      %v2393 = vpack.c.bf16 %v2392, %v2391
      %v2395 = vunpack.c.l.b16 %v2393
      %v2396 = vunpack.c.h.b16 %v2393
      %v2397 = vpack.c.b16 %v2395, %v2395
      %v2398 = vpack.c.b16 %v2396, %v2396
      %s2401 = scalar_lea.vmem %s224, 72
      %2402 = vst.msk [vmem:[%s2401] sm:$0xf] %vm2193, %v2397
      %2403 = vst.msk [vmem:[%s2401 + $0x4] sm:$0x3] %vm2195, %v2398
      %v2404 = vmax.f32 %v2165, %v2167
      %v2405 = vmax.f32 %v2166, %v2168
      %2408 = vrot.lane.b32.xlu0 %v2404, 64
      %v2409 = vpop.permute.xlu0 %2408
      %2410 = vrot.lane.b32.xlu0 %v2405, 64
      %v2411 = vpop.permute.xlu0 %2410
      %v2414 = vmax.f32 %v2404, %v2409
      %v2415 = vmax.f32 %v2405, %v2411
      %v2416 = vpack.c.bf16 %v2415, %v2414
      %v2418 = vunpack.c.l.b16 %v2416
      %v2419 = vunpack.c.h.b16 %v2416
      %v2420 = vpack.c.b16 %v2418, %v2418
      %v2421 = vpack.c.b16 %v2419, %v2419
      %s2424 = scalar_lea.vmem %s224, 80
      %2425 = vst.msk [vmem:[%s2424] sm:$0xf] %vm2193, %v2420
      %2426 = vst.msk [vmem:[%s2424 + $0x4] sm:$0x3] %vm2195, %v2421
      %v2427 = vmax.f32 %v2169, %v2171
      %v2428 = vmax.f32 %v2170, %v2172
      %2431 = vrot.lane.b32.xlu0 %v2427, 64
      %v2432 = vpop.permute.xlu0 %2431
      %2433 = vrot.lane.b32.xlu0 %v2428, 64
      %v2434 = vpop.permute.xlu0 %2433
      %v2437 = vmax.f32 %v2427, %v2432
      %v2438 = vmax.f32 %v2428, %v2434
      %v2439 = vpack.c.bf16 %v2438, %v2437
      %v2441 = vunpack.c.l.b16 %v2439
      %v2442 = vunpack.c.h.b16 %v2439
      %v2443 = vpack.c.b16 %v2441, %v2441
      %v2444 = vpack.c.b16 %v2442, %v2442
      %s2447 = scalar_lea.vmem %s224, 88
      %2448 = vst.msk [vmem:[%s2447] sm:$0xf] %vm2193, %v2443
      %2449 = vst.msk [vmem:[%s2447 + $0x4] sm:$0x3] %vm2195, %v2444
      %p2450 = scmp.lt.s32.totalorder %s16, 1
      %s2451 = scalar_select %p2450, %s16, 1
      %s2452 = smul.addr %s2451, 24
      %s2453 = smul.addr %s2452, 4
      %s2454 = scalar_lea.vmem %s5, %s2453
      // Predicated region
      $region41: #{net_forward.2} parent=39 // pred_check
        %p2455 = pneg %p144
      $region42: #{net_forward.2} parent=39 // pred_check_branch
        %2457 = sbr.rel (%p2455) target = $region44
      $region43: #{net_forward.2} parent=39 // pred_region
        _
      $region44: #{net_forward.2} parent=39 // pred_fallthru
        _
    $region40: #{net_forward.2} parent=5 // pred_fallthru
      _
    %p2458 = scmp.le.s32.totalorder 2, %s11
    // Predicated region
    $region45: #{net_forward.2} parent=5 // pred_check
      %p2459 = pneg %p2458
    $region46: #{net_forward.2} parent=5 // pred_check_branch
      %2461 = sbr.rel (%p2459) target = $region48
    $region47: #{net_forward.2} parent=5 // pred_region
      %s2462 = ssub.s32 %s11, 2
      // Predicated region
      $region49: #{net_forward.2} parent=47 // pred_check
        %p2463 = pneg %p150
      $region50: #{net_forward.2} parent=47 // pred_check_branch
        %2465 = sbr.rel (%p2463) target = $region52
      $region51: #{net_forward.2} parent=47 // pred_region
        %p2466 = scmp.lt.s32.totalorder %s17, 1
        %s2467 = scalar_select %p2466, %s17, 1
        %s2468 = smul.addr %s2467, 24
        %s2469 = smul.addr %s2468, 4
        %s2470 = scalar_lea.vmem %s5, %s2469
      $region52: #{net_forward.2} parent=47 // pred_fallthru
        _
    $region48: #{net_forward.2} parent=5 // pred_fallthru
      _
  $region6: #{net_forward.2} parent=0 // loop_footer
    %s15 = sadd.s32 1, %s11
  $region7: #{net_forward.2} parent=0 // loop_footer_branch
    %10 = sbr.rel target = $region3
  $region8: #{net_forward.2} parent=0 // loop_exit
    _

</llo_original>
